<compile_context>
chip_gen: v7x
topology: tpu7x:2x2x1
jax: 0.10.0
libtpu: 0.0.40
codegen_flags: <defaults>
</compile_context>

<pallas_src>
import math

import jax
import jax.numpy as jnp
from jax.experimental import pallas as pl
from jax.experimental.pallas import tpu as pltpu

LEAKY_SLOPE = 0.2
BN_EPS = 0.8          # nn.BatchNorm1d(out_feat, 0.8) sets eps=0.8 positionally.

# Hidden widths of the Generator MLP and offsets into the concatenated bias.
_H1, _H2, _H3, _H4 = 128, 256, 512, 1024
_B1_OFF = 0
_B2_OFF = _H1                       # 128
_B3_OFF = _H1 + _H2                 # 384
_B4_OFF = _H1 + _H2 + _H3           # 896
_BCAT_LEN = _H1 + _H2 + _H3 + _H4   # 1920 (multiple of 128)


# ---------------------------------------------------------------------------
# Single fused Pallas kernel: whole Generator MLP, one output-feature tile.
# ---------------------------------------------------------------------------
def _generator_kernel(z_ref, w1_ref, w2_ref, w3_ref, w4_ref, bcat_ref,
                      w5_ref, b5_ref, o_ref):
    def linear(x_f32, w_ref, b_f32):
        # bf16 operands into the MXU, f32 accumulation.
        x = x_f32.astype(w_ref.dtype)
        y = jnp.dot(x, w_ref[...], preferred_element_type=jnp.float32)
        return y + b_f32

    def batch_norm(y):
        # BatchNorm1d, training mode: per-batch mean, biased variance,
        # eps=0.8, default affine params (gamma=1, beta=0).  The full batch is
        # present in every grid step, so the statistics are exact.
        mean = jnp.mean(y, axis=0, keepdims=True)
        var = jnp.mean((y - mean) * (y - mean), axis=0, keepdims=True)
        return (y - mean) * jax.lax.rsqrt(var + BN_EPS)

    def leaky_relu(y):
        return jnp.maximum(y, LEAKY_SLOPE * y)   # single VALU op

    h = z_ref[...].astype(jnp.float32)
    # block(latent_dim, 128, normalize=False)
    h = leaky_relu(linear(h, w1_ref, bcat_ref[:, _B1_OFF:_B2_OFF]))
    # block(128, 256) / block(256, 512) / block(512, 1024)
    h = leaky_relu(batch_norm(linear(h, w2_ref, bcat_ref[:, _B2_OFF:_B3_OFF])))
    h = leaky_relu(batch_norm(linear(h, w3_ref, bcat_ref[:, _B3_OFF:_B4_OFF])))
    h = leaky_relu(batch_norm(linear(h, w4_ref, bcat_ref[:, _B4_OFF:_BCAT_LEN])))
    # Linear(1024, prod(img_shape)) + Tanh — only this tile's output columns.
    o_ref[...] = jnp.tanh(linear(h, w5_ref, b5_ref[...])).astype(o_ref.dtype)


# ---------------------------------------------------------------------------
# Wrapper
# ---------------------------------------------------------------------------
def generator_forward(z, params, img_shape, *, tile_n=256):
    """z: [B, latent_dim] -> [B, *img_shape] (NCHW), all layers in one kernel."""
    B = z.shape[0]
    out_dim = math.prod(img_shape)

    (w1, b1), (w2, b2), (w3, b3), (w4, b4), (w5, b5) = params
    # Merge the four tiny hidden-layer biases into a single DMA.
    bcat = jnp.concatenate([b1, b2, b3, b4], axis=1)   # (1, 1920) f32

    if out_dim % tile_n != 0:
        tile_n = out_dim            # fall back to a single output tile
    n_tiles = out_dim // tile_n

    def resident(shape):
        # Grid-invariant block: fetched once, stays VMEM-resident across tiles.
        return pl.BlockSpec(shape, lambda j: (0, 0))

    out = pl.pallas_call(
        _generator_kernel,
        out_shape=jax.ShapeDtypeStruct((B, out_dim), jnp.float32),
        grid=(n_tiles,),
        in_specs=[
            resident(z.shape),        # z          (B, latent)
            resident(w1.shape),       # W1         (latent, 128)
            resident(w2.shape),       # W2         (128, 256)
            resident(w3.shape),       # W3         (256, 512)
            resident(w4.shape),       # W4         (512, 1024)
            resident(bcat.shape),     # b1..b4     (1, 1920)
            pl.BlockSpec((w5.shape[0], tile_n), lambda j: (0, j)),  # W5 tile
            pl.BlockSpec((1, tile_n), lambda j: (0, j)),            # b5 tile
        ],
        out_specs=pl.BlockSpec((B, tile_n), lambda j: (0, j)),
        compiler_params=pltpu.CompilerParams(
            dimension_semantics=("parallel",),   # v7x: split tiles over 2 TCs
        ),
    )(z, w1, w2, w3, w4, bcat, w5, b5)

    # img.view(B, *img_shape) -> NCHW
    return out.reshape((B,) + tuple(img_shape))


# ---------------------------------------------------------------------------
# Parameter setup (deterministic, mimics nn.Linear default init bounds)
# ---------------------------------------------------------------------------
def init_linear(key, in_feat, out_feat):
    kw, kb = jax.random.split(key)
    bound = 1.0 / math.sqrt(in_feat)
    # Stored in (in, out) layout so the kernel does x @ w.
    w_t = jax.random.uniform(kw, (in_feat, out_feat), jnp.float32, -bound, bound)
    b = jax.random.uniform(kb, (1, out_feat), jnp.float32, -bound, bound)
    # Weights streamed as bf16 (halves HBM bytes); biases stay f32 (tiny).
    return w_t.astype(jnp.bfloat16), b


def init_generator_params(key, latent_dim, img_shape):
    out_dim = math.prod(img_shape)
    dims = [(latent_dim, _H1), (_H1, _H2), (_H2, _H3), (_H3, _H4), (_H4, out_dim)]
    keys = jax.random.split(key, len(dims))
    return [init_linear(k, fi, fo) for k, (fi, fo) in zip(keys, dims)]


# ---------------------------------------------------------------------------
# Pure-JAX reference mirroring the kernel math (bf16 weights, f32 accumulation)
# ---------------------------------------------------------------------------
def generator_reference(z, params):
    def linear(h, w, b):
        return jnp.dot(h.astype(w.dtype), w, preferred_element_type=jnp.float32) + b

    def bn(y):
        m = jnp.mean(y, axis=0, keepdims=True)
        v = jnp.mean((y - m) * (y - m), axis=0, keepdims=True)
        return (y - m) * jax.lax.rsqrt(v + BN_EPS)

    def lrelu(y):
        return jnp.maximum(y, LEAKY_SLOPE * y)

    (w1, b1), (w2, b2), (w3, b3), (w4, b4), (w5, b5) = params
    h = lrelu(linear(z, w1, b1))
    h = lrelu(bn(linear(h, w2, b2)))
    h = lrelu(bn(linear(h, w3, b3)))
    h = lrelu(bn(linear(h, w4, b4)))
    return jnp.tanh(linear(h, w5, b5))


if __name__ == "__main__":
    img_shape = (4, 16, 16)   # (C, H, W); prod = 1024
    latent_dim = 8
    batch = 2                 # kept whole (no batch tiling) so BN stats are exact

    key = jax.random.PRNGKey(0)
    kz, kp = jax.random.split(key)
    z = jax.random.normal(kz, (batch, latent_dim), jnp.float32)
    params = init_generator_params(kp, latent_dim, img_shape)

    img = generator_forward(z, params, img_shape)
    img = jax.block_until_ready(img)

    assert img.shape == (batch,) + img_shape, img.shape
    assert img.dtype == jnp.float32
    assert bool(jnp.all(jnp.isfinite(img)))
    # Tanh output must be in [-1, 1]
    assert float(jnp.max(jnp.abs(img))) <= 1.0 + 1e-6

    ref = generator_reference(z, params).reshape(img.shape)
    max_err = float(jnp.max(jnp.abs(img - ref)))
    assert max_err < 2e-2, f"max |kernel - reference| = {max_err}"

    print("KERNEL_OK")
</pallas_src>

<mosaic_0001>
module attributes {stable_mosaic.version = 11 : i64} {
  func.func @_generator_kernel(%arg0: i32, %arg1: memref<2x8xf32, #tpu.memory_space<vmem>>, %arg2: memref<8x128xbf16, #tpu.memory_space<vmem>>, %arg3: memref<128x256xbf16, #tpu.memory_space<vmem>>, %arg4: memref<256x512xbf16, #tpu.memory_space<vmem>>, %arg5: memref<512x1024xbf16, #tpu.memory_space<vmem>>, %arg6: memref<1x1920xf32, #tpu.memory_space<vmem>>, %arg7: memref<1024x256xbf16, #tpu.memory_space<vmem>>, %arg8: memref<1x256xf32, #tpu.memory_space<vmem>>, %arg9: memref<2x256xf32, #tpu.memory_space<vmem>>) attributes {dimension_semantics = [#tpu.dimension_semantics<parallel>], iteration_bounds = array<i64: 4>, scalar_prefetch = 0 : i64, scratch_operands = 0 : i64, tpu.core_type = #tpu.core_type<tc>, window_params = [{pipeline_mode = #tpu.pipeline_mode<synchronous>, transform_indices = @transform_0, window_bounds = array<i64: 2, 8>}, {pipeline_mode = #tpu.pipeline_mode<synchronous>, transform_indices = @transform_1, window_bounds = array<i64: 8, 128>}, {pipeline_mode = #tpu.pipeline_mode<synchronous>, transform_indices = @transform_2, window_bounds = array<i64: 128, 256>}, {pipeline_mode = #tpu.pipeline_mode<synchronous>, transform_indices = @transform_3, window_bounds = array<i64: 256, 512>}, {pipeline_mode = #tpu.pipeline_mode<synchronous>, transform_indices = @transform_4, window_bounds = array<i64: 512, 1024>}, {pipeline_mode = #tpu.pipeline_mode<synchronous>, transform_indices = @transform_5, window_bounds = array<i64: 1, 1920>}, {transform_indices = @transform_6, window_bounds = array<i64: 1024, 256>}, {transform_indices = @transform_7, window_bounds = array<i64: 1, 256>}, {transform_indices = @transform_8, window_bounds = array<i64: 2, 256>}]} {
    %c0 = arith.constant 0 : index
    %c0_0 = arith.constant 0 : index
    %0 = vector.load %arg1[%c0, %c0_0] : memref<2x8xf32, #tpu.memory_space<vmem>>, vector<2x8xf32>
    %c0_1 = arith.constant 0 : index
    %c0_2 = arith.constant 0 : index
    %1 = vector.load %arg6[%c0_1, %c0_2] : memref<1x1920xf32, #tpu.memory_space<vmem>>, vector<1x128xf32>
    %2 = arith.truncf %0 : vector<2x8xf32> to vector<2x8xbf16>
    %c0_3 = arith.constant 0 : index
    %c0_4 = arith.constant 0 : index
    %3 = vector.load %arg2[%c0_3, %c0_4] : memref<8x128xbf16, #tpu.memory_space<vmem>>, vector<8x128xbf16>
    %cst = arith.constant dense<0.000000e+00> : vector<2x128xf32>
    %4 = tpu.matmul %2, %3, %cst {dimension_numbers = #tpu.dot_dimension_numbers<[1], [0], [0], [1], [0, 0, 1, 1], [], []>} : vector<2x8xbf16>, vector<8x128xbf16>, vector<2x128xf32> -> vector<2x128xf32>
    %5 = vector.broadcast %1 : vector<1x128xf32> to vector<2x128xf32>
    %6 = arith.addf %4, %5 : vector<2x128xf32>
    %cst_5 = arith.constant 2.000000e-01 : f32
    %7 = vector.broadcast %cst_5 : f32 to vector<2x128xf32>
    %8 = arith.mulf %7, %6 : vector<2x128xf32>
    %9 = arith.maximumf %6, %8 : vector<2x128xf32>
    %c0_6 = arith.constant 0 : index
    %c128 = arith.constant 128 : index
    %10 = vector.load %arg6[%c0_6, %c128] : memref<1x1920xf32, #tpu.memory_space<vmem>>, vector<1x256xf32>
    %11 = arith.truncf %9 : vector<2x128xf32> to vector<2x128xbf16>
    %c0_7 = arith.constant 0 : index
    %c0_8 = arith.constant 0 : index
    %12 = vector.load %arg3[%c0_7, %c0_8] : memref<128x256xbf16, #tpu.memory_space<vmem>>, vector<128x256xbf16>
    %cst_9 = arith.constant dense<0.000000e+00> : vector<2x256xf32>
    %13 = tpu.matmul %11, %12, %cst_9 {dimension_numbers = #tpu.dot_dimension_numbers<[1], [0], [0], [1], [0, 0, 1, 1], [], []>} : vector<2x128xbf16>, vector<128x256xbf16>, vector<2x256xf32> -> vector<2x256xf32>
    %14 = vector.broadcast %10 : vector<1x256xf32> to vector<2x256xf32>
    %15 = arith.addf %13, %14 : vector<2x256xf32>
    %cst_10 = arith.constant dense<0.000000e+00> : vector<256xf32>
    %16 = vector.multi_reduction <add>, %15, %cst_10 [0] : vector<2x256xf32> to vector<256xf32>
    %17 = vector.shape_cast %16 : vector<256xf32> to vector<1x256xf32>
    %cst_11 = arith.constant 2.000000e+00 : f32
    %18 = vector.broadcast %cst_11 : f32 to vector<1x256xf32>
    %19 = arith.divf %17, %18 : vector<1x256xf32>
    %20 = vector.broadcast %19 : vector<1x256xf32> to vector<2x256xf32>
    %21 = arith.subf %15, %20 : vector<2x256xf32>
    %22 = vector.broadcast %19 : vector<1x256xf32> to vector<2x256xf32>
    %23 = arith.subf %15, %22 : vector<2x256xf32>
    %24 = arith.mulf %21, %23 : vector<2x256xf32>
    %cst_12 = arith.constant dense<0.000000e+00> : vector<256xf32>
    %25 = vector.multi_reduction <add>, %24, %cst_12 [0] : vector<2x256xf32> to vector<256xf32>
    %26 = vector.shape_cast %25 : vector<256xf32> to vector<1x256xf32>
    %cst_13 = arith.constant 2.000000e+00 : f32
    %27 = vector.broadcast %cst_13 : f32 to vector<1x256xf32>
    %28 = arith.divf %26, %27 : vector<1x256xf32>
    %29 = vector.broadcast %19 : vector<1x256xf32> to vector<2x256xf32>
    %30 = arith.subf %15, %29 : vector<2x256xf32>
    %cst_14 = arith.constant 8.000000e-01 : f32
    %31 = vector.broadcast %cst_14 : f32 to vector<1x256xf32>
    %32 = arith.addf %28, %31 : vector<1x256xf32>
    %33 = math.rsqrt %32 : vector<1x256xf32>
    %34 = vector.broadcast %33 : vector<1x256xf32> to vector<2x256xf32>
    %35 = arith.mulf %30, %34 : vector<2x256xf32>
    %cst_15 = arith.constant 2.000000e-01 : f32
    %36 = vector.broadcast %cst_15 : f32 to vector<2x256xf32>
    %37 = arith.mulf %36, %35 : vector<2x256xf32>
    %38 = arith.maximumf %35, %37 : vector<2x256xf32>
    %c0_16 = arith.constant 0 : index
    %c384 = arith.constant 384 : index
    %39 = vector.load %arg6[%c0_16, %c384] : memref<1x1920xf32, #tpu.memory_space<vmem>>, vector<1x512xf32>
    %40 = arith.truncf %38 : vector<2x256xf32> to vector<2x256xbf16>
    %c0_17 = arith.constant 0 : index
    %c0_18 = arith.constant 0 : index
    %41 = vector.load %arg4[%c0_17, %c0_18] : memref<256x512xbf16, #tpu.memory_space<vmem>>, vector<256x512xbf16>
    %cst_19 = arith.constant dense<0.000000e+00> : vector<2x512xf32>
    %42 = tpu.matmul %40, %41, %cst_19 {dimension_numbers = #tpu.dot_dimension_numbers<[1], [0], [0], [1], [0, 0, 1, 1], [], []>} : vector<2x256xbf16>, vector<256x512xbf16>, vector<2x512xf32> -> vector<2x512xf32>
    %43 = vector.broadcast %39 : vector<1x512xf32> to vector<2x512xf32>
    %44 = arith.addf %42, %43 : vector<2x512xf32>
    %cst_20 = arith.constant dense<0.000000e+00> : vector<512xf32>
    %45 = vector.multi_reduction <add>, %44, %cst_20 [0] : vector<2x512xf32> to vector<512xf32>
    %46 = vector.shape_cast %45 : vector<512xf32> to vector<1x512xf32>
    %cst_21 = arith.constant 2.000000e+00 : f32
    %47 = vector.broadcast %cst_21 : f32 to vector<1x512xf32>
    %48 = arith.divf %46, %47 : vector<1x512xf32>
    %49 = vector.broadcast %48 : vector<1x512xf32> to vector<2x512xf32>
    %50 = arith.subf %44, %49 : vector<2x512xf32>
    %51 = vector.broadcast %48 : vector<1x512xf32> to vector<2x512xf32>
    %52 = arith.subf %44, %51 : vector<2x512xf32>
    %53 = arith.mulf %50, %52 : vector<2x512xf32>
    %cst_22 = arith.constant dense<0.000000e+00> : vector<512xf32>
    %54 = vector.multi_reduction <add>, %53, %cst_22 [0] : vector<2x512xf32> to vector<512xf32>
    %55 = vector.shape_cast %54 : vector<512xf32> to vector<1x512xf32>
    %cst_23 = arith.constant 2.000000e+00 : f32
    %56 = vector.broadcast %cst_23 : f32 to vector<1x512xf32>
    %57 = arith.divf %55, %56 : vector<1x512xf32>
    %58 = vector.broadcast %48 : vector<1x512xf32> to vector<2x512xf32>
    %59 = arith.subf %44, %58 : vector<2x512xf32>
    %cst_24 = arith.constant 8.000000e-01 : f32
    %60 = vector.broadcast %cst_24 : f32 to vector<1x512xf32>
    %61 = arith.addf %57, %60 : vector<1x512xf32>
    %62 = math.rsqrt %61 : vector<1x512xf32>
    %63 = vector.broadcast %62 : vector<1x512xf32> to vector<2x512xf32>
    %64 = arith.mulf %59, %63 : vector<2x512xf32>
    %cst_25 = arith.constant 2.000000e-01 : f32
    %65 = vector.broadcast %cst_25 : f32 to vector<2x512xf32>
    %66 = arith.mulf %65, %64 : vector<2x512xf32>
    %67 = arith.maximumf %64, %66 : vector<2x512xf32>
    %c0_26 = arith.constant 0 : index
    %c896 = arith.constant 896 : index
    %68 = vector.load %arg6[%c0_26, %c896] : memref<1x1920xf32, #tpu.memory_space<vmem>>, vector<1x1024xf32>
    %69 = arith.truncf %67 : vector<2x512xf32> to vector<2x512xbf16>
    %c0_27 = arith.constant 0 : index
    %c0_28 = arith.constant 0 : index
    %70 = vector.load %arg5[%c0_27, %c0_28] : memref<512x1024xbf16, #tpu.memory_space<vmem>>, vector<512x1024xbf16>
    %cst_29 = arith.constant dense<0.000000e+00> : vector<2x1024xf32>
    %71 = tpu.matmul %69, %70, %cst_29 {dimension_numbers = #tpu.dot_dimension_numbers<[1], [0], [0], [1], [0, 0, 1, 1], [], []>} : vector<2x512xbf16>, vector<512x1024xbf16>, vector<2x1024xf32> -> vector<2x1024xf32>
    %72 = vector.broadcast %68 : vector<1x1024xf32> to vector<2x1024xf32>
    %73 = arith.addf %71, %72 : vector<2x1024xf32>
    %cst_30 = arith.constant dense<0.000000e+00> : vector<1024xf32>
    %74 = vector.multi_reduction <add>, %73, %cst_30 [0] : vector<2x1024xf32> to vector<1024xf32>
    %75 = vector.shape_cast %74 : vector<1024xf32> to vector<1x1024xf32>
    %cst_31 = arith.constant 2.000000e+00 : f32
    %76 = vector.broadcast %cst_31 : f32 to vector<1x1024xf32>
    %77 = arith.divf %75, %76 : vector<1x1024xf32>
    %78 = vector.broadcast %77 : vector<1x1024xf32> to vector<2x1024xf32>
    %79 = arith.subf %73, %78 : vector<2x1024xf32>
    %80 = vector.broadcast %77 : vector<1x1024xf32> to vector<2x1024xf32>
    %81 = arith.subf %73, %80 : vector<2x1024xf32>
    %82 = arith.mulf %79, %81 : vector<2x1024xf32>
    %cst_32 = arith.constant dense<0.000000e+00> : vector<1024xf32>
    %83 = vector.multi_reduction <add>, %82, %cst_32 [0] : vector<2x1024xf32> to vector<1024xf32>
    %84 = vector.shape_cast %83 : vector<1024xf32> to vector<1x1024xf32>
    %cst_33 = arith.constant 2.000000e+00 : f32
    %85 = vector.broadcast %cst_33 : f32 to vector<1x1024xf32>
    %86 = arith.divf %84, %85 : vector<1x1024xf32>
    %87 = vector.broadcast %77 : vector<1x1024xf32> to vector<2x1024xf32>
    %88 = arith.subf %73, %87 : vector<2x1024xf32>
    %cst_34 = arith.constant 8.000000e-01 : f32
    %89 = vector.broadcast %cst_34 : f32 to vector<1x1024xf32>
    %90 = arith.addf %86, %89 : vector<1x1024xf32>
    %91 = math.rsqrt %90 : vector<1x1024xf32>
    %92 = vector.broadcast %91 : vector<1x1024xf32> to vector<2x1024xf32>
    %93 = arith.mulf %88, %92 : vector<2x1024xf32>
    %cst_35 = arith.constant 2.000000e-01 : f32
    %94 = vector.broadcast %cst_35 : f32 to vector<2x1024xf32>
    %95 = arith.mulf %94, %93 : vector<2x1024xf32>
    %96 = arith.maximumf %93, %95 : vector<2x1024xf32>
    %c0_36 = arith.constant 0 : index
    %c0_37 = arith.constant 0 : index
    %97 = vector.load %arg8[%c0_36, %c0_37] : memref<1x256xf32, #tpu.memory_space<vmem>>, vector<1x256xf32>
    %98 = arith.truncf %96 : vector<2x1024xf32> to vector<2x1024xbf16>
    %c0_38 = arith.constant 0 : index
    %c0_39 = arith.constant 0 : index
    %99 = vector.load %arg7[%c0_38, %c0_39] : memref<1024x256xbf16, #tpu.memory_space<vmem>>, vector<1024x256xbf16>
    %cst_40 = arith.constant dense<0.000000e+00> : vector<2x256xf32>
    %100 = tpu.matmul %98, %99, %cst_40 {dimension_numbers = #tpu.dot_dimension_numbers<[1], [0], [0], [1], [0, 0, 1, 1], [], []>} : vector<2x1024xbf16>, vector<1024x256xbf16>, vector<2x256xf32> -> vector<2x256xf32>
    %101 = vector.broadcast %97 : vector<1x256xf32> to vector<2x256xf32>
    %102 = arith.addf %100, %101 : vector<2x256xf32>
    %103 = math.tanh %102 : vector<2x256xf32>
    %c0_41 = arith.constant 0 : index
    %c0_42 = arith.constant 0 : index
    %104 = vector.load %arg9[%c0_41, %c0_42] : memref<2x256xf32, #tpu.memory_space<vmem>>, vector<2x256xf32>
    tpu.vector_store %arg9[%c0_41, %c0_42], %103 {strides = array<i32>} : memref<2x256xf32, #tpu.memory_space<vmem>>, vector<2x256xf32>,
    return
  }
  func.func @transform_0(%arg0: i32) -> (i32, i32) {
    %c0_i32 = arith.constant 0 : i32
    %c0_i32_0 = arith.constant 0 : i32
    %c0_i32_1 = arith.constant 0 : i32
    return %c0_i32, %c0_i32_0 : i32, i32
  }
  func.func @transform_1(%arg0: i32) -> (i32, i32) {
    %c0_i32 = arith.constant 0 : i32
    %c0_i32_0 = arith.constant 0 : i32
    %c0_i32_1 = arith.constant 0 : i32
    return %c0_i32, %c0_i32_0 : i32, i32
  }
  func.func @transform_2(%arg0: i32) -> (i32, i32) {
    %c0_i32 = arith.constant 0 : i32
    %c0_i32_0 = arith.constant 0 : i32
    %c0_i32_1 = arith.constant 0 : i32
    return %c0_i32, %c0_i32_0 : i32, i32
  }
  func.func @transform_3(%arg0: i32) -> (i32, i32) {
    %c0_i32 = arith.constant 0 : i32
    %c0_i32_0 = arith.constant 0 : i32
    %c0_i32_1 = arith.constant 0 : i32
    return %c0_i32, %c0_i32_0 : i32, i32
  }
  func.func @transform_4(%arg0: i32) -> (i32, i32) {
    %c0_i32 = arith.constant 0 : i32
    %c0_i32_0 = arith.constant 0 : i32
    %c0_i32_1 = arith.constant 0 : i32
    return %c0_i32, %c0_i32_0 : i32, i32
  }
  func.func @transform_5(%arg0: i32) -> (i32, i32) {
    %c0_i32 = arith.constant 0 : i32
    %c0_i32_0 = arith.constant 0 : i32
    %c0_i32_1 = arith.constant 0 : i32
    return %c0_i32, %c0_i32_0 : i32, i32
  }
  func.func @transform_6(%arg0: i32) -> (i32, i32) {
    %c0_i32 = arith.constant 0 : i32
    %c0_i32_0 = arith.constant 0 : i32
    return %c0_i32, %arg0 : i32, i32
  }
  func.func @transform_7(%arg0: i32) -> (i32, i32) {
    %c0_i32 = arith.constant 0 : i32
    %c0_i32_0 = arith.constant 0 : i32
    return %c0_i32, %arg0 : i32, i32
  }
  func.func @transform_8(%arg0: i32) -> (i32, i32) {
    %c0_i32 = arith.constant 0 : i32
    %c0_i32_0 = arith.constant 0 : i32
    return %c0_i32, %arg0 : i32, i32
  }
}

</mosaic_0001>

<llo_original>
// kernel: tpu_custom_call.1
$region0: #{tpu_custom_call.1}
  #allocation0 [shape = 'u32[]', space=smem, size = 0x4, offset = 0x4, fixed_abs, tag = 'smem constant byte address 0x4 - core index']
  #allocation1 [shape = 'u32[144,128]{1,0:T(1,128)}', space=vmem, size = 0x12000, scoped, tag = 'internal scratch']
  %s0 = inlined_call_operand.hbm [shape: f32[2,8], index: 0, kind: input, shape index: {}]
  %s1 = inlined_call_operand.hbm [shape: bf16[8,128], index: 1, kind: input, shape index: {}]
  %s2 = inlined_call_operand.hbm [shape: bf16[128,256], index: 2, kind: input, shape index: {}]
  %s3 = inlined_call_operand.hbm [shape: bf16[256,512], index: 3, kind: input, shape index: {}]
  %s4 = inlined_call_operand.hbm [shape: bf16[512,1024], index: 4, kind: input, shape index: {}]
  %s5 = inlined_call_operand.hbm [shape: f32[1,1920], index: 5, kind: input, shape index: {}]
  %s6 = inlined_call_operand.hbm [shape: bf16[1024,1024], index: 6, kind: input, shape index: {}]
  %s7 = inlined_call_operand.hbm [shape: f32[1,1024], index: 7, kind: input, shape index: {}]
  %s8 = inlined_call_operand.hbm [shape: f32[2,1024], index: 8, kind: output, shape index: {}]
  %s9 = sld [smem:[#allocation0]]
  $region97: #{tpu_custom_call.1} parent=0
    _
  %s11 = ssub.s32 1, %s9
  %s12 = scalar_select 0, %s11, %s9
  $region1: #{tpu_custom_call.1} parent=0
    #allocation2 [shape = 'u8[1024]{0}', space=vmem, size = 0x400, scoped, tag = 'input window, operand 0, single buffered']
    #allocation3 [shape = 's32[2]{0}', space=sflag, size = 0x8, scoped, tag = 'scoped memory for tpu_custom_call.1']
    #allocation4 [shape = 's32[2]{0}', space=sflag, size = 0x8, scoped, tag = 'scoped memory for tpu_custom_call.1']
    #allocation5 [shape = 'u8[2048]{0}', space=vmem, size = 0x800, scoped, tag = 'input window, operand 1, single buffered']
    #allocation6 [shape = 's32[1]{0}', space=sflag, size = 0x4, scoped, tag = 'scoped memory for tpu_custom_call.1']
    #allocation7 [shape = 'u8[65536]{0}', space=vmem, size = 0x10000, scoped, tag = 'input window, operand 2, single buffered']
    #allocation8 [shape = 'u8[262144]{0}', space=vmem, size = 0x40000, scoped, tag = 'input window, operand 3, single buffered']
    #allocation9 [shape = 's32[1]{0}', space=sflag, size = 0x4, scoped, tag = 'scoped memory for tpu_custom_call.1']
    #allocation10 [shape = 'u8[1048576]{0}', space=vmem, size = 0x100000, scoped, tag = 'input window, operand 4, single buffered']
    #allocation11 [shape = 'u8[7680]{0}', space=vmem, size = 0x2000, scoped, tag = 'input window, operand 5, single buffered']
    #allocation12 [shape = 's32[1]{0}', space=sflag, size = 0x4, scoped, tag = 'scoped memory for tpu_custom_call.1']
    #allocation13 [shape = 'u8[1048576]{0}', space=vmem, size = 0x100000, scoped, tag = 'input window, operand 6']
    #allocation14 [shape = 'u8[2048]{0}', space=vmem, size = 0x800, scoped, tag = 'input window, operand 7']
    #allocation15 [shape = 'u8[4096]{0}', space=vmem, size = 0x1000, scoped, tag = 'output window, operand 0']
    %13 = vsyncpa [#allocation3], 0
    %14 = vsyncpa [#allocation6], 0
    %15 = vsyncpa [#allocation9], 0
    %16 = vsyncpa [#allocation12], 0
    %17 = vsyncpa [#allocation4], 0
    %s18 = scalar_lea.sflag [#allocation4], 1
    %19 = vsyncpa %s18, 0
    loop: start=0, step=1, limit=6
    $region2: #{tpu_custom_call.1} parent=1 // loop_pre_header
      _
    $region3: #{tpu_custom_call.1} parent=1 // loop_header
      %s21 = sphi 0, %s25
      %p22 = scmp.ge.s32.totalorder %s21, 6
      %s29 = sphi 0, %s29
      %s31 = sphi 0, %s29
      %s32 = sphi 0, %s31
      %s46 = sphi 0, %s32
      %s50 = sphi 0, %s50
      %s52 = sphi 0, %s50
      %s53 = sphi 0, %s52
      %s67 = sphi 0, %s53
      %s71 = sphi 0, %s71
      %s73 = sphi 0, %s71
      %s74 = sphi 0, %s73
      %s88 = sphi 0, %s74
      %s92 = sphi 0, %s92
      %s94 = sphi 0, %s92
      %s95 = sphi 0, %s94
      %s109 = sphi 0, %s95
      %s113 = sphi 0, %s113
      %s115 = sphi 0, %s113
      %s116 = sphi 0, %s115
      %s130 = sphi 0, %s116
      %s134 = sphi 0, %s134
      %s136 = sphi 0, %s134
      %s137 = sphi 0, %s136
      %s151 = sphi 0, %s137
      %s157 = sphi 0, %s159
      %s160 = sphi 0, %s157
      %s161 = sphi 0, %s160
      %s177 = sphi 0, %s161
      %s183 = sphi 0, %s185
      %s186 = sphi 0, %s183
      %s187 = sphi 0, %s186
      %s203 = sphi 0, %s187
      %s209 = sphi 0, %s211
      %s212 = sphi 0, %s209
      %s213 = sphi 0, %s212
      %s229 = sphi 0, %s213
    $region4: #{tpu_custom_call.1} parent=1 // loop_header_branch
      %24 = sbr.rel (%p22) target = $region8
    $region5: #{tpu_custom_call.1} parent=1 // loop_body
      %s26 = ssub.s32 %s21, 1
      %s27 = ssub.s32 %s21, 2
      %s28 = sadd.s32 %s21, 1
      %s30 = sadd.s32 %s29, 1
      %p33 = scmp.eq.s32.totalorder %s21, 3
      %p34 = scmp.ne.s32.totalorder %s29, %s31
      %p35 = scmp.eq.s32.totalorder %s21, 0
      %p36 = por %p34, %p35
      %p37 = scmp.ne.s32.totalorder %s29, %s31
      %p38 = scmp.eq.s32.totalorder %s26, 3
      %p39 = por %p37, %p38
      %p40 = scmp.ne.s32.totalorder %s31, %s32
      %p41 = scmp.eq.s32.totalorder %s26, 0
      %p42 = por %p40, %p41
      %p43 = scmp.ne.s32.totalorder %s31, %s32
      %p44 = scmp.eq.s32.totalorder %s27, 3
      %p45 = por %p43, %p44
      %p47 = scmp.ne.s32.totalorder %s32, %s46
      %p48 = scmp.eq.s32.totalorder %s27, 0
      %p49 = por %p47, %p48
      %s51 = sadd.s32 %s50, 1
      %p54 = scmp.eq.s32.totalorder %s21, 3
      %p55 = scmp.ne.s32.totalorder %s50, %s52
      %p56 = scmp.eq.s32.totalorder %s21, 0
      %p57 = por %p55, %p56
      %p58 = scmp.ne.s32.totalorder %s50, %s52
      %p59 = scmp.eq.s32.totalorder %s26, 3
      %p60 = por %p58, %p59
      %p61 = scmp.ne.s32.totalorder %s52, %s53
      %p62 = scmp.eq.s32.totalorder %s26, 0
      %p63 = por %p61, %p62
      %p64 = scmp.ne.s32.totalorder %s52, %s53
      %p65 = scmp.eq.s32.totalorder %s27, 3
      %p66 = por %p64, %p65
      %p68 = scmp.ne.s32.totalorder %s53, %s67
      %p69 = scmp.eq.s32.totalorder %s27, 0
      %p70 = por %p68, %p69
      %s72 = sadd.s32 %s71, 1
      %p75 = scmp.eq.s32.totalorder %s21, 3
      %p76 = scmp.ne.s32.totalorder %s71, %s73
      %p77 = scmp.eq.s32.totalorder %s21, 0
      %p78 = por %p76, %p77
      %p79 = scmp.ne.s32.totalorder %s71, %s73
      %p80 = scmp.eq.s32.totalorder %s26, 3
      %p81 = por %p79, %p80
      %p82 = scmp.ne.s32.totalorder %s73, %s74
      %p83 = scmp.eq.s32.totalorder %s26, 0
      %p84 = por %p82, %p83
      %p85 = scmp.ne.s32.totalorder %s73, %s74
      %p86 = scmp.eq.s32.totalorder %s27, 3
      %p87 = por %p85, %p86
      %p89 = scmp.ne.s32.totalorder %s74, %s88
      %p90 = scmp.eq.s32.totalorder %s27, 0
      %p91 = por %p89, %p90
      %s93 = sadd.s32 %s92, 1
      %p96 = scmp.eq.s32.totalorder %s21, 3
      %p97 = scmp.ne.s32.totalorder %s92, %s94
      %p98 = scmp.eq.s32.totalorder %s21, 0
      %p99 = por %p97, %p98
      %p100 = scmp.ne.s32.totalorder %s92, %s94
      %p101 = scmp.eq.s32.totalorder %s26, 3
      %p102 = por %p100, %p101
      %p103 = scmp.ne.s32.totalorder %s94, %s95
      %p104 = scmp.eq.s32.totalorder %s26, 0
      %p105 = por %p103, %p104
      %p106 = scmp.ne.s32.totalorder %s94, %s95
      %p107 = scmp.eq.s32.totalorder %s27, 3
      %p108 = por %p106, %p107
      %p110 = scmp.ne.s32.totalorder %s95, %s109
      %p111 = scmp.eq.s32.totalorder %s27, 0
      %p112 = por %p110, %p111
      %s114 = sadd.s32 %s113, 1
      %p117 = scmp.eq.s32.totalorder %s21, 3
      %p118 = scmp.ne.s32.totalorder %s113, %s115
      %p119 = scmp.eq.s32.totalorder %s21, 0
      %p120 = por %p118, %p119
      %p121 = scmp.ne.s32.totalorder %s113, %s115
      %p122 = scmp.eq.s32.totalorder %s26, 3
      %p123 = por %p121, %p122
      %p124 = scmp.ne.s32.totalorder %s115, %s116
      %p125 = scmp.eq.s32.totalorder %s26, 0
      %p126 = por %p124, %p125
      %p127 = scmp.ne.s32.totalorder %s115, %s116
      %p128 = scmp.eq.s32.totalorder %s27, 3
      %p129 = por %p127, %p128
      %p131 = scmp.ne.s32.totalorder %s116, %s130
      %p132 = scmp.eq.s32.totalorder %s27, 0
      %p133 = por %p131, %p132
      %s135 = sadd.s32 %s134, 1
      %p138 = scmp.eq.s32.totalorder %s21, 3
      %p139 = scmp.ne.s32.totalorder %s134, %s136
      %p140 = scmp.eq.s32.totalorder %s21, 0
      %p141 = por %p139, %p140
      %p142 = scmp.ne.s32.totalorder %s134, %s136
      %p143 = scmp.eq.s32.totalorder %s26, 3
      %p144 = por %p142, %p143
      %p145 = scmp.ne.s32.totalorder %s136, %s137
      %p146 = scmp.eq.s32.totalorder %s26, 0
      %p147 = por %p145, %p146
      %p148 = scmp.ne.s32.totalorder %s136, %s137
      %p149 = scmp.eq.s32.totalorder %s27, 3
      %p150 = por %p148, %p149
      %p152 = scmp.ne.s32.totalorder %s137, %s151
      %p153 = scmp.eq.s32.totalorder %s27, 0
      %p154 = por %p152, %p153
      %s155 = ssub.s32 %s21, %s28
      %p156 = scmp.eq.s32.totalorder %s155, 0
      %s158 = sadd.s32 %s157, 1
      %s159 = scalar_select %p156, %s157, %s158
      %p162 = pneg %p156
      %p163 = scmp.eq.s32.totalorder %s21, 3
      %p164 = por %p162, %p163
      %p165 = scmp.ne.s32.totalorder %s157, %s160
      %p166 = scmp.eq.s32.totalorder %s21, 0
      %p167 = por %p165, %p166
      %p168 = scmp.ne.s32.totalorder %s157, %s160
      %p169 = scmp.eq.s32.totalorder %s26, 3
      %p170 = por %p168, %p169
      %p171 = scmp.ne.s32.totalorder %s160, %s161
      %p172 = scmp.eq.s32.totalorder %s26, 0
      %p173 = por %p171, %p172
      %p174 = scmp.ne.s32.totalorder %s160, %s161
      %p175 = scmp.eq.s32.totalorder %s27, 3
      %p176 = por %p174, %p175
      %p178 = scmp.ne.s32.totalorder %s161, %s177
      %p179 = scmp.eq.s32.totalorder %s27, 0
      %p180 = por %p178, %p179
      %s181 = ssub.s32 %s21, %s28
      %p182 = scmp.eq.s32.totalorder %s181, 0
      %s184 = sadd.s32 %s183, 1
      %s185 = scalar_select %p182, %s183, %s184
      %p188 = pneg %p182
      %p189 = scmp.eq.s32.totalorder %s21, 3
      %p190 = por %p188, %p189
      %p191 = scmp.ne.s32.totalorder %s183, %s186
      %p192 = scmp.eq.s32.totalorder %s21, 0
      %p193 = por %p191, %p192
      %p194 = scmp.ne.s32.totalorder %s183, %s186
      %p195 = scmp.eq.s32.totalorder %s26, 3
      %p196 = por %p194, %p195
      %p197 = scmp.ne.s32.totalorder %s186, %s187
      %p198 = scmp.eq.s32.totalorder %s26, 0
      %p199 = por %p197, %p198
      %p200 = scmp.ne.s32.totalorder %s186, %s187
      %p201 = scmp.eq.s32.totalorder %s27, 3
      %p202 = por %p200, %p201
      %p204 = scmp.ne.s32.totalorder %s187, %s203
      %p205 = scmp.eq.s32.totalorder %s27, 0
      %p206 = por %p204, %p205
      %s207 = ssub.s32 %s21, %s28
      %p208 = scmp.eq.s32.totalorder %s207, 0
      %s210 = sadd.s32 %s209, 1
      %s211 = scalar_select %p208, %s209, %s210
      %p214 = pneg %p208
      %p215 = scmp.eq.s32.totalorder %s21, 3
      %p216 = por %p214, %p215
      %p217 = scmp.ne.s32.totalorder %s209, %s212
      %p218 = scmp.eq.s32.totalorder %s21, 0
      %p219 = por %p217, %p218
      %p220 = scmp.ne.s32.totalorder %s209, %s212
      %p221 = scmp.eq.s32.totalorder %s26, 3
      %p222 = por %p220, %p221
      %p223 = scmp.ne.s32.totalorder %s212, %s213
      %p224 = scmp.eq.s32.totalorder %s26, 0
      %p225 = por %p223, %p224
      %p226 = scmp.ne.s32.totalorder %s212, %s213
      %p227 = scmp.eq.s32.totalorder %s27, 3
      %p228 = por %p226, %p227
      %p230 = scmp.ne.s32.totalorder %s213, %s229
      %p231 = scmp.eq.s32.totalorder %s27, 0
      %p232 = por %p230, %p231
      %p233 = scmp.le.s32.totalorder 1, %s21
      %p234 = scmp.lt.s32.totalorder %s21, 5
      %p235 = pnand %p233, %p234
      %p236 = pneg %p235
      // Predicated region
      $region9: #{tpu_custom_call.1} parent=5 // pred_check
        _
      $region10: #{tpu_custom_call.1} parent=5 // pred_check_branch
        %238 = sbr.rel (%p235) target = $region12
      $region11: #{tpu_custom_call.1} parent=5 // pred_region
        %s239 = ssub.s32 %s21, 1
        // Predicated region
        $region13: #{tpu_custom_call.1} parent=11 // pred_check
          %p240 = pneg %p42
        $region14: #{tpu_custom_call.1} parent=11 // pred_check_branch
          %242 = sbr.rel (%p240) target = $region16
        $region15: #{tpu_custom_call.1} parent=11 // pred_region
          %s244 = ssub.s32 32, 32
          %245 = vsyncadd [#allocation3], %s244
          %s247 = sshll.u32 [#allocation2], 4
          %s248 = int_to_ptr.vmem [resolvable:$true] %s247
          %250 = dma.hbm_to_vmem [thread:$0]  %s0, 32, %s248, [#allocation3]
        $region16: #{tpu_custom_call.1} parent=11 // pred_fallthru
          _
        // Predicated region
        $region17: #{tpu_custom_call.1} parent=11 // pred_check
          %p251 = pneg %p63
        $region18: #{tpu_custom_call.1} parent=11 // pred_check_branch
          %253 = sbr.rel (%p251) target = $region20
        $region19: #{tpu_custom_call.1} parent=11 // pred_region
          %s255 = ssub.s32 64, 64
          %256 = vsyncadd [#allocation6], %s255
          %s258 = sshll.u32 [#allocation5], 4
          %s259 = int_to_ptr.vmem [resolvable:$true] %s258
          %261 = dma.hbm_to_vmem [thread:$0]  %s1, 64, %s259, [#allocation6]
        $region20: #{tpu_custom_call.1} parent=11 // pred_fallthru
          _
        // Predicated region
        $region21: #{tpu_custom_call.1} parent=11 // pred_check
          %p262 = pneg %p84
        $region22: #{tpu_custom_call.1} parent=11 // pred_check_branch
          %264 = sbr.rel (%p262) target = $region24
        $region23: #{tpu_custom_call.1} parent=11 // pred_region
          %s266 = ssub.s32 2048, 2048
          %267 = vsyncadd [#allocation6], %s266
          %s268 = sshll.u32 [#allocation7], 4
          %s269 = int_to_ptr.vmem [resolvable:$true] %s268
          %274 = dma.hbm_to_vmem [thread:$0]  %s2, 2048, %s269, [#allocation6], 128, 128, 8
        $region24: #{tpu_custom_call.1} parent=11 // pred_fallthru
          _
        // Predicated region
        $region25: #{tpu_custom_call.1} parent=11 // pred_check
          %p275 = pneg %p105
        $region26: #{tpu_custom_call.1} parent=11 // pred_check_branch
          %277 = sbr.rel (%p275) target = $region28
        $region27: #{tpu_custom_call.1} parent=11 // pred_region
          %s279 = ssub.s32 8192, 8192
          %280 = vsyncadd [#allocation9], %s279
          %s281 = sshll.u32 [#allocation8], 4
          %s282 = int_to_ptr.vmem [resolvable:$true] %s281
          %287 = dma.hbm_to_vmem [thread:$0]  %s3, 8192, %s282, [#allocation9], 256, 256, 16
        $region28: #{tpu_custom_call.1} parent=11 // pred_fallthru
          _
        // Predicated region
        $region29: #{tpu_custom_call.1} parent=11 // pred_check
          %p288 = pneg %p126
        $region30: #{tpu_custom_call.1} parent=11 // pred_check_branch
          %290 = sbr.rel (%p288) target = $region32
        $region31: #{tpu_custom_call.1} parent=11 // pred_region
          %s292 = ssub.s32 32768, 32768
          %293 = vsyncadd [#allocation9], %s292
          %s294 = sshll.u32 [#allocation10], 4
          %s295 = int_to_ptr.vmem [resolvable:$true] %s294
          %300 = dma.hbm_to_vmem [thread:$0]  %s4, 32768, %s295, [#allocation9], 512, 512, 32
        $region32: #{tpu_custom_call.1} parent=11 // pred_fallthru
          _
        // Predicated region
        $region33: #{tpu_custom_call.1} parent=11 // pred_check
          %p301 = pneg %p147
        $region34: #{tpu_custom_call.1} parent=11 // pred_check_branch
          %303 = sbr.rel (%p301) target = $region36
        $region35: #{tpu_custom_call.1} parent=11 // pred_region
          %s305 = ssub.s32 240, 240
          %306 = vsyncadd [#allocation12], %s305
          %s308 = sshll.u32 [#allocation11], 4
          %s309 = int_to_ptr.vmem [resolvable:$true] %s308
          %311 = dma.hbm_to_vmem [thread:$0]  %s5, 240, %s309, [#allocation12]
        $region36: #{tpu_custom_call.1} parent=11 // pred_fallthru
          _
      $region12: #{tpu_custom_call.1} parent=5 // pred_fallthru
        _
      %p312 = scmp.lt.s32.totalorder %s21, 4
      // Predicated region
      $region37: #{tpu_custom_call.1} parent=5 // pred_check
        %p313 = pneg %p312
      $region38: #{tpu_custom_call.1} parent=5 // pred_check_branch
        %315 = sbr.rel (%p313) target = $region40
      $region39: #{tpu_custom_call.1} parent=5 // pred_region
        // Predicated region
        $region41: #{tpu_custom_call.1} parent=39 // pred_check
          %p316 = pneg %p167
        $region42: #{tpu_custom_call.1} parent=39 // pred_check_branch
          %318 = sbr.rel (%p316) target = $region44
        $region43: #{tpu_custom_call.1} parent=39 // pred_region
          %s319 = sand.u32 %s21, 1
          %s320 = scalar_lea.sflag [#allocation3], %s319
          %s321 = sand.u32 %s157, 1
          %s322 = smul.addr %s321, 1024
          %s323 = scalar_lea.vmem [#allocation13], %s322
          %s324 = smul.u32 2, %s21
          %s326 = ssub.s32 16384, 16384
          %327 = vsyncadd %s320, %s326
          %s328 = smul.addr %s324, 64
          %s329 = scalar_lea.hbm %s6, %s328
          %s330 = sshll.u32 %s323, 4
          %s331 = int_to_ptr.vmem [resolvable:$true] %s330
          %336 = dma.hbm_to_vmem [thread:$0]  %s329, 16384, %s331, %s320, 512, 128, 8
        $region44: #{tpu_custom_call.1} parent=39 // pred_fallthru
          _
        // Predicated region
        $region45: #{tpu_custom_call.1} parent=39 // pred_check
          %p337 = pneg %p193
        $region46: #{tpu_custom_call.1} parent=39 // pred_check_branch
          %339 = sbr.rel (%p337) target = $region48
        $region47: #{tpu_custom_call.1} parent=39 // pred_region
          %s340 = sand.u32 %s21, 1
          %s341 = scalar_lea.sflag [#allocation3], %s340
          %s342 = sand.u32 %s183, 1
          %s343 = smul.addr %s342, 2
          %s344 = scalar_lea.vmem [#allocation14], %s343
          %s345 = smul.u32 2, %s21
          %s347 = ssub.s32 32, 32
          %348 = vsyncadd %s341, %s347
          %s349 = smul.addr %s345, 16
          %s350 = scalar_lea.hbm %s7, %s349
          %s352 = sshll.u32 %s344, 4
          %s353 = int_to_ptr.vmem [resolvable:$true] %s352
          %355 = dma.hbm_to_vmem [thread:$0]  %s350, 32, %s353, %s341
        $region48: #{tpu_custom_call.1} parent=39 // pred_fallthru
          _
      $region40: #{tpu_custom_call.1} parent=5 // pred_fallthru
        _
      %p356 = scmp.le.s32.totalorder 1, %s21
      %p357 = scmp.lt.s32.totalorder %s21, 5
      %p358 = pnand %p356, %p357
      %p359 = pneg %p358
      // Predicated region
      $region49: #{tpu_custom_call.1} parent=5 // pred_check
        _
      $region50: #{tpu_custom_call.1} parent=5 // pred_check_branch
        %361 = sbr.rel (%p358) target = $region52
      $region51: #{tpu_custom_call.1} parent=5 // pred_region
        %s362 = ssub.s32 %s21, 1
        // Predicated region
        $region53: #{tpu_custom_call.1} parent=51 // pred_check
          %p363 = pneg %p42
        $region54: #{tpu_custom_call.1} parent=51 // pred_check_branch
          %365 = sbr.rel (%p363) target = $region56
        $region55: #{tpu_custom_call.1} parent=51 // pred_region
          %366 = dma.done [#allocation3], 32
        $region56: #{tpu_custom_call.1} parent=51 // pred_fallthru
          _
        // Predicated region
        $region57: #{tpu_custom_call.1} parent=51 // pred_check
          %p367 = pneg %p63
        $region58: #{tpu_custom_call.1} parent=51 // pred_check_branch
          %369 = sbr.rel (%p367) target = $region60
        $region59: #{tpu_custom_call.1} parent=51 // pred_region
          %370 = dma.done [#allocation6], 64
        $region60: #{tpu_custom_call.1} parent=51 // pred_fallthru
          _
        // Predicated region
        $region61: #{tpu_custom_call.1} parent=51 // pred_check
          %p371 = pneg %p84
        $region62: #{tpu_custom_call.1} parent=51 // pred_check_branch
          %373 = sbr.rel (%p371) target = $region64
        $region63: #{tpu_custom_call.1} parent=51 // pred_region
          %374 = dma.done [#allocation6], 2048
        $region64: #{tpu_custom_call.1} parent=51 // pred_fallthru
          _
        // Predicated region
        $region65: #{tpu_custom_call.1} parent=51 // pred_check
          %p375 = pneg %p105
        $region66: #{tpu_custom_call.1} parent=51 // pred_check_branch
          %377 = sbr.rel (%p375) target = $region68
        $region67: #{tpu_custom_call.1} parent=51 // pred_region
          %378 = dma.done [#allocation9], 8192
        $region68: #{tpu_custom_call.1} parent=51 // pred_fallthru
          _
        // Predicated region
        $region69: #{tpu_custom_call.1} parent=51 // pred_check
          %p379 = pneg %p126
        $region70: #{tpu_custom_call.1} parent=51 // pred_check_branch
          %381 = sbr.rel (%p379) target = $region72
        $region71: #{tpu_custom_call.1} parent=51 // pred_region
          %382 = dma.done [#allocation9], 32768
        $region72: #{tpu_custom_call.1} parent=51 // pred_fallthru
          _
        // Predicated region
        $region73: #{tpu_custom_call.1} parent=51 // pred_check
          %p383 = pneg %p147
        $region74: #{tpu_custom_call.1} parent=51 // pred_check_branch
          %385 = sbr.rel (%p383) target = $region76
        $region75: #{tpu_custom_call.1} parent=51 // pred_region
          %386 = dma.done [#allocation12], 240
        $region76: #{tpu_custom_call.1} parent=51 // pred_fallthru
          _
        %s387 = sand.u32 %s26, 1
        %s388 = scalar_lea.sflag [#allocation3], %s387
        %s389 = sand.u32 %s160, 1
        %s390 = smul.addr %s389, 1024
        %s391 = scalar_lea.vmem [#allocation13], %s390
        // Predicated region
        $region77: #{tpu_custom_call.1} parent=51 // pred_check
          %p392 = pneg %p173
        $region78: #{tpu_custom_call.1} parent=51 // pred_check_branch
          %394 = sbr.rel (%p392) target = $region80
        $region79: #{tpu_custom_call.1} parent=51 // pred_region
          %395 = dma.done %s388, 16384
        $region80: #{tpu_custom_call.1} parent=51 // pred_fallthru
          _
        %s396 = sand.u32 %s26, 1
        %s397 = scalar_lea.sflag [#allocation3], %s396
        %s398 = sand.u32 %s186, 1
        %s399 = smul.addr %s398, 2
        %s400 = scalar_lea.vmem [#allocation14], %s399
        // Predicated region
        $region81: #{tpu_custom_call.1} parent=51 // pred_check
          %p401 = pneg %p199
        $region82: #{tpu_custom_call.1} parent=51 // pred_check_branch
          %403 = sbr.rel (%p401) target = $region84
        $region83: #{tpu_custom_call.1} parent=51 // pred_region
          %404 = dma.done %s397, 32
        $region84: #{tpu_custom_call.1} parent=51 // pred_fallthru
          _
        %p405 = pneg %p42
        %p406 = pneg %p39
        %p407 = pneg %p63
        %p408 = pneg %p60
        %p409 = pneg %p84
        %p410 = pneg %p81
        %p411 = pneg %p105
        %p412 = pneg %p102
        %p413 = pneg %p126
        %p414 = pneg %p123
        %p415 = pneg %p147
        %p416 = pneg %p144
        %s417 = sand.u32 %s26, 1
        %s418 = scalar_lea.sflag [#allocation3], %s417
        %s419 = sand.u32 %s160, 1
        %s420 = smul.addr %s419, 1024
        %s421 = scalar_lea.vmem [#allocation13], %s420
        %p422 = pneg %p173
        %p423 = pneg %p170
        %s424 = sand.u32 %s26, 1
        %s425 = scalar_lea.sflag [#allocation3], %s424
        %s426 = sand.u32 %s186, 1
        %s427 = smul.addr %s426, 2
        %s428 = scalar_lea.vmem [#allocation14], %s427
        %p429 = pneg %p199
        %p430 = pneg %p196
        %p431 = pneg %p225
        %p432 = pneg %p222
        %s433 = sand.u32 %s212, 1
        %s434 = scalar_lea.sflag [#allocation4], %s433
        %s435 = sand.u32 %s212, 1
        %s436 = smul.addr %s435, 4
        %s437 = scalar_lea.vmem [#allocation15], %s436
        %s438 = smul.u32 2, %s26
        %s439 = smul.u32 2, %s26
        %s440 = smul.u32 2, %s26
        %v442 = vld [vmem:[#allocation2] sm:$0x3]
        %v443 = vld [vmem:[#allocation11] sm:$0x1]
        %v444 = vpack.c.bf16 %v442, %v442
        %v445 = vld [vmem:[#allocation5] sm:$0xf]
        %v447 = vlaneseq
        %v448 = vshrl.u32 %v447, 7
        %v449 = vsub.s32 0, %v448
        %v450 = vrot.slane %v443, %v449
        %vm452 = vcmask 64512
        %v454 = vsel %vm452, %v444, 0
        %vm456 = vcmask 1043456
        %v458 = vsel %vm456, %v445, 0
        %460 = vmatprep.subr.bf16.mxu0 0
        %461 = vmatpush1.bf16.msra.mxu0 %v458
        %462 = vmatprep.subr.bf16.mxu0 0
        %463 = vmatpush1.bf16.msra.mxu0 0
        %464 = vmatprep.subr.bf16.mxu0 0
        %465 = vmatpush1.bf16.msra.mxu0 0
        %466 = vmatprep.subr.bf16.mxu0 0
        %467 = vmatpush1.bf16.msra.mxu0 0
        %468 = vmatprep.subr.bf16.mxu0 0
        %469 = vmatpush1.bf16.msra.mxu0 0
        %470 = vmatprep.subr.bf16.mxu0 0
        %471 = vmatpush1.bf16.msra.mxu0 0
        %472 = vmatprep.subr.bf16.mxu0 0
        %473 = vmatpush1.bf16.msra.mxu0 0
        %474 = vmatprep.subr.bf16.mxu0 0
        %475 = vmatpush1.bf16.msra.mxu0 0
        %476 = vmatprep.subr.bf16.mxu0 0
        %477 = vmatpush1.bf16.msra.mxu0 0
        %478 = vmatprep.subr.bf16.mxu0 0
        %479 = vmatpush1.bf16.msra.mxu0 0
        %480 = vmatprep.subr.bf16.mxu0 0
        %481 = vmatpush1.bf16.msra.mxu0 0
        %482 = vmatprep.subr.bf16.mxu0 0
        %483 = vmatpush1.bf16.msra.mxu0 0
        %484 = vmatprep.subr.bf16.mxu0 0
        %485 = vmatpush1.bf16.msra.mxu0 0
        %486 = vmatprep.subr.bf16.mxu0 0
        %487 = vmatpush1.bf16.msra.mxu0 0
        %488 = vmatprep.subr.bf16.mxu0 0
        %489 = vmatpush1.bf16.msra.mxu0 0
        %490 = vmatprep.subr.bf16.mxu0 0
        %491 = vmatpush1.bf16.msra.mxu0 0
        %492 = vmatprep.mubr.bf16.mxu0 0
        %493 = vmatmul.mubr.bf16.gmra.mrb[0].mxu0 %v454
        %v494 = vpop.f32.mrb[0].mxu0
        %v495 = vadd.f32 %v450, %v494
        %v496 = vpop.f32.mrb[0].mxu0
        %v497 = vpop.f32.mrb[0].mxu0
        %v498 = vpop.f32.mrb[0].mxu0
        %499 = vdwg.mxu0
        %v500 = vmul.f32 %v495, 0.2
        %v501 = vmax.f32 %v495, %v500
        %v502 = vld [vmem:[#allocation11 + $0x1] sm:$0x3]
        %v503 = vpack.c.bf16 %v501, %v501
        %v504 = vld [vmem:[#allocation7] sm:$0xff]
        %v505 = vld [vmem:[#allocation7 + $0x8] sm:$0xff]
        %v506 = vld [vmem:[#allocation7 + $0x10] sm:$0xff]
        %v507 = vld [vmem:[#allocation7 + $0x18] sm:$0xff]
        %v508 = vld [vmem:[#allocation7 + $0x20] sm:$0xff]
        %v509 = vld [vmem:[#allocation7 + $0x28] sm:$0xff]
        %v510 = vld [vmem:[#allocation7 + $0x30] sm:$0xff]
        %v511 = vld [vmem:[#allocation7 + $0x38] sm:$0xff]
        %v512 = vld [vmem:[#allocation7 + $0x40] sm:$0xff]
        %v513 = vld [vmem:[#allocation7 + $0x48] sm:$0xff]
        %v514 = vld [vmem:[#allocation7 + $0x50] sm:$0xff]
        %v515 = vld [vmem:[#allocation7 + $0x58] sm:$0xff]
        %v516 = vld [vmem:[#allocation7 + $0x60] sm:$0xff]
        %v517 = vld [vmem:[#allocation7 + $0x68] sm:$0xff]
        %v518 = vld [vmem:[#allocation7 + $0x70] sm:$0xff]
        %v519 = vld [vmem:[#allocation7 + $0x78] sm:$0xff]
        %v521 = vlaneseq
        %v522 = vshrl.u32 %v521, 7
        %v523 = vsub.s32 0, %v522
        %v524 = vrot.slane %v502, %v523
        %v525 = vlaneseq
        %v526 = vshrl.u32 %v525, 7
        %v527 = vsub.s32 1, %v526
        %v528 = vrot.slane %v502, %v527
        %v547 = vunpack.c.l.b16 %v504
        %v548 = vunpack.c.h.b16 %v504
        %v549 = vunpack.c.l.b16 %v505
        %v550 = vunpack.c.h.b16 %v505
        %v551 = vunpack.c.l.b16 %v506
        %v552 = vunpack.c.h.b16 %v506
        %v553 = vunpack.c.l.b16 %v507
        %v554 = vunpack.c.h.b16 %v507
        %v555 = vunpack.c.l.b16 %v508
        %v556 = vunpack.c.h.b16 %v508
        %v557 = vunpack.c.l.b16 %v509
        %v558 = vunpack.c.h.b16 %v509
        %v559 = vunpack.c.l.b16 %v510
        %v560 = vunpack.c.h.b16 %v510
        %v561 = vunpack.c.l.b16 %v511
        %v562 = vunpack.c.h.b16 %v511
        %v563 = vunpack.c.l.b16 %v512
        %v564 = vunpack.c.h.b16 %v512
        %v565 = vunpack.c.l.b16 %v513
        %v566 = vunpack.c.h.b16 %v513
        %v567 = vunpack.c.l.b16 %v514
        %v568 = vunpack.c.h.b16 %v514
        %v569 = vunpack.c.l.b16 %v515
        %v570 = vunpack.c.h.b16 %v515
        %v571 = vunpack.c.l.b16 %v516
        %v572 = vunpack.c.h.b16 %v516
        %v573 = vunpack.c.l.b16 %v517
        %v574 = vunpack.c.h.b16 %v517
        %v575 = vunpack.c.l.b16 %v518
        %v576 = vunpack.c.h.b16 %v518
        %v577 = vunpack.c.l.b16 %v519
        %v578 = vunpack.c.h.b16 %v519
        %v579 = vpack.c.b16 %v549, %v547
        %v580 = vpack.c.b16 %v550, %v548
        %v581 = vpack.c.b16 %v553, %v551
        %v582 = vpack.c.b16 %v554, %v552
        %v583 = vpack.c.b16 %v557, %v555
        %v584 = vpack.c.b16 %v558, %v556
        %v585 = vpack.c.b16 %v561, %v559
        %v586 = vpack.c.b16 %v562, %v560
        %v587 = vpack.c.b16 %v565, %v563
        %v588 = vpack.c.b16 %v566, %v564
        %v589 = vpack.c.b16 %v569, %v567
        %v590 = vpack.c.b16 %v570, %v568
        %v591 = vpack.c.b16 %v573, %v571
        %v592 = vpack.c.b16 %v574, %v572
        %v593 = vpack.c.b16 %v577, %v575
        %v594 = vpack.c.b16 %v578, %v576
        %611 = vmatprep.subr.bf16.mxu0 %v580
        %612 = vmatpush1.bf16.msra.mxu0 %v579
        %613 = vmatprep.subr.bf16.mxu0 %v582
        %614 = vmatpush1.bf16.msra.mxu0 %v581
        %615 = vmatprep.subr.bf16.mxu0 %v584
        %616 = vmatpush1.bf16.msra.mxu0 %v583
        %617 = vmatprep.subr.bf16.mxu0 %v586
        %618 = vmatpush1.bf16.msra.mxu0 %v585
        %619 = vmatprep.subr.bf16.mxu0 %v588
        %620 = vmatpush1.bf16.msra.mxu0 %v587
        %621 = vmatprep.subr.bf16.mxu0 %v590
        %622 = vmatpush1.bf16.msra.mxu0 %v589
        %623 = vmatprep.subr.bf16.mxu0 %v592
        %624 = vmatpush1.bf16.msra.mxu0 %v591
        %625 = vmatprep.subr.bf16.mxu0 %v594
        %626 = vmatpush1.bf16.msra.mxu0 %v593
        %627 = vmatprep.subr.bf16.mxu0 0
        %628 = vmatpush1.bf16.msra.mxu0 0
        %629 = vmatprep.subr.bf16.mxu0 0
        %630 = vmatpush1.bf16.msra.mxu0 0
        %631 = vmatprep.subr.bf16.mxu0 0
        %632 = vmatpush1.bf16.msra.mxu0 0
        %633 = vmatprep.subr.bf16.mxu0 0
        %634 = vmatpush1.bf16.msra.mxu0 0
        %635 = vmatprep.subr.bf16.mxu0 0
        %636 = vmatpush1.bf16.msra.mxu0 0
        %637 = vmatprep.subr.bf16.mxu0 0
        %638 = vmatpush1.bf16.msra.mxu0 0
        %639 = vmatprep.subr.bf16.mxu0 0
        %640 = vmatpush1.bf16.msra.mxu0 0
        %641 = vmatprep.subr.bf16.mxu0 0
        %642 = vmatpush1.bf16.msra.mxu0 0
        %643 = vmatprep.mubr.bf16.mxu0 0
        %644 = vmatmul.mubr.bf16.gmra.mrb[0].mxu0 %v503
        %v645 = vpop.f32.mrb[0].mxu0
        %v646 = vadd.f32 %v524, %v645
        %v647 = vpop.f32.mrb[0].mxu0
        %v648 = vadd.f32 %v528, %v647
        %v649 = vpop.f32.mrb[0].mxu0
        %v650 = vpop.f32.mrb[0].mxu0
        %651 = vdwg.mxu0
        %vm652 = vcmask 1041408
        %v653 = vsel %vm652, %v646, 0.0
        %v654 = vrot.slane %v653, 4
        %v655 = vadd.f32 %v653, %v654
        %v656 = vrot.slane %v655, 2
        %v657 = vadd.f32 %v655, %v656
        %v658 = vrot.slane %v657, 1
        %v659 = vadd.f32 %v657, %v658
        %v660 = vsel %vm652, %v648, 0.0
        %v661 = vrot.slane %v660, 4
        %v662 = vadd.f32 %v660, %v661
        %v663 = vrot.slane %v662, 2
        %v664 = vadd.f32 %v662, %v663
        %v665 = vrot.slane %v664, 1
        %v666 = vadd.f32 %v664, %v665
        %v667 = vrcp.pop 2.0
        %v668 = vmul.f32 %v659, %v667
        %v669 = vmul.f32 %v666, %v667
        %v670 = vsub.f32 %v646, %v668
        %v671 = vsub.f32 %v648, %v669
        %v672 = vmul.f32 %v670, %v670
        %v673 = vmul.f32 %v671, %v671
        %v674 = vsel %vm652, %v672, 0.0
        %v675 = vrot.slane %v674, 4
        %v676 = vadd.f32 %v674, %v675
        %v677 = vrot.slane %v676, 2
        %v678 = vadd.f32 %v676, %v677
        %v679 = vrot.slane %v678, 1
        %v680 = vadd.f32 %v678, %v679
        %v681 = vsel %vm652, %v673, 0.0
        %v682 = vrot.slane %v681, 4
        %v683 = vadd.f32 %v681, %v682
        %v684 = vrot.slane %v683, 2
        %v685 = vadd.f32 %v683, %v684
        %v686 = vrot.slane %v685, 1
        %v687 = vadd.f32 %v685, %v686
        %v688 = vmul.f32 %v680, %v667
        %v689 = vmul.f32 %v687, %v667
        %v690 = vadd.f32 %v688, 0.8
        %v691 = vadd.f32 %v689, 0.8
        %v692 = vrsqrt.pop %v690
        %v693 = vrsqrt.pop %v691
        %v694 = vmul.f32 %v670, %v692
        %v695 = vmul.f32 %v671, %v693
        %v696 = vmul.f32 %v694, 0.2
        %v697 = vmul.f32 %v695, 0.2
        %v698 = vmax.f32 %v694, %v696
        %v699 = vmax.f32 %v695, %v697
        %v700 = vld [vmem:[#allocation11 + $0x3] sm:$0xf]
        %v701 = vpack.c.bf16 %v698, %v698
        %v702 = vpack.c.bf16 %v699, %v699
        %v703 = vld [vmem:[#allocation8] sm:$0xff]
        %v704 = vld [vmem:[#allocation8 + $0x8] sm:$0xff]
        %v705 = vld [vmem:[#allocation8 + $0x10] sm:$0xff]
        %v706 = vld [vmem:[#allocation8 + $0x18] sm:$0xff]
        %v707 = vld [vmem:[#allocation8 + $0x20] sm:$0xff]
        %v708 = vld [vmem:[#allocation8 + $0x28] sm:$0xff]
        %v709 = vld [vmem:[#allocation8 + $0x30] sm:$0xff]
        %v710 = vld [vmem:[#allocation8 + $0x38] sm:$0xff]
        %v711 = vld [vmem:[#allocation8 + $0x40] sm:$0xff]
        %v712 = vld [vmem:[#allocation8 + $0x48] sm:$0xff]
        %v713 = vld [vmem:[#allocation8 + $0x50] sm:$0xff]
        %v714 = vld [vmem:[#allocation8 + $0x58] sm:$0xff]
        %v715 = vld [vmem:[#allocation8 + $0x60] sm:$0xff]
        %v716 = vld [vmem:[#allocation8 + $0x68] sm:$0xff]
        %v717 = vld [vmem:[#allocation8 + $0x70] sm:$0xff]
        %v718 = vld [vmem:[#allocation8 + $0x78] sm:$0xff]
        %v719 = vld [vmem:[#allocation8 + $0x80] sm:$0xff]
        %v720 = vld [vmem:[#allocation8 + $0x88] sm:$0xff]
        %v721 = vld [vmem:[#allocation8 + $0x90] sm:$0xff]
        %v722 = vld [vmem:[#allocation8 + $0x98] sm:$0xff]
        %v723 = vld [vmem:[#allocation8 + $0xa0] sm:$0xff]
        %v724 = vld [vmem:[#allocation8 + $0xa8] sm:$0xff]
        %v725 = vld [vmem:[#allocation8 + $0xb0] sm:$0xff]
        %v726 = vld [vmem:[#allocation8 + $0xb8] sm:$0xff]
        %v727 = vld [vmem:[#allocation8 + $0xc0] sm:$0xff]
        %v728 = vld [vmem:[#allocation8 + $0xc8] sm:$0xff]
        %v729 = vld [vmem:[#allocation8 + $0xd0] sm:$0xff]
        %v730 = vld [vmem:[#allocation8 + $0xd8] sm:$0xff]
        %v731 = vld [vmem:[#allocation8 + $0xe0] sm:$0xff]
        %v732 = vld [vmem:[#allocation8 + $0xe8] sm:$0xff]
        %v733 = vld [vmem:[#allocation8 + $0xf0] sm:$0xff]
        %v734 = vld [vmem:[#allocation8 + $0xf8] sm:$0xff]
        %v735 = vld [vmem:[#allocation8 + $0x100] sm:$0xff]
        %v736 = vld [vmem:[#allocation8 + $0x108] sm:$0xff]
        %v737 = vld [vmem:[#allocation8 + $0x110] sm:$0xff]
        %v738 = vld [vmem:[#allocation8 + $0x118] sm:$0xff]
        %v739 = vld [vmem:[#allocation8 + $0x120] sm:$0xff]
        %v740 = vld [vmem:[#allocation8 + $0x128] sm:$0xff]
        %v741 = vld [vmem:[#allocation8 + $0x130] sm:$0xff]
        %v742 = vld [vmem:[#allocation8 + $0x138] sm:$0xff]
        %v743 = vld [vmem:[#allocation8 + $0x140] sm:$0xff]
        %v744 = vld [vmem:[#allocation8 + $0x148] sm:$0xff]
        %v745 = vld [vmem:[#allocation8 + $0x150] sm:$0xff]
        %v746 = vld [vmem:[#allocation8 + $0x158] sm:$0xff]
        %v747 = vld [vmem:[#allocation8 + $0x160] sm:$0xff]
        %v748 = vld [vmem:[#allocation8 + $0x168] sm:$0xff]
        %v749 = vld [vmem:[#allocation8 + $0x170] sm:$0xff]
        %v750 = vld [vmem:[#allocation8 + $0x178] sm:$0xff]
        %v751 = vld [vmem:[#allocation8 + $0x180] sm:$0xff]
        %v752 = vld [vmem:[#allocation8 + $0x188] sm:$0xff]
        %v753 = vld [vmem:[#allocation8 + $0x190] sm:$0xff]
        %v754 = vld [vmem:[#allocation8 + $0x198] sm:$0xff]
        %v755 = vld [vmem:[#allocation8 + $0x1a0] sm:$0xff]
        %v756 = vld [vmem:[#allocation8 + $0x1a8] sm:$0xff]
        %v757 = vld [vmem:[#allocation8 + $0x1b0] sm:$0xff]
        %v758 = vld [vmem:[#allocation8 + $0x1b8] sm:$0xff]
        %v759 = vld [vmem:[#allocation8 + $0x1c0] sm:$0xff]
        %v760 = vld [vmem:[#allocation8 + $0x1c8] sm:$0xff]
        %v761 = vld [vmem:[#allocation8 + $0x1d0] sm:$0xff]
        %v762 = vld [vmem:[#allocation8 + $0x1d8] sm:$0xff]
        %v763 = vld [vmem:[#allocation8 + $0x1e0] sm:$0xff]
        %v764 = vld [vmem:[#allocation8 + $0x1e8] sm:$0xff]
        %v765 = vld [vmem:[#allocation8 + $0x1f0] sm:$0xff]
        %v766 = vld [vmem:[#allocation8 + $0x1f8] sm:$0xff]
        %v768 = vlaneseq
        %v769 = vshrl.u32 %v768, 7
        %v770 = vsub.s32 0, %v769
        %v771 = vrot.slane %v700, %v770
        %v772 = vlaneseq
        %v773 = vshrl.u32 %v772, 7
        %v774 = vsub.s32 1, %v773
        %v775 = vrot.slane %v700, %v774
        %v776 = vlaneseq
        %v777 = vshrl.u32 %v776, 7
        %v778 = vsub.s32 2, %v777
        %v779 = vrot.slane %v700, %v778
        %v780 = vlaneseq
        %v781 = vshrl.u32 %v780, 7
        %v782 = vsub.s32 3, %v781
        %v783 = vrot.slane %v700, %v782
        %v852 = vunpack.c.l.b16 %v703
        %v853 = vunpack.c.h.b16 %v703
        %v854 = vunpack.c.l.b16 %v704
        %v855 = vunpack.c.h.b16 %v704
        %v856 = vunpack.c.l.b16 %v705
        %v857 = vunpack.c.h.b16 %v705
        %v858 = vunpack.c.l.b16 %v706
        %v859 = vunpack.c.h.b16 %v706
        %v860 = vunpack.c.l.b16 %v707
        %v861 = vunpack.c.h.b16 %v707
        %v862 = vunpack.c.l.b16 %v708
        %v863 = vunpack.c.h.b16 %v708
        %v864 = vunpack.c.l.b16 %v709
        %v865 = vunpack.c.h.b16 %v709
        %v866 = vunpack.c.l.b16 %v710
        %v867 = vunpack.c.h.b16 %v710
        %v868 = vunpack.c.l.b16 %v711
        %v869 = vunpack.c.h.b16 %v711
        %v870 = vunpack.c.l.b16 %v712
        %v871 = vunpack.c.h.b16 %v712
        %v872 = vunpack.c.l.b16 %v713
        %v873 = vunpack.c.h.b16 %v713
        %v874 = vunpack.c.l.b16 %v714
        %v875 = vunpack.c.h.b16 %v714
        %v876 = vunpack.c.l.b16 %v715
        %v877 = vunpack.c.h.b16 %v715
        %v878 = vunpack.c.l.b16 %v716
        %v879 = vunpack.c.h.b16 %v716
        %v880 = vunpack.c.l.b16 %v717
        %v881 = vunpack.c.h.b16 %v717
        %v882 = vunpack.c.l.b16 %v718
        %v883 = vunpack.c.h.b16 %v718
        %v884 = vunpack.c.l.b16 %v719
        %v885 = vunpack.c.h.b16 %v719
        %v886 = vunpack.c.l.b16 %v720
        %v887 = vunpack.c.h.b16 %v720
        %v888 = vunpack.c.l.b16 %v721
        %v889 = vunpack.c.h.b16 %v721
        %v890 = vunpack.c.l.b16 %v722
        %v891 = vunpack.c.h.b16 %v722
        %v892 = vunpack.c.l.b16 %v723
        %v893 = vunpack.c.h.b16 %v723
        %v894 = vunpack.c.l.b16 %v724
        %v895 = vunpack.c.h.b16 %v724
        %v896 = vunpack.c.l.b16 %v725
        %v897 = vunpack.c.h.b16 %v725
        %v898 = vunpack.c.l.b16 %v726
        %v899 = vunpack.c.h.b16 %v726
        %v900 = vunpack.c.l.b16 %v727
        %v901 = vunpack.c.h.b16 %v727
        %v902 = vunpack.c.l.b16 %v728
        %v903 = vunpack.c.h.b16 %v728
        %v904 = vunpack.c.l.b16 %v729
        %v905 = vunpack.c.h.b16 %v729
        %v906 = vunpack.c.l.b16 %v730
        %v907 = vunpack.c.h.b16 %v730
        %v908 = vunpack.c.l.b16 %v731
        %v909 = vunpack.c.h.b16 %v731
        %v910 = vunpack.c.l.b16 %v732
        %v911 = vunpack.c.h.b16 %v732
        %v912 = vunpack.c.l.b16 %v733
        %v913 = vunpack.c.h.b16 %v733
        %v914 = vunpack.c.l.b16 %v734
        %v915 = vunpack.c.h.b16 %v734
        %v916 = vunpack.c.l.b16 %v735
        %v917 = vunpack.c.h.b16 %v735
        %v918 = vunpack.c.l.b16 %v736
        %v919 = vunpack.c.h.b16 %v736
        %v920 = vunpack.c.l.b16 %v737
        %v921 = vunpack.c.h.b16 %v737
        %v922 = vunpack.c.l.b16 %v738
        %v923 = vunpack.c.h.b16 %v738
        %v924 = vunpack.c.l.b16 %v739
        %v925 = vunpack.c.h.b16 %v739
        %v926 = vunpack.c.l.b16 %v740
        %v927 = vunpack.c.h.b16 %v740
        %v928 = vunpack.c.l.b16 %v741
        %v929 = vunpack.c.h.b16 %v741
        %v930 = vunpack.c.l.b16 %v742
        %v931 = vunpack.c.h.b16 %v742
        %v932 = vunpack.c.l.b16 %v743
        %v933 = vunpack.c.h.b16 %v743
        %v934 = vunpack.c.l.b16 %v744
        %v935 = vunpack.c.h.b16 %v744
        %v936 = vunpack.c.l.b16 %v745
        %v937 = vunpack.c.h.b16 %v745
        %v938 = vunpack.c.l.b16 %v746
        %v939 = vunpack.c.h.b16 %v746
        %v940 = vunpack.c.l.b16 %v747
        %v941 = vunpack.c.h.b16 %v747
        %v942 = vunpack.c.l.b16 %v748
        %v943 = vunpack.c.h.b16 %v748
        %v944 = vunpack.c.l.b16 %v749
        %v945 = vunpack.c.h.b16 %v749
        %v946 = vunpack.c.l.b16 %v750
        %v947 = vunpack.c.h.b16 %v750
        %v948 = vunpack.c.l.b16 %v751
        %v949 = vunpack.c.h.b16 %v751
        %v950 = vunpack.c.l.b16 %v752
        %v951 = vunpack.c.h.b16 %v752
        %v952 = vunpack.c.l.b16 %v753
        %v953 = vunpack.c.h.b16 %v753
        %v954 = vunpack.c.l.b16 %v754
        %v955 = vunpack.c.h.b16 %v754
        %v956 = vunpack.c.l.b16 %v755
        %v957 = vunpack.c.h.b16 %v755
        %v958 = vunpack.c.l.b16 %v756
        %v959 = vunpack.c.h.b16 %v756
        %v960 = vunpack.c.l.b16 %v757
        %v961 = vunpack.c.h.b16 %v757
        %v962 = vunpack.c.l.b16 %v758
        %v963 = vunpack.c.h.b16 %v758
        %v964 = vunpack.c.l.b16 %v759
        %v965 = vunpack.c.h.b16 %v759
        %v966 = vunpack.c.l.b16 %v760
        %v967 = vunpack.c.h.b16 %v760
        %v968 = vunpack.c.l.b16 %v761
        %v969 = vunpack.c.h.b16 %v761
        %v970 = vunpack.c.l.b16 %v762
        %v971 = vunpack.c.h.b16 %v762
        %v972 = vunpack.c.l.b16 %v763
        %v973 = vunpack.c.h.b16 %v763
        %v974 = vunpack.c.l.b16 %v764
        %v975 = vunpack.c.h.b16 %v764
        %v976 = vunpack.c.l.b16 %v765
        %v977 = vunpack.c.h.b16 %v765
        %v978 = vunpack.c.l.b16 %v766
        %v979 = vunpack.c.h.b16 %v766
        %v980 = vpack.c.b16 %v856, %v852
        %v981 = vpack.c.b16 %v857, %v853
        %v982 = vpack.c.b16 %v858, %v854
        %v983 = vpack.c.b16 %v859, %v855
        %v984 = vpack.c.b16 %v864, %v860
        %v985 = vpack.c.b16 %v865, %v861
        %v986 = vpack.c.b16 %v866, %v862
        %v987 = vpack.c.b16 %v867, %v863
        %v988 = vpack.c.b16 %v872, %v868
        %v989 = vpack.c.b16 %v873, %v869
        %v990 = vpack.c.b16 %v874, %v870
        %v991 = vpack.c.b16 %v875, %v871
        %v992 = vpack.c.b16 %v880, %v876
        %v993 = vpack.c.b16 %v881, %v877
        %v994 = vpack.c.b16 %v882, %v878
        %v995 = vpack.c.b16 %v883, %v879
        %v996 = vpack.c.b16 %v888, %v884
        %v997 = vpack.c.b16 %v889, %v885
        %v998 = vpack.c.b16 %v890, %v886
        %v999 = vpack.c.b16 %v891, %v887
        %v1000 = vpack.c.b16 %v896, %v892
        %v1001 = vpack.c.b16 %v897, %v893
        %v1002 = vpack.c.b16 %v898, %v894
        %v1003 = vpack.c.b16 %v899, %v895
        %v1004 = vpack.c.b16 %v904, %v900
        %v1005 = vpack.c.b16 %v905, %v901
        %v1006 = vpack.c.b16 %v906, %v902
        %v1007 = vpack.c.b16 %v907, %v903
        %v1008 = vpack.c.b16 %v912, %v908
        %v1009 = vpack.c.b16 %v913, %v909
        %v1010 = vpack.c.b16 %v914, %v910
        %v1011 = vpack.c.b16 %v915, %v911
        %v1012 = vpack.c.b16 %v920, %v916
        %v1013 = vpack.c.b16 %v921, %v917
        %v1014 = vpack.c.b16 %v922, %v918
        %v1015 = vpack.c.b16 %v923, %v919
        %v1016 = vpack.c.b16 %v928, %v924
        %v1017 = vpack.c.b16 %v929, %v925
        %v1018 = vpack.c.b16 %v930, %v926
        %v1019 = vpack.c.b16 %v931, %v927
        %v1020 = vpack.c.b16 %v936, %v932
        %v1021 = vpack.c.b16 %v937, %v933
        %v1022 = vpack.c.b16 %v938, %v934
        %v1023 = vpack.c.b16 %v939, %v935
        %v1024 = vpack.c.b16 %v944, %v940
        %v1025 = vpack.c.b16 %v945, %v941
        %v1026 = vpack.c.b16 %v946, %v942
        %v1027 = vpack.c.b16 %v947, %v943
        %v1028 = vpack.c.b16 %v952, %v948
        %v1029 = vpack.c.b16 %v953, %v949
        %v1030 = vpack.c.b16 %v954, %v950
        %v1031 = vpack.c.b16 %v955, %v951
        %v1032 = vpack.c.b16 %v960, %v956
        %v1033 = vpack.c.b16 %v961, %v957
        %v1034 = vpack.c.b16 %v962, %v958
        %v1035 = vpack.c.b16 %v963, %v959
        %v1036 = vpack.c.b16 %v968, %v964
        %v1037 = vpack.c.b16 %v969, %v965
        %v1038 = vpack.c.b16 %v970, %v966
        %v1039 = vpack.c.b16 %v971, %v967
        %v1040 = vpack.c.b16 %v976, %v972
        %v1041 = vpack.c.b16 %v977, %v973
        %v1042 = vpack.c.b16 %v978, %v974
        %v1043 = vpack.c.b16 %v979, %v975
        %1108 = vmatprep.subr.bf16.mxu0 %v981
        %1109 = vmatpush1.bf16.msra.mxu0 %v980
        %1110 = vmatprep.subr.bf16.mxu0 %v985
        %1111 = vmatpush1.bf16.msra.mxu0 %v984
        %1112 = vmatprep.subr.bf16.mxu0 %v989
        %1113 = vmatpush1.bf16.msra.mxu0 %v988
        %1114 = vmatprep.subr.bf16.mxu0 %v993
        %1115 = vmatpush1.bf16.msra.mxu0 %v992
        %1116 = vmatprep.subr.bf16.mxu0 %v997
        %1117 = vmatpush1.bf16.msra.mxu0 %v996
        %1118 = vmatprep.subr.bf16.mxu0 %v1001
        %1119 = vmatpush1.bf16.msra.mxu0 %v1000
        %1120 = vmatprep.subr.bf16.mxu0 %v1005
        %1121 = vmatpush1.bf16.msra.mxu0 %v1004
        %1122 = vmatprep.subr.bf16.mxu0 %v1009
        %1123 = vmatpush1.bf16.msra.mxu0 %v1008
        %1124 = vmatprep.subr.bf16.mxu0 %v1013
        %1125 = vmatpush1.bf16.msra.mxu0 %v1012
        %1126 = vmatprep.subr.bf16.mxu0 %v1017
        %1127 = vmatpush1.bf16.msra.mxu0 %v1016
        %1128 = vmatprep.subr.bf16.mxu0 %v1021
        %1129 = vmatpush1.bf16.msra.mxu0 %v1020
        %1130 = vmatprep.subr.bf16.mxu0 %v1025
        %1131 = vmatpush1.bf16.msra.mxu0 %v1024
        %1132 = vmatprep.subr.bf16.mxu0 %v1029
        %1133 = vmatpush1.bf16.msra.mxu0 %v1028
        %1134 = vmatprep.subr.bf16.mxu0 %v1033
        %1135 = vmatpush1.bf16.msra.mxu0 %v1032
        %1136 = vmatprep.subr.bf16.mxu0 %v1037
        %1137 = vmatpush1.bf16.msra.mxu0 %v1036
        %1138 = vmatprep.subr.bf16.mxu0 %v1041
        %1139 = vmatpush1.bf16.msra.mxu0 %v1040
        %1140 = vmatprep.mubr.bf16.mxu0 %v702
        %1141 = vmatmul.mubr.bf16.gmra.mrb[0].mxu0 %v701
        %v1142 = vpop.f32.mrb[0].mxu0
        %v1143 = vadd.f32 %v771, %v1142
        %v1144 = vpop.f32.mrb[0].mxu0
        %v1145 = vadd.f32 %v775, %v1144
        %v1146 = vpop.f32.mrb[0].mxu0
        %v1147 = vpop.f32.mrb[0].mxu0
        %1148 = vdwg.mxu0
        %1149 = vmatprep.subr.bf16.mxu0 %v983
        %1150 = vmatpush1.bf16.msra.mxu0 %v982
        %1151 = vmatprep.subr.bf16.mxu0 %v987
        %1152 = vmatpush1.bf16.msra.mxu0 %v986
        %1153 = vmatprep.subr.bf16.mxu0 %v991
        %1154 = vmatpush1.bf16.msra.mxu0 %v990
        %1155 = vmatprep.subr.bf16.mxu0 %v995
        %1156 = vmatpush1.bf16.msra.mxu0 %v994
        %1157 = vmatprep.subr.bf16.mxu0 %v999
        %1158 = vmatpush1.bf16.msra.mxu0 %v998
        %1159 = vmatprep.subr.bf16.mxu0 %v1003
        %1160 = vmatpush1.bf16.msra.mxu0 %v1002
        %1161 = vmatprep.subr.bf16.mxu0 %v1007
        %1162 = vmatpush1.bf16.msra.mxu0 %v1006
        %1163 = vmatprep.subr.bf16.mxu0 %v1011
        %1164 = vmatpush1.bf16.msra.mxu0 %v1010
        %1165 = vmatprep.subr.bf16.mxu0 %v1015
        %1166 = vmatpush1.bf16.msra.mxu0 %v1014
        %1167 = vmatprep.subr.bf16.mxu0 %v1019
        %1168 = vmatpush1.bf16.msra.mxu0 %v1018
        %1169 = vmatprep.subr.bf16.mxu0 %v1023
        %1170 = vmatpush1.bf16.msra.mxu0 %v1022
        %1171 = vmatprep.subr.bf16.mxu0 %v1027
        %1172 = vmatpush1.bf16.msra.mxu0 %v1026
        %1173 = vmatprep.subr.bf16.mxu0 %v1031
        %1174 = vmatpush1.bf16.msra.mxu0 %v1030
        %1175 = vmatprep.subr.bf16.mxu0 %v1035
        %1176 = vmatpush1.bf16.msra.mxu0 %v1034
        %1177 = vmatprep.subr.bf16.mxu0 %v1039
        %1178 = vmatpush1.bf16.msra.mxu0 %v1038
        %1179 = vmatprep.subr.bf16.mxu0 %v1043
        %1180 = vmatpush1.bf16.msra.mxu0 %v1042
        %1181 = vmatprep.mubr.bf16.mxu0 %v702
        %1182 = vmatmul.mubr.bf16.gmra.mrb[0].mxu0 %v701
        %v1183 = vpop.f32.mrb[0].mxu0
        %v1184 = vadd.f32 %v779, %v1183
        %v1185 = vpop.f32.mrb[0].mxu0
        %v1186 = vadd.f32 %v783, %v1185
        %v1187 = vpop.f32.mrb[0].mxu0
        %v1188 = vpop.f32.mrb[0].mxu0
        %1189 = vdwg.mxu0
        %v1190 = vsel %vm652, %v1143, 0.0
        %v1191 = vrot.slane %v1190, 4
        %v1192 = vadd.f32 %v1190, %v1191
        %v1193 = vrot.slane %v1192, 2
        %v1194 = vadd.f32 %v1192, %v1193
        %v1195 = vrot.slane %v1194, 1
        %v1196 = vadd.f32 %v1194, %v1195
        %v1197 = vsel %vm652, %v1145, 0.0
        %v1198 = vrot.slane %v1197, 4
        %v1199 = vadd.f32 %v1197, %v1198
        %v1200 = vrot.slane %v1199, 2
        %v1201 = vadd.f32 %v1199, %v1200
        %v1202 = vrot.slane %v1201, 1
        %v1203 = vadd.f32 %v1201, %v1202
        %v1204 = vsel %vm652, %v1184, 0.0
        %v1205 = vrot.slane %v1204, 4
        %v1206 = vadd.f32 %v1204, %v1205
        %v1207 = vrot.slane %v1206, 2
        %v1208 = vadd.f32 %v1206, %v1207
        %v1209 = vrot.slane %v1208, 1
        %v1210 = vadd.f32 %v1208, %v1209
        %v1211 = vsel %vm652, %v1186, 0.0
        %v1212 = vrot.slane %v1211, 4
        %v1213 = vadd.f32 %v1211, %v1212
        %v1214 = vrot.slane %v1213, 2
        %v1215 = vadd.f32 %v1213, %v1214
        %v1216 = vrot.slane %v1215, 1
        %v1217 = vadd.f32 %v1215, %v1216
        %v1218 = vmul.f32 %v1196, %v667
        %v1219 = vmul.f32 %v1203, %v667
        %v1220 = vmul.f32 %v1210, %v667
        %v1221 = vmul.f32 %v1217, %v667
        %v1222 = vsub.f32 %v1143, %v1218
        %v1223 = vsub.f32 %v1145, %v1219
        %v1224 = vsub.f32 %v1184, %v1220
        %v1225 = vsub.f32 %v1186, %v1221
        %v1226 = vmul.f32 %v1222, %v1222
        %v1227 = vmul.f32 %v1223, %v1223
        %v1228 = vmul.f32 %v1224, %v1224
        %v1229 = vmul.f32 %v1225, %v1225
        %v1230 = vsel %vm652, %v1226, 0.0
        %v1231 = vrot.slane %v1230, 4
        %v1232 = vadd.f32 %v1230, %v1231
        %v1233 = vrot.slane %v1232, 2
        %v1234 = vadd.f32 %v1232, %v1233
        %v1235 = vrot.slane %v1234, 1
        %v1236 = vadd.f32 %v1234, %v1235
        %v1237 = vsel %vm652, %v1227, 0.0
        %v1238 = vrot.slane %v1237, 4
        %v1239 = vadd.f32 %v1237, %v1238
        %v1240 = vrot.slane %v1239, 2
        %v1241 = vadd.f32 %v1239, %v1240
        %v1242 = vrot.slane %v1241, 1
        %v1243 = vadd.f32 %v1241, %v1242
        %v1244 = vsel %vm652, %v1228, 0.0
        %v1245 = vrot.slane %v1244, 4
        %v1246 = vadd.f32 %v1244, %v1245
        %v1247 = vrot.slane %v1246, 2
        %v1248 = vadd.f32 %v1246, %v1247
        %v1249 = vrot.slane %v1248, 1
        %v1250 = vadd.f32 %v1248, %v1249
        %v1251 = vsel %vm652, %v1229, 0.0
        %v1252 = vrot.slane %v1251, 4
        %v1253 = vadd.f32 %v1251, %v1252
        %v1254 = vrot.slane %v1253, 2
        %v1255 = vadd.f32 %v1253, %v1254
        %v1256 = vrot.slane %v1255, 1
        %v1257 = vadd.f32 %v1255, %v1256
        %v1258 = vmul.f32 %v1236, %v667
        %v1259 = vmul.f32 %v1243, %v667
        %v1260 = vmul.f32 %v1250, %v667
        %v1261 = vmul.f32 %v1257, %v667
        %v1262 = vadd.f32 %v1258, 0.8
        %v1263 = vadd.f32 %v1259, 0.8
        %v1264 = vadd.f32 %v1260, 0.8
        %v1265 = vadd.f32 %v1261, 0.8
        %v1266 = vrsqrt.pop %v1262
        %v1267 = vrsqrt.pop %v1263
        %v1268 = vrsqrt.pop %v1264
        %v1269 = vrsqrt.pop %v1265
        %v1270 = vmul.f32 %v1222, %v1266
        %v1271 = vmul.f32 %v1223, %v1267
        %v1272 = vmul.f32 %v1224, %v1268
        %v1273 = vmul.f32 %v1225, %v1269
        %v1274 = vmul.f32 %v1270, 0.2
        %v1275 = vmul.f32 %v1271, 0.2
        %v1276 = vmul.f32 %v1272, 0.2
        %v1277 = vmul.f32 %v1273, 0.2
        %v1278 = vmax.f32 %v1270, %v1274
        %v1279 = vmax.f32 %v1271, %v1275
        %v1280 = vmax.f32 %v1272, %v1276
        %v1281 = vmax.f32 %v1273, %v1277
        %v1282 = vld [vmem:[#allocation11 + $0x7] sm:$0xff]
        %v1283 = vpack.c.bf16 %v1278, %v1278
        %v1284 = vpack.c.bf16 %v1279, %v1279
        %v1285 = vpack.c.bf16 %v1280, %v1280
        %v1286 = vpack.c.bf16 %v1281, %v1281
        %v1287 = vld [vmem:[#allocation10] sm:$0xff]
        %v1288 = vld [vmem:[#allocation10 + $0x8] sm:$0xff]
        %v1289 = vld [vmem:[#allocation10 + $0x10] sm:$0xff]
        %v1290 = vld [vmem:[#allocation10 + $0x18] sm:$0xff]
        %v1291 = vld [vmem:[#allocation10 + $0x20] sm:$0xff]
        %v1292 = vld [vmem:[#allocation10 + $0x28] sm:$0xff]
        %v1293 = vld [vmem:[#allocation10 + $0x30] sm:$0xff]
        %v1294 = vld [vmem:[#allocation10 + $0x38] sm:$0xff]
        %v1295 = vld [vmem:[#allocation10 + $0x40] sm:$0xff]
        %v1296 = vld [vmem:[#allocation10 + $0x48] sm:$0xff]
        %v1297 = vld [vmem:[#allocation10 + $0x50] sm:$0xff]
        %v1298 = vld [vmem:[#allocation10 + $0x58] sm:$0xff]
        %v1299 = vld [vmem:[#allocation10 + $0x60] sm:$0xff]
        %v1300 = vld [vmem:[#allocation10 + $0x68] sm:$0xff]
        %v1301 = vld [vmem:[#allocation10 + $0x70] sm:$0xff]
        %v1302 = vld [vmem:[#allocation10 + $0x78] sm:$0xff]
        %v1303 = vld [vmem:[#allocation10 + $0x80] sm:$0xff]
        %v1304 = vld [vmem:[#allocation10 + $0x88] sm:$0xff]
        %v1305 = vld [vmem:[#allocation10 + $0x90] sm:$0xff]
        %v1306 = vld [vmem:[#allocation10 + $0x98] sm:$0xff]
        %v1307 = vld [vmem:[#allocation10 + $0xa0] sm:$0xff]
        %v1308 = vld [vmem:[#allocation10 + $0xa8] sm:$0xff]
        %v1309 = vld [vmem:[#allocation10 + $0xb0] sm:$0xff]
        %v1310 = vld [vmem:[#allocation10 + $0xb8] sm:$0xff]
        %v1311 = vld [vmem:[#allocation10 + $0xc0] sm:$0xff]
        %v1312 = vld [vmem:[#allocation10 + $0xc8] sm:$0xff]
        %v1313 = vld [vmem:[#allocation10 + $0xd0] sm:$0xff]
        %v1314 = vld [vmem:[#allocation10 + $0xd8] sm:$0xff]
        %v1315 = vld [vmem:[#allocation10 + $0xe0] sm:$0xff]
        %v1316 = vld [vmem:[#allocation10 + $0xe8] sm:$0xff]
        %v1317 = vld [vmem:[#allocation10 + $0xf0] sm:$0xff]
        %v1318 = vld [vmem:[#allocation10 + $0xf8] sm:$0xff]
        %v1319 = vld [vmem:[#allocation10 + $0x100] sm:$0xff]
        %v1320 = vld [vmem:[#allocation10 + $0x108] sm:$0xff]
        %v1321 = vld [vmem:[#allocation10 + $0x110] sm:$0xff]
        %v1322 = vld [vmem:[#allocation10 + $0x118] sm:$0xff]
        %v1323 = vld [vmem:[#allocation10 + $0x120] sm:$0xff]
        %v1324 = vld [vmem:[#allocation10 + $0x128] sm:$0xff]
        %v1325 = vld [vmem:[#allocation10 + $0x130] sm:$0xff]
        %v1326 = vld [vmem:[#allocation10 + $0x138] sm:$0xff]
        %v1327 = vld [vmem:[#allocation10 + $0x140] sm:$0xff]
        %v1328 = vld [vmem:[#allocation10 + $0x148] sm:$0xff]
        %v1329 = vld [vmem:[#allocation10 + $0x150] sm:$0xff]
        %v1330 = vld [vmem:[#allocation10 + $0x158] sm:$0xff]
        %v1331 = vld [vmem:[#allocation10 + $0x160] sm:$0xff]
        %v1332 = vld [vmem:[#allocation10 + $0x168] sm:$0xff]
        %v1333 = vld [vmem:[#allocation10 + $0x170] sm:$0xff]
        %v1334 = vld [vmem:[#allocation10 + $0x178] sm:$0xff]
        %v1335 = vld [vmem:[#allocation10 + $0x180] sm:$0xff]
        %v1336 = vld [vmem:[#allocation10 + $0x188] sm:$0xff]
        %v1337 = vld [vmem:[#allocation10 + $0x190] sm:$0xff]
        %v1338 = vld [vmem:[#allocation10 + $0x198] sm:$0xff]
        %v1339 = vld [vmem:[#allocation10 + $0x1a0] sm:$0xff]
        %v1340 = vld [vmem:[#allocation10 + $0x1a8] sm:$0xff]
        %v1341 = vld [vmem:[#allocation10 + $0x1b0] sm:$0xff]
        %v1342 = vld [vmem:[#allocation10 + $0x1b8] sm:$0xff]
        %v1343 = vld [vmem:[#allocation10 + $0x1c0] sm:$0xff]
        %v1344 = vld [vmem:[#allocation10 + $0x1c8] sm:$0xff]
        %v1345 = vld [vmem:[#allocation10 + $0x1d0] sm:$0xff]
        %v1346 = vld [vmem:[#allocation10 + $0x1d8] sm:$0xff]
        %v1347 = vld [vmem:[#allocation10 + $0x1e0] sm:$0xff]
        %v1348 = vld [vmem:[#allocation10 + $0x1e8] sm:$0xff]
        %v1349 = vld [vmem:[#allocation10 + $0x1f0] sm:$0xff]
        %v1350 = vld [vmem:[#allocation10 + $0x1f8] sm:$0xff]
        %v1351 = vld [vmem:[#allocation10 + $0x200] sm:$0xff]
        %v1352 = vld [vmem:[#allocation10 + $0x208] sm:$0xff]
        %v1353 = vld [vmem:[#allocation10 + $0x210] sm:$0xff]
        %v1354 = vld [vmem:[#allocation10 + $0x218] sm:$0xff]
        %v1355 = vld [vmem:[#allocation10 + $0x220] sm:$0xff]
        %v1356 = vld [vmem:[#allocation10 + $0x228] sm:$0xff]
        %v1357 = vld [vmem:[#allocation10 + $0x230] sm:$0xff]
        %v1358 = vld [vmem:[#allocation10 + $0x238] sm:$0xff]
        %v1359 = vld [vmem:[#allocation10 + $0x240] sm:$0xff]
        %v1360 = vld [vmem:[#allocation10 + $0x248] sm:$0xff]
        %v1361 = vld [vmem:[#allocation10 + $0x250] sm:$0xff]
        %v1362 = vld [vmem:[#allocation10 + $0x258] sm:$0xff]
        %v1363 = vld [vmem:[#allocation10 + $0x260] sm:$0xff]
        %v1364 = vld [vmem:[#allocation10 + $0x268] sm:$0xff]
        %v1365 = vld [vmem:[#allocation10 + $0x270] sm:$0xff]
        %v1366 = vld [vmem:[#allocation10 + $0x278] sm:$0xff]
        %v1367 = vld [vmem:[#allocation10 + $0x280] sm:$0xff]
        %v1368 = vld [vmem:[#allocation10 + $0x288] sm:$0xff]
        %v1369 = vld [vmem:[#allocation10 + $0x290] sm:$0xff]
        %v1370 = vld [vmem:[#allocation10 + $0x298] sm:$0xff]
        %v1371 = vld [vmem:[#allocation10 + $0x2a0] sm:$0xff]
        %v1372 = vld [vmem:[#allocation10 + $0x2a8] sm:$0xff]
        %v1373 = vld [vmem:[#allocation10 + $0x2b0] sm:$0xff]
        %v1374 = vld [vmem:[#allocation10 + $0x2b8] sm:$0xff]
        %v1375 = vld [vmem:[#allocation10 + $0x2c0] sm:$0xff]
        %v1376 = vld [vmem:[#allocation10 + $0x2c8] sm:$0xff]
        %v1377 = vld [vmem:[#allocation10 + $0x2d0] sm:$0xff]
        %v1378 = vld [vmem:[#allocation10 + $0x2d8] sm:$0xff]
        %v1379 = vld [vmem:[#allocation10 + $0x2e0] sm:$0xff]
        %v1380 = vld [vmem:[#allocation10 + $0x2e8] sm:$0xff]
        %v1381 = vld [vmem:[#allocation10 + $0x2f0] sm:$0xff]
        %v1382 = vld [vmem:[#allocation10 + $0x2f8] sm:$0xff]
        %v1383 = vld [vmem:[#allocation10 + $0x300] sm:$0xff]
        %v1384 = vld [vmem:[#allocation10 + $0x308] sm:$0xff]
        %v1385 = vld [vmem:[#allocation10 + $0x310] sm:$0xff]
        %v1386 = vld [vmem:[#allocation10 + $0x318] sm:$0xff]
        %v1387 = vld [vmem:[#allocation10 + $0x320] sm:$0xff]
        %v1388 = vld [vmem:[#allocation10 + $0x328] sm:$0xff]
        %v1389 = vld [vmem:[#allocation10 + $0x330] sm:$0xff]
        %v1390 = vld [vmem:[#allocation10 + $0x338] sm:$0xff]
        %v1391 = vld [vmem:[#allocation10 + $0x340] sm:$0xff]
        %v1392 = vld [vmem:[#allocation10 + $0x348] sm:$0xff]
        %v1393 = vld [vmem:[#allocation10 + $0x350] sm:$0xff]
        %v1394 = vld [vmem:[#allocation10 + $0x358] sm:$0xff]
        %v1395 = vld [vmem:[#allocation10 + $0x360] sm:$0xff]
        %v1396 = vld [vmem:[#allocation10 + $0x368] sm:$0xff]
        %v1397 = vld [vmem:[#allocation10 + $0x370] sm:$0xff]
        %v1398 = vld [vmem:[#allocation10 + $0x378] sm:$0xff]
        %v1399 = vld [vmem:[#allocation10 + $0x380] sm:$0xff]
        %v1400 = vld [vmem:[#allocation10 + $0x388] sm:$0xff]
        %v1401 = vld [vmem:[#allocation10 + $0x390] sm:$0xff]
        %v1402 = vld [vmem:[#allocation10 + $0x398] sm:$0xff]
        %v1403 = vld [vmem:[#allocation10 + $0x3a0] sm:$0xff]
        %v1404 = vld [vmem:[#allocation10 + $0x3a8] sm:$0xff]
        %v1405 = vld [vmem:[#allocation10 + $0x3b0] sm:$0xff]
        %v1406 = vld [vmem:[#allocation10 + $0x3b8] sm:$0xff]
        %v1407 = vld [vmem:[#allocation10 + $0x3c0] sm:$0xff]
        %v1408 = vld [vmem:[#allocation10 + $0x3c8] sm:$0xff]
        %v1409 = vld [vmem:[#allocation10 + $0x3d0] sm:$0xff]
        %v1410 = vld [vmem:[#allocation10 + $0x3d8] sm:$0xff]
        %v1411 = vld [vmem:[#allocation10 + $0x3e0] sm:$0xff]
        %v1412 = vld [vmem:[#allocation10 + $0x3e8] sm:$0xff]
        %v1413 = vld [vmem:[#allocation10 + $0x3f0] sm:$0xff]
        %v1414 = vld [vmem:[#allocation10 + $0x3f8] sm:$0xff]
        %v1415 = vld [vmem:[#allocation10 + $0x400] sm:$0xff]
        %v1416 = vld [vmem:[#allocation10 + $0x408] sm:$0xff]
        %v1417 = vld [vmem:[#allocation10 + $0x410] sm:$0xff]
        %v1418 = vld [vmem:[#allocation10 + $0x418] sm:$0xff]
        %v1419 = vld [vmem:[#allocation10 + $0x420] sm:$0xff]
        %v1420 = vld [vmem:[#allocation10 + $0x428] sm:$0xff]
        %v1421 = vld [vmem:[#allocation10 + $0x430] sm:$0xff]
        %v1422 = vld [vmem:[#allocation10 + $0x438] sm:$0xff]
        %v1423 = vld [vmem:[#allocation10 + $0x440] sm:$0xff]
        %v1424 = vld [vmem:[#allocation10 + $0x448] sm:$0xff]
        %v1425 = vld [vmem:[#allocation10 + $0x450] sm:$0xff]
        %v1426 = vld [vmem:[#allocation10 + $0x458] sm:$0xff]
        %v1427 = vld [vmem:[#allocation10 + $0x460] sm:$0xff]
        %v1428 = vld [vmem:[#allocation10 + $0x468] sm:$0xff]
        %v1429 = vld [vmem:[#allocation10 + $0x470] sm:$0xff]
        %v1430 = vld [vmem:[#allocation10 + $0x478] sm:$0xff]
        %v1431 = vld [vmem:[#allocation10 + $0x480] sm:$0xff]
        %v1432 = vld [vmem:[#allocation10 + $0x488] sm:$0xff]
        %v1433 = vld [vmem:[#allocation10 + $0x490] sm:$0xff]
        %v1434 = vld [vmem:[#allocation10 + $0x498] sm:$0xff]
        %v1435 = vld [vmem:[#allocation10 + $0x4a0] sm:$0xff]
        %v1436 = vld [vmem:[#allocation10 + $0x4a8] sm:$0xff]
        %v1437 = vld [vmem:[#allocation10 + $0x4b0] sm:$0xff]
        %v1438 = vld [vmem:[#allocation10 + $0x4b8] sm:$0xff]
        %v1439 = vld [vmem:[#allocation10 + $0x4c0] sm:$0xff]
        %v1440 = vld [vmem:[#allocation10 + $0x4c8] sm:$0xff]
        %v1441 = vld [vmem:[#allocation10 + $0x4d0] sm:$0xff]
        %v1442 = vld [vmem:[#allocation10 + $0x4d8] sm:$0xff]
        %v1443 = vld [vmem:[#allocation10 + $0x4e0] sm:$0xff]
        %v1444 = vld [vmem:[#allocation10 + $0x4e8] sm:$0xff]
        %v1445 = vld [vmem:[#allocation10 + $0x4f0] sm:$0xff]
        %v1446 = vld [vmem:[#allocation10 + $0x4f8] sm:$0xff]
        %v1447 = vld [vmem:[#allocation10 + $0x500] sm:$0xff]
        %v1448 = vld [vmem:[#allocation10 + $0x508] sm:$0xff]
        %v1449 = vld [vmem:[#allocation10 + $0x510] sm:$0xff]
        %v1450 = vld [vmem:[#allocation10 + $0x518] sm:$0xff]
        %v1451 = vld [vmem:[#allocation10 + $0x520] sm:$0xff]
        %v1452 = vld [vmem:[#allocation10 + $0x528] sm:$0xff]
        %v1453 = vld [vmem:[#allocation10 + $0x530] sm:$0xff]
        %v1454 = vld [vmem:[#allocation10 + $0x538] sm:$0xff]
        %v1455 = vld [vmem:[#allocation10 + $0x540] sm:$0xff]
        %v1456 = vld [vmem:[#allocation10 + $0x548] sm:$0xff]
        %v1457 = vld [vmem:[#allocation10 + $0x550] sm:$0xff]
        %v1458 = vld [vmem:[#allocation10 + $0x558] sm:$0xff]
        %v1459 = vld [vmem:[#allocation10 + $0x560] sm:$0xff]
        %v1460 = vld [vmem:[#allocation10 + $0x568] sm:$0xff]
        %v1461 = vld [vmem:[#allocation10 + $0x570] sm:$0xff]
        %v1462 = vld [vmem:[#allocation10 + $0x578] sm:$0xff]
        %v1463 = vld [vmem:[#allocation10 + $0x580] sm:$0xff]
        %v1464 = vld [vmem:[#allocation10 + $0x588] sm:$0xff]
        %v1465 = vld [vmem:[#allocation10 + $0x590] sm:$0xff]
        %v1466 = vld [vmem:[#allocation10 + $0x598] sm:$0xff]
        %v1467 = vld [vmem:[#allocation10 + $0x5a0] sm:$0xff]
        %v1468 = vld [vmem:[#allocation10 + $0x5a8] sm:$0xff]
        %v1469 = vld [vmem:[#allocation10 + $0x5b0] sm:$0xff]
        %v1470 = vld [vmem:[#allocation10 + $0x5b8] sm:$0xff]
        %v1471 = vld [vmem:[#allocation10 + $0x5c0] sm:$0xff]
        %v1472 = vld [vmem:[#allocation10 + $0x5c8] sm:$0xff]
        %v1473 = vld [vmem:[#allocation10 + $0x5d0] sm:$0xff]
        %v1474 = vld [vmem:[#allocation10 + $0x5d8] sm:$0xff]
        %v1475 = vld [vmem:[#allocation10 + $0x5e0] sm:$0xff]
        %v1476 = vld [vmem:[#allocation10 + $0x5e8] sm:$0xff]
        %v1477 = vld [vmem:[#allocation10 + $0x5f0] sm:$0xff]
        %v1478 = vld [vmem:[#allocation10 + $0x5f8] sm:$0xff]
        %v1479 = vld [vmem:[#allocation10 + $0x600] sm:$0xff]
        %v1480 = vld [vmem:[#allocation10 + $0x608] sm:$0xff]
        %v1481 = vld [vmem:[#allocation10 + $0x610] sm:$0xff]
        %v1482 = vld [vmem:[#allocation10 + $0x618] sm:$0xff]
        %v1483 = vld [vmem:[#allocation10 + $0x620] sm:$0xff]
        %v1484 = vld [vmem:[#allocation10 + $0x628] sm:$0xff]
        %v1485 = vld [vmem:[#allocation10 + $0x630] sm:$0xff]
        %v1486 = vld [vmem:[#allocation10 + $0x638] sm:$0xff]
        %v1487 = vld [vmem:[#allocation10 + $0x640] sm:$0xff]
        %v1488 = vld [vmem:[#allocation10 + $0x648] sm:$0xff]
        %v1489 = vld [vmem:[#allocation10 + $0x650] sm:$0xff]
        %v1490 = vld [vmem:[#allocation10 + $0x658] sm:$0xff]
        %v1491 = vld [vmem:[#allocation10 + $0x660] sm:$0xff]
        %v1492 = vld [vmem:[#allocation10 + $0x668] sm:$0xff]
        %v1493 = vld [vmem:[#allocation10 + $0x670] sm:$0xff]
        %v1494 = vld [vmem:[#allocation10 + $0x678] sm:$0xff]
        %v1495 = vld [vmem:[#allocation10 + $0x680] sm:$0xff]
        %v1496 = vld [vmem:[#allocation10 + $0x688] sm:$0xff]
        %v1497 = vld [vmem:[#allocation10 + $0x690] sm:$0xff]
        %v1498 = vld [vmem:[#allocation10 + $0x698] sm:$0xff]
        %v1499 = vld [vmem:[#allocation10 + $0x6a0] sm:$0xff]
        %v1500 = vld [vmem:[#allocation10 + $0x6a8] sm:$0xff]
        %v1501 = vld [vmem:[#allocation10 + $0x6b0] sm:$0xff]
        %v1502 = vld [vmem:[#allocation10 + $0x6b8] sm:$0xff]
        %v1503 = vld [vmem:[#allocation10 + $0x6c0] sm:$0xff]
        %v1504 = vld [vmem:[#allocation10 + $0x6c8] sm:$0xff]
        %v1505 = vld [vmem:[#allocation10 + $0x6d0] sm:$0xff]
        %v1506 = vld [vmem:[#allocation10 + $0x6d8] sm:$0xff]
        %v1507 = vld [vmem:[#allocation10 + $0x6e0] sm:$0xff]
        %v1508 = vld [vmem:[#allocation10 + $0x6e8] sm:$0xff]
        %v1509 = vld [vmem:[#allocation10 + $0x6f0] sm:$0xff]
        %v1510 = vld [vmem:[#allocation10 + $0x6f8] sm:$0xff]
        %v1511 = vld [vmem:[#allocation10 + $0x700] sm:$0xff]
        %v1512 = vld [vmem:[#allocation10 + $0x708] sm:$0xff]
        %v1513 = vld [vmem:[#allocation10 + $0x710] sm:$0xff]
        %v1514 = vld [vmem:[#allocation10 + $0x718] sm:$0xff]
        %v1515 = vld [vmem:[#allocation10 + $0x720] sm:$0xff]
        %v1516 = vld [vmem:[#allocation10 + $0x728] sm:$0xff]
        %v1517 = vld [vmem:[#allocation10 + $0x730] sm:$0xff]
        %v1518 = vld [vmem:[#allocation10 + $0x738] sm:$0xff]
        %v1519 = vld [vmem:[#allocation10 + $0x740] sm:$0xff]
        %v1520 = vld [vmem:[#allocation10 + $0x748] sm:$0xff]
        %v1521 = vld [vmem:[#allocation10 + $0x750] sm:$0xff]
        %v1522 = vld [vmem:[#allocation10 + $0x758] sm:$0xff]
        %v1523 = vld [vmem:[#allocation10 + $0x760] sm:$0xff]
        %v1524 = vld [vmem:[#allocation10 + $0x768] sm:$0xff]
        %v1525 = vld [vmem:[#allocation10 + $0x770] sm:$0xff]
        %v1526 = vld [vmem:[#allocation10 + $0x778] sm:$0xff]
        %v1527 = vld [vmem:[#allocation10 + $0x780] sm:$0xff]
        %v1528 = vld [vmem:[#allocation10 + $0x788] sm:$0xff]
        %v1529 = vld [vmem:[#allocation10 + $0x790] sm:$0xff]
        %v1530 = vld [vmem:[#allocation10 + $0x798] sm:$0xff]
        %v1531 = vld [vmem:[#allocation10 + $0x7a0] sm:$0xff]
        %v1532 = vld [vmem:[#allocation10 + $0x7a8] sm:$0xff]
        %v1533 = vld [vmem:[#allocation10 + $0x7b0] sm:$0xff]
        %v1534 = vld [vmem:[#allocation10 + $0x7b8] sm:$0xff]
        %v1535 = vld [vmem:[#allocation10 + $0x7c0] sm:$0xff]
        %v1536 = vld [vmem:[#allocation10 + $0x7c8] sm:$0xff]
        %v1537 = vld [vmem:[#allocation10 + $0x7d0] sm:$0xff]
        %v1538 = vld [vmem:[#allocation10 + $0x7d8] sm:$0xff]
        %v1539 = vld [vmem:[#allocation10 + $0x7e0] sm:$0xff]
        %v1540 = vld [vmem:[#allocation10 + $0x7e8] sm:$0xff]
        %v1541 = vld [vmem:[#allocation10 + $0x7f0] sm:$0xff]
        %v1542 = vld [vmem:[#allocation10 + $0x7f8] sm:$0xff]
        %v1544 = vlaneseq
        %v1545 = vshrl.u32 %v1544, 7
        %v1546 = vsub.s32 0, %v1545
        %v1547 = vrot.slane %v1282, %v1546
        %v1548 = vlaneseq
        %v1549 = vshrl.u32 %v1548, 7
        %v1550 = vsub.s32 1, %v1549
        %v1551 = vrot.slane %v1282, %v1550
        %v1552 = vlaneseq
        %v1553 = vshrl.u32 %v1552, 7
        %v1554 = vsub.s32 2, %v1553
        %v1555 = vrot.slane %v1282, %v1554
        %v1556 = vlaneseq
        %v1557 = vshrl.u32 %v1556, 7
        %v1558 = vsub.s32 3, %v1557
        %v1559 = vrot.slane %v1282, %v1558
        %v1560 = vlaneseq
        %v1561 = vshrl.u32 %v1560, 7
        %v1562 = vsub.s32 4, %v1561
        %v1563 = vrot.slane %v1282, %v1562
        %v1564 = vlaneseq
        %v1565 = vshrl.u32 %v1564, 7
        %v1566 = vsub.s32 5, %v1565
        %v1567 = vrot.slane %v1282, %v1566
        %v1568 = vlaneseq
        %v1569 = vshrl.u32 %v1568, 7
        %v1570 = vsub.s32 6, %v1569
        %v1571 = vrot.slane %v1282, %v1570
        %v1572 = vlaneseq
        %v1573 = vshrl.u32 %v1572, 7
        %v1574 = vsub.s32 7, %v1573
        %v1575 = vrot.slane %v1282, %v1574
        %v1840 = vunpack.c.l.b16 %v1287
        %v1841 = vunpack.c.h.b16 %v1287
        %v1842 = vunpack.c.l.b16 %v1288
        %v1843 = vunpack.c.h.b16 %v1288
        %v1844 = vunpack.c.l.b16 %v1289
        %v1845 = vunpack.c.h.b16 %v1289
        %v1846 = vunpack.c.l.b16 %v1290
        %v1847 = vunpack.c.h.b16 %v1290
        %v1848 = vunpack.c.l.b16 %v1291
        %v1849 = vunpack.c.h.b16 %v1291
        %v1850 = vunpack.c.l.b16 %v1292
        %v1851 = vunpack.c.h.b16 %v1292
        %v1852 = vunpack.c.l.b16 %v1293
        %v1853 = vunpack.c.h.b16 %v1293
        %v1854 = vunpack.c.l.b16 %v1294
        %v1855 = vunpack.c.h.b16 %v1294
        %v1856 = vunpack.c.l.b16 %v1295
        %v1857 = vunpack.c.h.b16 %v1295
        %v1858 = vunpack.c.l.b16 %v1296
        %v1859 = vunpack.c.h.b16 %v1296
        %v1860 = vunpack.c.l.b16 %v1297
        %v1861 = vunpack.c.h.b16 %v1297
        %v1862 = vunpack.c.l.b16 %v1298
        %v1863 = vunpack.c.h.b16 %v1298
        %v1864 = vunpack.c.l.b16 %v1299
        %v1865 = vunpack.c.h.b16 %v1299
        %v1866 = vunpack.c.l.b16 %v1300
        %v1867 = vunpack.c.h.b16 %v1300
        %v1868 = vunpack.c.l.b16 %v1301
        %v1869 = vunpack.c.h.b16 %v1301
        %v1870 = vunpack.c.l.b16 %v1302
        %v1871 = vunpack.c.h.b16 %v1302
        %v1872 = vunpack.c.l.b16 %v1303
        %v1873 = vunpack.c.h.b16 %v1303
        %v1874 = vunpack.c.l.b16 %v1304
        %v1875 = vunpack.c.h.b16 %v1304
        %v1876 = vunpack.c.l.b16 %v1305
        %v1877 = vunpack.c.h.b16 %v1305
        %v1878 = vunpack.c.l.b16 %v1306
        %v1879 = vunpack.c.h.b16 %v1306
        %v1880 = vunpack.c.l.b16 %v1307
        %v1881 = vunpack.c.h.b16 %v1307
        %v1882 = vunpack.c.l.b16 %v1308
        %v1883 = vunpack.c.h.b16 %v1308
        %v1884 = vunpack.c.l.b16 %v1309
        %v1885 = vunpack.c.h.b16 %v1309
        %v1886 = vunpack.c.l.b16 %v1310
        %v1887 = vunpack.c.h.b16 %v1310
        %v1888 = vunpack.c.l.b16 %v1311
        %v1889 = vunpack.c.h.b16 %v1311
        %v1890 = vunpack.c.l.b16 %v1312
        %v1891 = vunpack.c.h.b16 %v1312
        %v1892 = vunpack.c.l.b16 %v1313
        %v1893 = vunpack.c.h.b16 %v1313
        %v1894 = vunpack.c.l.b16 %v1314
        %v1895 = vunpack.c.h.b16 %v1314
        %v1896 = vunpack.c.l.b16 %v1315
        %v1897 = vunpack.c.h.b16 %v1315
        %v1898 = vunpack.c.l.b16 %v1316
        %v1899 = vunpack.c.h.b16 %v1316
        %v1900 = vunpack.c.l.b16 %v1317
        %v1901 = vunpack.c.h.b16 %v1317
        %v1902 = vunpack.c.l.b16 %v1318
        %v1903 = vunpack.c.h.b16 %v1318
        %v1904 = vunpack.c.l.b16 %v1319
        %v1905 = vunpack.c.h.b16 %v1319
        %v1906 = vunpack.c.l.b16 %v1320
        %v1907 = vunpack.c.h.b16 %v1320
        %v1908 = vunpack.c.l.b16 %v1321
        %v1909 = vunpack.c.h.b16 %v1321
        %v1910 = vunpack.c.l.b16 %v1322
        %v1911 = vunpack.c.h.b16 %v1322
        %v1912 = vunpack.c.l.b16 %v1323
        %v1913 = vunpack.c.h.b16 %v1323
        %v1914 = vunpack.c.l.b16 %v1324
        %v1915 = vunpack.c.h.b16 %v1324
        %v1916 = vunpack.c.l.b16 %v1325
        %v1917 = vunpack.c.h.b16 %v1325
        %v1918 = vunpack.c.l.b16 %v1326
        %v1919 = vunpack.c.h.b16 %v1326
        %v1920 = vunpack.c.l.b16 %v1327
        %v1921 = vunpack.c.h.b16 %v1327
        %v1922 = vunpack.c.l.b16 %v1328
        %v1923 = vunpack.c.h.b16 %v1328
        %v1924 = vunpack.c.l.b16 %v1329
        %v1925 = vunpack.c.h.b16 %v1329
        %v1926 = vunpack.c.l.b16 %v1330
        %v1927 = vunpack.c.h.b16 %v1330
        %v1928 = vunpack.c.l.b16 %v1331
        %v1929 = vunpack.c.h.b16 %v1331
        %v1930 = vunpack.c.l.b16 %v1332
        %v1931 = vunpack.c.h.b16 %v1332
        %v1932 = vunpack.c.l.b16 %v1333
        %v1933 = vunpack.c.h.b16 %v1333
        %v1934 = vunpack.c.l.b16 %v1334
        %v1935 = vunpack.c.h.b16 %v1334
        %v1936 = vunpack.c.l.b16 %v1335
        %v1937 = vunpack.c.h.b16 %v1335
        %v1938 = vunpack.c.l.b16 %v1336
        %v1939 = vunpack.c.h.b16 %v1336
        %v1940 = vunpack.c.l.b16 %v1337
        %v1941 = vunpack.c.h.b16 %v1337
        %v1942 = vunpack.c.l.b16 %v1338
        %v1943 = vunpack.c.h.b16 %v1338
        %v1944 = vunpack.c.l.b16 %v1339
        %v1945 = vunpack.c.h.b16 %v1339
        %v1946 = vunpack.c.l.b16 %v1340
        %v1947 = vunpack.c.h.b16 %v1340
        %v1948 = vunpack.c.l.b16 %v1341
        %v1949 = vunpack.c.h.b16 %v1341
        %v1950 = vunpack.c.l.b16 %v1342
        %v1951 = vunpack.c.h.b16 %v1342
        %v1952 = vunpack.c.l.b16 %v1343
        %v1953 = vunpack.c.h.b16 %v1343
        %v1954 = vunpack.c.l.b16 %v1344
        %v1955 = vunpack.c.h.b16 %v1344
        %v1956 = vunpack.c.l.b16 %v1345
        %v1957 = vunpack.c.h.b16 %v1345
        %v1958 = vunpack.c.l.b16 %v1346
        %v1959 = vunpack.c.h.b16 %v1346
        %v1960 = vunpack.c.l.b16 %v1347
        %v1961 = vunpack.c.h.b16 %v1347
        %v1962 = vunpack.c.l.b16 %v1348
        %v1963 = vunpack.c.h.b16 %v1348
        %v1964 = vunpack.c.l.b16 %v1349
        %v1965 = vunpack.c.h.b16 %v1349
        %v1966 = vunpack.c.l.b16 %v1350
        %v1967 = vunpack.c.h.b16 %v1350
        %v1968 = vunpack.c.l.b16 %v1351
        %v1969 = vunpack.c.h.b16 %v1351
        %v1970 = vunpack.c.l.b16 %v1352
        %v1971 = vunpack.c.h.b16 %v1352
        %v1972 = vunpack.c.l.b16 %v1353
        %v1973 = vunpack.c.h.b16 %v1353
        %v1974 = vunpack.c.l.b16 %v1354
        %v1975 = vunpack.c.h.b16 %v1354
        %v1976 = vunpack.c.l.b16 %v1355
        %v1977 = vunpack.c.h.b16 %v1355
        %v1978 = vunpack.c.l.b16 %v1356
        %v1979 = vunpack.c.h.b16 %v1356
        %v1980 = vunpack.c.l.b16 %v1357
        %v1981 = vunpack.c.h.b16 %v1357
        %v1982 = vunpack.c.l.b16 %v1358
        %v1983 = vunpack.c.h.b16 %v1358
        %v1984 = vunpack.c.l.b16 %v1359
        %v1985 = vunpack.c.h.b16 %v1359
        %v1986 = vunpack.c.l.b16 %v1360
        %v1987 = vunpack.c.h.b16 %v1360
        %v1988 = vunpack.c.l.b16 %v1361
        %v1989 = vunpack.c.h.b16 %v1361
        %v1990 = vunpack.c.l.b16 %v1362
        %v1991 = vunpack.c.h.b16 %v1362
        %v1992 = vunpack.c.l.b16 %v1363
        %v1993 = vunpack.c.h.b16 %v1363
        %v1994 = vunpack.c.l.b16 %v1364
        %v1995 = vunpack.c.h.b16 %v1364
        %v1996 = vunpack.c.l.b16 %v1365
        %v1997 = vunpack.c.h.b16 %v1365
        %v1998 = vunpack.c.l.b16 %v1366
        %v1999 = vunpack.c.h.b16 %v1366
        %v2000 = vunpack.c.l.b16 %v1367
        %v2001 = vunpack.c.h.b16 %v1367
        %v2002 = vunpack.c.l.b16 %v1368
        %v2003 = vunpack.c.h.b16 %v1368
        %v2004 = vunpack.c.l.b16 %v1369
        %v2005 = vunpack.c.h.b16 %v1369
        %v2006 = vunpack.c.l.b16 %v1370
        %v2007 = vunpack.c.h.b16 %v1370
        %v2008 = vunpack.c.l.b16 %v1371
        %v2009 = vunpack.c.h.b16 %v1371
        %v2010 = vunpack.c.l.b16 %v1372
        %v2011 = vunpack.c.h.b16 %v1372
        %v2012 = vunpack.c.l.b16 %v1373
        %v2013 = vunpack.c.h.b16 %v1373
        %v2014 = vunpack.c.l.b16 %v1374
        %v2015 = vunpack.c.h.b16 %v1374
        %v2016 = vunpack.c.l.b16 %v1375
        %v2017 = vunpack.c.h.b16 %v1375
        %v2018 = vunpack.c.l.b16 %v1376
        %v2019 = vunpack.c.h.b16 %v1376
        %v2020 = vunpack.c.l.b16 %v1377
        %v2021 = vunpack.c.h.b16 %v1377
        %v2022 = vunpack.c.l.b16 %v1378
        %v2023 = vunpack.c.h.b16 %v1378
        %v2024 = vunpack.c.l.b16 %v1379
        %v2025 = vunpack.c.h.b16 %v1379
        %v2026 = vunpack.c.l.b16 %v1380
        %v2027 = vunpack.c.h.b16 %v1380
        %v2028 = vunpack.c.l.b16 %v1381
        %v2029 = vunpack.c.h.b16 %v1381
        %v2030 = vunpack.c.l.b16 %v1382
        %v2031 = vunpack.c.h.b16 %v1382
        %v2032 = vunpack.c.l.b16 %v1383
        %v2033 = vunpack.c.h.b16 %v1383
        %v2034 = vunpack.c.l.b16 %v1384
        %v2035 = vunpack.c.h.b16 %v1384
        %v2036 = vunpack.c.l.b16 %v1385
        %v2037 = vunpack.c.h.b16 %v1385
        %v2038 = vunpack.c.l.b16 %v1386
        %v2039 = vunpack.c.h.b16 %v1386
        %v2040 = vunpack.c.l.b16 %v1387
        %v2041 = vunpack.c.h.b16 %v1387
        %v2042 = vunpack.c.l.b16 %v1388
        %v2043 = vunpack.c.h.b16 %v1388
        %v2044 = vunpack.c.l.b16 %v1389
        %v2045 = vunpack.c.h.b16 %v1389
        %v2046 = vunpack.c.l.b16 %v1390
        %v2047 = vunpack.c.h.b16 %v1390
        %v2048 = vunpack.c.l.b16 %v1391
        %v2049 = vunpack.c.h.b16 %v1391
        %v2050 = vunpack.c.l.b16 %v1392
        %v2051 = vunpack.c.h.b16 %v1392
        %v2052 = vunpack.c.l.b16 %v1393
        %v2053 = vunpack.c.h.b16 %v1393
        %v2054 = vunpack.c.l.b16 %v1394
        %v2055 = vunpack.c.h.b16 %v1394
        %v2056 = vunpack.c.l.b16 %v1395
        %v2057 = vunpack.c.h.b16 %v1395
        %v2058 = vunpack.c.l.b16 %v1396
        %v2059 = vunpack.c.h.b16 %v1396
        %v2060 = vunpack.c.l.b16 %v1397
        %v2061 = vunpack.c.h.b16 %v1397
        %v2062 = vunpack.c.l.b16 %v1398
        %v2063 = vunpack.c.h.b16 %v1398
        %v2064 = vunpack.c.l.b16 %v1399
        %v2065 = vunpack.c.h.b16 %v1399
        %v2066 = vunpack.c.l.b16 %v1400
        %v2067 = vunpack.c.h.b16 %v1400
        %v2068 = vunpack.c.l.b16 %v1401
        %v2069 = vunpack.c.h.b16 %v1401
        %v2070 = vunpack.c.l.b16 %v1402
        %v2071 = vunpack.c.h.b16 %v1402
        %v2072 = vunpack.c.l.b16 %v1403
        %v2073 = vunpack.c.h.b16 %v1403
        %v2074 = vunpack.c.l.b16 %v1404
        %v2075 = vunpack.c.h.b16 %v1404
        %v2076 = vunpack.c.l.b16 %v1405
        %v2077 = vunpack.c.h.b16 %v1405
        %v2078 = vunpack.c.l.b16 %v1406
        %v2079 = vunpack.c.h.b16 %v1406
        %v2080 = vunpack.c.l.b16 %v1407
        %v2081 = vunpack.c.h.b16 %v1407
        %v2082 = vunpack.c.l.b16 %v1408
        %v2083 = vunpack.c.h.b16 %v1408
        %v2084 = vunpack.c.l.b16 %v1409
        %v2085 = vunpack.c.h.b16 %v1409
        %v2086 = vunpack.c.l.b16 %v1410
        %v2087 = vunpack.c.h.b16 %v1410
        %v2088 = vunpack.c.l.b16 %v1411
        %v2089 = vunpack.c.h.b16 %v1411
        %v2090 = vunpack.c.l.b16 %v1412
        %v2091 = vunpack.c.h.b16 %v1412
        %v2092 = vunpack.c.l.b16 %v1413
        %v2093 = vunpack.c.h.b16 %v1413
        %v2094 = vunpack.c.l.b16 %v1414
        %v2095 = vunpack.c.h.b16 %v1414
        %v2096 = vunpack.c.l.b16 %v1415
        %v2097 = vunpack.c.h.b16 %v1415
        %v2098 = vunpack.c.l.b16 %v1416
        %v2099 = vunpack.c.h.b16 %v1416
        %v2100 = vunpack.c.l.b16 %v1417
        %v2101 = vunpack.c.h.b16 %v1417
        %v2102 = vunpack.c.l.b16 %v1418
        %v2103 = vunpack.c.h.b16 %v1418
        %v2104 = vunpack.c.l.b16 %v1419
        %v2105 = vunpack.c.h.b16 %v1419
        %v2106 = vunpack.c.l.b16 %v1420
        %v2107 = vunpack.c.h.b16 %v1420
        %v2108 = vunpack.c.l.b16 %v1421
        %v2109 = vunpack.c.h.b16 %v1421
        %v2110 = vunpack.c.l.b16 %v1422
        %v2111 = vunpack.c.h.b16 %v1422
        %v2112 = vunpack.c.l.b16 %v1423
        %v2113 = vunpack.c.h.b16 %v1423
        %v2114 = vunpack.c.l.b16 %v1424
        %v2115 = vunpack.c.h.b16 %v1424
        %v2116 = vunpack.c.l.b16 %v1425
        %v2117 = vunpack.c.h.b16 %v1425
        %v2118 = vunpack.c.l.b16 %v1426
        %v2119 = vunpack.c.h.b16 %v1426
        %v2120 = vunpack.c.l.b16 %v1427
        %v2121 = vunpack.c.h.b16 %v1427
        %v2122 = vunpack.c.l.b16 %v1428
        %v2123 = vunpack.c.h.b16 %v1428
        %v2124 = vunpack.c.l.b16 %v1429
        %v2125 = vunpack.c.h.b16 %v1429
        %v2126 = vunpack.c.l.b16 %v1430
        %v2127 = vunpack.c.h.b16 %v1430
        %v2128 = vunpack.c.l.b16 %v1431
        %v2129 = vunpack.c.h.b16 %v1431
        %v2130 = vunpack.c.l.b16 %v1432
        %v2131 = vunpack.c.h.b16 %v1432
        %v2132 = vunpack.c.l.b16 %v1433
        %v2133 = vunpack.c.h.b16 %v1433
        %v2134 = vunpack.c.l.b16 %v1434
        %v2135 = vunpack.c.h.b16 %v1434
        %v2136 = vunpack.c.l.b16 %v1435
        %v2137 = vunpack.c.h.b16 %v1435
        %v2138 = vunpack.c.l.b16 %v1436
        %v2139 = vunpack.c.h.b16 %v1436
        %v2140 = vunpack.c.l.b16 %v1437
        %v2141 = vunpack.c.h.b16 %v1437
        %v2142 = vunpack.c.l.b16 %v1438
        %v2143 = vunpack.c.h.b16 %v1438
        %v2144 = vunpack.c.l.b16 %v1439
        %v2145 = vunpack.c.h.b16 %v1439
        %v2146 = vunpack.c.l.b16 %v1440
        %v2147 = vunpack.c.h.b16 %v1440
        %v2148 = vunpack.c.l.b16 %v1441
        %v2149 = vunpack.c.h.b16 %v1441
        %v2150 = vunpack.c.l.b16 %v1442
        %v2151 = vunpack.c.h.b16 %v1442
        %v2152 = vunpack.c.l.b16 %v1443
        %v2153 = vunpack.c.h.b16 %v1443
        %v2154 = vunpack.c.l.b16 %v1444
        %v2155 = vunpack.c.h.b16 %v1444
        %v2156 = vunpack.c.l.b16 %v1445
        %v2157 = vunpack.c.h.b16 %v1445
        %v2158 = vunpack.c.l.b16 %v1446
        %v2159 = vunpack.c.h.b16 %v1446
        %v2160 = vunpack.c.l.b16 %v1447
        %v2161 = vunpack.c.h.b16 %v1447
        %v2162 = vunpack.c.l.b16 %v1448
        %v2163 = vunpack.c.h.b16 %v1448
        %v2164 = vunpack.c.l.b16 %v1449
        %v2165 = vunpack.c.h.b16 %v1449
        %v2166 = vunpack.c.l.b16 %v1450
        %v2167 = vunpack.c.h.b16 %v1450
        %v2168 = vunpack.c.l.b16 %v1451
        %v2169 = vunpack.c.h.b16 %v1451
        %v2170 = vunpack.c.l.b16 %v1452
        %v2171 = vunpack.c.h.b16 %v1452
        %v2172 = vunpack.c.l.b16 %v1453
        %v2173 = vunpack.c.h.b16 %v1453
        %v2174 = vunpack.c.l.b16 %v1454
        %v2175 = vunpack.c.h.b16 %v1454
        %v2176 = vunpack.c.l.b16 %v1455
        %v2177 = vunpack.c.h.b16 %v1455
        %v2178 = vunpack.c.l.b16 %v1456
        %v2179 = vunpack.c.h.b16 %v1456
        %v2180 = vunpack.c.l.b16 %v1457
        %v2181 = vunpack.c.h.b16 %v1457
        %v2182 = vunpack.c.l.b16 %v1458
        %v2183 = vunpack.c.h.b16 %v1458
        %v2184 = vunpack.c.l.b16 %v1459
        %v2185 = vunpack.c.h.b16 %v1459
        %v2186 = vunpack.c.l.b16 %v1460
        %v2187 = vunpack.c.h.b16 %v1460
        %v2188 = vunpack.c.l.b16 %v1461
        %v2189 = vunpack.c.h.b16 %v1461
        %v2190 = vunpack.c.l.b16 %v1462
        %v2191 = vunpack.c.h.b16 %v1462
        %v2192 = vunpack.c.l.b16 %v1463
        %v2193 = vunpack.c.h.b16 %v1463
        %v2194 = vunpack.c.l.b16 %v1464
        %v2195 = vunpack.c.h.b16 %v1464
        %v2196 = vunpack.c.l.b16 %v1465
        %v2197 = vunpack.c.h.b16 %v1465
        %v2198 = vunpack.c.l.b16 %v1466
        %v2199 = vunpack.c.h.b16 %v1466
        %v2200 = vunpack.c.l.b16 %v1467
        %v2201 = vunpack.c.h.b16 %v1467
        %v2202 = vunpack.c.l.b16 %v1468
        %v2203 = vunpack.c.h.b16 %v1468
        %v2204 = vunpack.c.l.b16 %v1469
        %v2205 = vunpack.c.h.b16 %v1469
        %v2206 = vunpack.c.l.b16 %v1470
        %v2207 = vunpack.c.h.b16 %v1470
        %v2208 = vunpack.c.l.b16 %v1471
        %v2209 = vunpack.c.h.b16 %v1471
        %v2210 = vunpack.c.l.b16 %v1472
        %v2211 = vunpack.c.h.b16 %v1472
        %v2212 = vunpack.c.l.b16 %v1473
        %v2213 = vunpack.c.h.b16 %v1473
        %v2214 = vunpack.c.l.b16 %v1474
        %v2215 = vunpack.c.h.b16 %v1474
        %v2216 = vunpack.c.l.b16 %v1475
        %v2217 = vunpack.c.h.b16 %v1475
        %v2218 = vunpack.c.l.b16 %v1476
        %v2219 = vunpack.c.h.b16 %v1476
        %v2220 = vunpack.c.l.b16 %v1477
        %v2221 = vunpack.c.h.b16 %v1477
        %v2222 = vunpack.c.l.b16 %v1478
        %v2223 = vunpack.c.h.b16 %v1478
        %v2224 = vunpack.c.l.b16 %v1479
        %v2225 = vunpack.c.h.b16 %v1479
        %v2226 = vunpack.c.l.b16 %v1480
        %v2227 = vunpack.c.h.b16 %v1480
        %v2228 = vunpack.c.l.b16 %v1481
        %v2229 = vunpack.c.h.b16 %v1481
        %v2230 = vunpack.c.l.b16 %v1482
        %v2231 = vunpack.c.h.b16 %v1482
        %v2232 = vunpack.c.l.b16 %v1483
        %v2233 = vunpack.c.h.b16 %v1483
        %v2234 = vunpack.c.l.b16 %v1484
        %v2235 = vunpack.c.h.b16 %v1484
        %v2236 = vunpack.c.l.b16 %v1485
        %v2237 = vunpack.c.h.b16 %v1485
        %v2238 = vunpack.c.l.b16 %v1486
        %v2239 = vunpack.c.h.b16 %v1486
        %v2240 = vunpack.c.l.b16 %v1487
        %v2241 = vunpack.c.h.b16 %v1487
        %v2242 = vunpack.c.l.b16 %v1488
        %v2243 = vunpack.c.h.b16 %v1488
        %v2244 = vunpack.c.l.b16 %v1489
        %v2245 = vunpack.c.h.b16 %v1489
        %v2246 = vunpack.c.l.b16 %v1490
        %v2247 = vunpack.c.h.b16 %v1490
        %v2248 = vunpack.c.l.b16 %v1491
        %v2249 = vunpack.c.h.b16 %v1491
        %v2250 = vunpack.c.l.b16 %v1492
        %v2251 = vunpack.c.h.b16 %v1492
        %v2252 = vunpack.c.l.b16 %v1493
        %v2253 = vunpack.c.h.b16 %v1493
        %v2254 = vunpack.c.l.b16 %v1494
        %v2255 = vunpack.c.h.b16 %v1494
        %v2256 = vunpack.c.l.b16 %v1495
        %v2257 = vunpack.c.h.b16 %v1495
        %v2258 = vunpack.c.l.b16 %v1496
        %v2259 = vunpack.c.h.b16 %v1496
        %v2260 = vunpack.c.l.b16 %v1497
        %v2261 = vunpack.c.h.b16 %v1497
        %v2262 = vunpack.c.l.b16 %v1498
        %v2263 = vunpack.c.h.b16 %v1498
        %v2264 = vunpack.c.l.b16 %v1499
        %v2265 = vunpack.c.h.b16 %v1499
        %v2266 = vunpack.c.l.b16 %v1500
        %v2267 = vunpack.c.h.b16 %v1500
        %v2268 = vunpack.c.l.b16 %v1501
        %v2269 = vunpack.c.h.b16 %v1501
        %v2270 = vunpack.c.l.b16 %v1502
        %v2271 = vunpack.c.h.b16 %v1502
        %v2272 = vunpack.c.l.b16 %v1503
        %v2273 = vunpack.c.h.b16 %v1503
        %v2274 = vunpack.c.l.b16 %v1504
        %v2275 = vunpack.c.h.b16 %v1504
        %v2276 = vunpack.c.l.b16 %v1505
        %v2277 = vunpack.c.h.b16 %v1505
        %v2278 = vunpack.c.l.b16 %v1506
        %v2279 = vunpack.c.h.b16 %v1506
        %v2280 = vunpack.c.l.b16 %v1507
        %v2281 = vunpack.c.h.b16 %v1507
        %v2282 = vunpack.c.l.b16 %v1508
        %v2283 = vunpack.c.h.b16 %v1508
        %v2284 = vunpack.c.l.b16 %v1509
        %v2285 = vunpack.c.h.b16 %v1509
        %v2286 = vunpack.c.l.b16 %v1510
        %v2287 = vunpack.c.h.b16 %v1510
        %v2288 = vunpack.c.l.b16 %v1511
        %v2289 = vunpack.c.h.b16 %v1511
        %v2290 = vunpack.c.l.b16 %v1512
        %v2291 = vunpack.c.h.b16 %v1512
        %v2292 = vunpack.c.l.b16 %v1513
        %v2293 = vunpack.c.h.b16 %v1513
        %v2294 = vunpack.c.l.b16 %v1514
        %v2295 = vunpack.c.h.b16 %v1514
        %v2296 = vunpack.c.l.b16 %v1515
        %v2297 = vunpack.c.h.b16 %v1515
        %v2298 = vunpack.c.l.b16 %v1516
        %v2299 = vunpack.c.h.b16 %v1516
        %v2300 = vunpack.c.l.b16 %v1517
        %v2301 = vunpack.c.h.b16 %v1517
        %v2302 = vunpack.c.l.b16 %v1518
        %v2303 = vunpack.c.h.b16 %v1518
        %v2304 = vunpack.c.l.b16 %v1519
        %v2305 = vunpack.c.h.b16 %v1519
        %v2306 = vunpack.c.l.b16 %v1520
        %v2307 = vunpack.c.h.b16 %v1520
        %v2308 = vunpack.c.l.b16 %v1521
        %v2309 = vunpack.c.h.b16 %v1521
        %v2310 = vunpack.c.l.b16 %v1522
        %v2311 = vunpack.c.h.b16 %v1522
        %v2312 = vunpack.c.l.b16 %v1523
        %v2313 = vunpack.c.h.b16 %v1523
        %v2314 = vunpack.c.l.b16 %v1524
        %v2315 = vunpack.c.h.b16 %v1524
        %v2316 = vunpack.c.l.b16 %v1525
        %v2317 = vunpack.c.h.b16 %v1525
        %v2318 = vunpack.c.l.b16 %v1526
        %v2319 = vunpack.c.h.b16 %v1526
        %v2320 = vunpack.c.l.b16 %v1527
        %v2321 = vunpack.c.h.b16 %v1527
        %v2322 = vunpack.c.l.b16 %v1528
        %v2323 = vunpack.c.h.b16 %v1528
        %v2324 = vunpack.c.l.b16 %v1529
        %v2325 = vunpack.c.h.b16 %v1529
        %v2326 = vunpack.c.l.b16 %v1530
        %v2327 = vunpack.c.h.b16 %v1530
        %v2328 = vunpack.c.l.b16 %v1531
        %v2329 = vunpack.c.h.b16 %v1531
        %v2330 = vunpack.c.l.b16 %v1532
        %v2331 = vunpack.c.h.b16 %v1532
        %v2332 = vunpack.c.l.b16 %v1533
        %v2333 = vunpack.c.h.b16 %v1533
        %v2334 = vunpack.c.l.b16 %v1534
        %v2335 = vunpack.c.h.b16 %v1534
        %v2336 = vunpack.c.l.b16 %v1535
        %v2337 = vunpack.c.h.b16 %v1535
        %v2338 = vunpack.c.l.b16 %v1536
        %v2339 = vunpack.c.h.b16 %v1536
        %v2340 = vunpack.c.l.b16 %v1537
        %v2341 = vunpack.c.h.b16 %v1537
        %v2342 = vunpack.c.l.b16 %v1538
        %v2343 = vunpack.c.h.b16 %v1538
        %v2344 = vunpack.c.l.b16 %v1539
        %v2345 = vunpack.c.h.b16 %v1539
        %v2346 = vunpack.c.l.b16 %v1540
        %v2347 = vunpack.c.h.b16 %v1540
        %v2348 = vunpack.c.l.b16 %v1541
        %v2349 = vunpack.c.h.b16 %v1541
        %v2350 = vunpack.c.l.b16 %v1542
        %v2351 = vunpack.c.h.b16 %v1542
        %v2352 = vpack.c.b16 %v1848, %v1840
        %v2353 = vpack.c.b16 %v1849, %v1841
        %v2354 = vpack.c.b16 %v1850, %v1842
        %v2355 = vpack.c.b16 %v1851, %v1843
        %v2356 = vpack.c.b16 %v1852, %v1844
        %v2357 = vpack.c.b16 %v1853, %v1845
        %v2358 = vpack.c.b16 %v1854, %v1846
        %v2359 = vpack.c.b16 %v1855, %v1847
        %v2360 = vpack.c.b16 %v1864, %v1856
        %v2361 = vpack.c.b16 %v1865, %v1857
        %v2362 = vpack.c.b16 %v1866, %v1858
        %v2363 = vpack.c.b16 %v1867, %v1859
        %v2364 = vpack.c.b16 %v1868, %v1860
        %v2365 = vpack.c.b16 %v1869, %v1861
        %v2366 = vpack.c.b16 %v1870, %v1862
        %v2367 = vpack.c.b16 %v1871, %v1863
        %v2368 = vpack.c.b16 %v1880, %v1872
        %v2369 = vpack.c.b16 %v1881, %v1873
        %v2370 = vpack.c.b16 %v1882, %v1874
        %v2371 = vpack.c.b16 %v1883, %v1875
        %v2372 = vpack.c.b16 %v1884, %v1876
        %v2373 = vpack.c.b16 %v1885, %v1877
        %v2374 = vpack.c.b16 %v1886, %v1878
        %v2375 = vpack.c.b16 %v1887, %v1879
        %v2376 = vpack.c.b16 %v1896, %v1888
        %v2377 = vpack.c.b16 %v1897, %v1889
        %v2378 = vpack.c.b16 %v1898, %v1890
        %v2379 = vpack.c.b16 %v1899, %v1891
        %v2380 = vpack.c.b16 %v1900, %v1892
        %v2381 = vpack.c.b16 %v1901, %v1893
        %v2382 = vpack.c.b16 %v1902, %v1894
        %v2383 = vpack.c.b16 %v1903, %v1895
        %v2384 = vpack.c.b16 %v1912, %v1904
        %v2385 = vpack.c.b16 %v1913, %v1905
        %v2386 = vpack.c.b16 %v1914, %v1906
        %v2387 = vpack.c.b16 %v1915, %v1907
        %v2388 = vpack.c.b16 %v1916, %v1908
        %v2389 = vpack.c.b16 %v1917, %v1909
        %v2390 = vpack.c.b16 %v1918, %v1910
        %v2391 = vpack.c.b16 %v1919, %v1911
        %v2392 = vpack.c.b16 %v1928, %v1920
        %v2393 = vpack.c.b16 %v1929, %v1921
        %v2394 = vpack.c.b16 %v1930, %v1922
        %v2395 = vpack.c.b16 %v1931, %v1923
        %v2396 = vpack.c.b16 %v1932, %v1924
        %v2397 = vpack.c.b16 %v1933, %v1925
        %v2398 = vpack.c.b16 %v1934, %v1926
        %v2399 = vpack.c.b16 %v1935, %v1927
        %v2400 = vpack.c.b16 %v1944, %v1936
        %v2401 = vpack.c.b16 %v1945, %v1937
        %v2402 = vpack.c.b16 %v1946, %v1938
        %v2403 = vpack.c.b16 %v1947, %v1939
        %v2404 = vpack.c.b16 %v1948, %v1940
        %v2405 = vpack.c.b16 %v1949, %v1941
        %v2406 = vpack.c.b16 %v1950, %v1942
        %v2407 = vpack.c.b16 %v1951, %v1943
        %v2408 = vpack.c.b16 %v1960, %v1952
        %v2409 = vpack.c.b16 %v1961, %v1953
        %v2410 = vpack.c.b16 %v1962, %v1954
        %v2411 = vpack.c.b16 %v1963, %v1955
        %v2412 = vpack.c.b16 %v1964, %v1956
        %v2413 = vpack.c.b16 %v1965, %v1957
        %v2414 = vpack.c.b16 %v1966, %v1958
        %v2415 = vpack.c.b16 %v1967, %v1959
        %v2416 = vpack.c.b16 %v1976, %v1968
        %v2417 = vpack.c.b16 %v1977, %v1969
        %v2418 = vpack.c.b16 %v1978, %v1970
        %v2419 = vpack.c.b16 %v1979, %v1971
        %v2420 = vpack.c.b16 %v1980, %v1972
        %v2421 = vpack.c.b16 %v1981, %v1973
        %v2422 = vpack.c.b16 %v1982, %v1974
        %v2423 = vpack.c.b16 %v1983, %v1975
        %v2424 = vpack.c.b16 %v1992, %v1984
        %v2425 = vpack.c.b16 %v1993, %v1985
        %v2426 = vpack.c.b16 %v1994, %v1986
        %v2427 = vpack.c.b16 %v1995, %v1987
        %v2428 = vpack.c.b16 %v1996, %v1988
        %v2429 = vpack.c.b16 %v1997, %v1989
        %v2430 = vpack.c.b16 %v1998, %v1990
        %v2431 = vpack.c.b16 %v1999, %v1991
        %v2432 = vpack.c.b16 %v2008, %v2000
        %v2433 = vpack.c.b16 %v2009, %v2001
        %v2434 = vpack.c.b16 %v2010, %v2002
        %v2435 = vpack.c.b16 %v2011, %v2003
        %v2436 = vpack.c.b16 %v2012, %v2004
        %v2437 = vpack.c.b16 %v2013, %v2005
        %v2438 = vpack.c.b16 %v2014, %v2006
        %v2439 = vpack.c.b16 %v2015, %v2007
        %v2440 = vpack.c.b16 %v2024, %v2016
        %v2441 = vpack.c.b16 %v2025, %v2017
        %v2442 = vpack.c.b16 %v2026, %v2018
        %v2443 = vpack.c.b16 %v2027, %v2019
        %v2444 = vpack.c.b16 %v2028, %v2020
        %v2445 = vpack.c.b16 %v2029, %v2021
        %v2446 = vpack.c.b16 %v2030, %v2022
        %v2447 = vpack.c.b16 %v2031, %v2023
        %v2448 = vpack.c.b16 %v2040, %v2032
        %v2449 = vpack.c.b16 %v2041, %v2033
        %v2450 = vpack.c.b16 %v2042, %v2034
        %v2451 = vpack.c.b16 %v2043, %v2035
        %v2452 = vpack.c.b16 %v2044, %v2036
        %v2453 = vpack.c.b16 %v2045, %v2037
        %v2454 = vpack.c.b16 %v2046, %v2038
        %v2455 = vpack.c.b16 %v2047, %v2039
        %v2456 = vpack.c.b16 %v2056, %v2048
        %v2457 = vpack.c.b16 %v2057, %v2049
        %v2458 = vpack.c.b16 %v2058, %v2050
        %v2459 = vpack.c.b16 %v2059, %v2051
        %v2460 = vpack.c.b16 %v2060, %v2052
        %v2461 = vpack.c.b16 %v2061, %v2053
        %v2462 = vpack.c.b16 %v2062, %v2054
        %v2463 = vpack.c.b16 %v2063, %v2055
        %v2464 = vpack.c.b16 %v2072, %v2064
        %v2465 = vpack.c.b16 %v2073, %v2065
        %v2466 = vpack.c.b16 %v2074, %v2066
        %v2467 = vpack.c.b16 %v2075, %v2067
        %v2468 = vpack.c.b16 %v2076, %v2068
        %v2469 = vpack.c.b16 %v2077, %v2069
        %v2470 = vpack.c.b16 %v2078, %v2070
        %v2471 = vpack.c.b16 %v2079, %v2071
        %v2472 = vpack.c.b16 %v2088, %v2080
        %v2473 = vpack.c.b16 %v2089, %v2081
        %v2474 = vpack.c.b16 %v2090, %v2082
        %v2475 = vpack.c.b16 %v2091, %v2083
        %v2476 = vpack.c.b16 %v2092, %v2084
        %v2477 = vpack.c.b16 %v2093, %v2085
        %v2478 = vpack.c.b16 %v2094, %v2086
        %v2479 = vpack.c.b16 %v2095, %v2087
        %v2480 = vpack.c.b16 %v2104, %v2096
        %v2481 = vpack.c.b16 %v2105, %v2097
        %v2482 = vpack.c.b16 %v2106, %v2098
        %v2483 = vpack.c.b16 %v2107, %v2099
        %v2484 = vpack.c.b16 %v2108, %v2100
        %v2485 = vpack.c.b16 %v2109, %v2101
        %v2486 = vpack.c.b16 %v2110, %v2102
        %v2487 = vpack.c.b16 %v2111, %v2103
        %v2488 = vpack.c.b16 %v2120, %v2112
        %v2489 = vpack.c.b16 %v2121, %v2113
        %v2490 = vpack.c.b16 %v2122, %v2114
        %v2491 = vpack.c.b16 %v2123, %v2115
        %v2492 = vpack.c.b16 %v2124, %v2116
        %v2493 = vpack.c.b16 %v2125, %v2117
        %v2494 = vpack.c.b16 %v2126, %v2118
        %v2495 = vpack.c.b16 %v2127, %v2119
        %v2496 = vpack.c.b16 %v2136, %v2128
        %v2497 = vpack.c.b16 %v2137, %v2129
        %v2498 = vpack.c.b16 %v2138, %v2130
        %v2499 = vpack.c.b16 %v2139, %v2131
        %v2500 = vpack.c.b16 %v2140, %v2132
        %v2501 = vpack.c.b16 %v2141, %v2133
        %v2502 = vpack.c.b16 %v2142, %v2134
        %v2503 = vpack.c.b16 %v2143, %v2135
        %v2504 = vpack.c.b16 %v2152, %v2144
        %v2505 = vpack.c.b16 %v2153, %v2145
        %v2506 = vpack.c.b16 %v2154, %v2146
        %v2507 = vpack.c.b16 %v2155, %v2147
        %v2508 = vpack.c.b16 %v2156, %v2148
        %v2509 = vpack.c.b16 %v2157, %v2149
        %v2510 = vpack.c.b16 %v2158, %v2150
        %v2511 = vpack.c.b16 %v2159, %v2151
        %v2512 = vpack.c.b16 %v2168, %v2160
        %v2513 = vpack.c.b16 %v2169, %v2161
        %v2514 = vpack.c.b16 %v2170, %v2162
        %v2515 = vpack.c.b16 %v2171, %v2163
        %v2516 = vpack.c.b16 %v2172, %v2164
        %v2517 = vpack.c.b16 %v2173, %v2165
        %v2518 = vpack.c.b16 %v2174, %v2166
        %v2519 = vpack.c.b16 %v2175, %v2167
        %v2520 = vpack.c.b16 %v2184, %v2176
        %v2521 = vpack.c.b16 %v2185, %v2177
        %v2522 = vpack.c.b16 %v2186, %v2178
        %v2523 = vpack.c.b16 %v2187, %v2179
        %v2524 = vpack.c.b16 %v2188, %v2180
        %v2525 = vpack.c.b16 %v2189, %v2181
        %v2526 = vpack.c.b16 %v2190, %v2182
        %v2527 = vpack.c.b16 %v2191, %v2183
        %v2528 = vpack.c.b16 %v2200, %v2192
        %v2529 = vpack.c.b16 %v2201, %v2193
        %v2530 = vpack.c.b16 %v2202, %v2194
        %v2531 = vpack.c.b16 %v2203, %v2195
        %v2532 = vpack.c.b16 %v2204, %v2196
        %v2533 = vpack.c.b16 %v2205, %v2197
        %v2534 = vpack.c.b16 %v2206, %v2198
        %v2535 = vpack.c.b16 %v2207, %v2199
        %v2536 = vpack.c.b16 %v2216, %v2208
        %v2537 = vpack.c.b16 %v2217, %v2209
        %v2538 = vpack.c.b16 %v2218, %v2210
        %v2539 = vpack.c.b16 %v2219, %v2211
        %v2540 = vpack.c.b16 %v2220, %v2212
        %v2541 = vpack.c.b16 %v2221, %v2213
        %v2542 = vpack.c.b16 %v2222, %v2214
        %v2543 = vpack.c.b16 %v2223, %v2215
        %v2544 = vpack.c.b16 %v2232, %v2224
        %v2545 = vpack.c.b16 %v2233, %v2225
        %v2546 = vpack.c.b16 %v2234, %v2226
        %v2547 = vpack.c.b16 %v2235, %v2227
        %v2548 = vpack.c.b16 %v2236, %v2228
        %v2549 = vpack.c.b16 %v2237, %v2229
        %v2550 = vpack.c.b16 %v2238, %v2230
        %v2551 = vpack.c.b16 %v2239, %v2231
        %v2552 = vpack.c.b16 %v2248, %v2240
        %v2553 = vpack.c.b16 %v2249, %v2241
        %v2554 = vpack.c.b16 %v2250, %v2242
        %v2555 = vpack.c.b16 %v2251, %v2243
        %v2556 = vpack.c.b16 %v2252, %v2244
        %v2557 = vpack.c.b16 %v2253, %v2245
        %v2558 = vpack.c.b16 %v2254, %v2246
        %v2559 = vpack.c.b16 %v2255, %v2247
        %v2560 = vpack.c.b16 %v2264, %v2256
        %v2561 = vpack.c.b16 %v2265, %v2257
        %v2562 = vpack.c.b16 %v2266, %v2258
        %v2563 = vpack.c.b16 %v2267, %v2259
        %v2564 = vpack.c.b16 %v2268, %v2260
        %v2565 = vpack.c.b16 %v2269, %v2261
        %v2566 = vpack.c.b16 %v2270, %v2262
        %v2567 = vpack.c.b16 %v2271, %v2263
        %v2568 = vpack.c.b16 %v2280, %v2272
        %v2569 = vpack.c.b16 %v2281, %v2273
        %v2570 = vpack.c.b16 %v2282, %v2274
        %v2571 = vpack.c.b16 %v2283, %v2275
        %v2572 = vpack.c.b16 %v2284, %v2276
        %v2573 = vpack.c.b16 %v2285, %v2277
        %v2574 = vpack.c.b16 %v2286, %v2278
        %v2575 = vpack.c.b16 %v2287, %v2279
        %v2576 = vpack.c.b16 %v2296, %v2288
        %v2577 = vpack.c.b16 %v2297, %v2289
        %v2578 = vpack.c.b16 %v2298, %v2290
        %v2579 = vpack.c.b16 %v2299, %v2291
        %v2580 = vpack.c.b16 %v2300, %v2292
        %v2581 = vpack.c.b16 %v2301, %v2293
        %v2582 = vpack.c.b16 %v2302, %v2294
        %v2583 = vpack.c.b16 %v2303, %v2295
        %v2584 = vpack.c.b16 %v2312, %v2304
        %v2585 = vpack.c.b16 %v2313, %v2305
        %v2586 = vpack.c.b16 %v2314, %v2306
        %v2587 = vpack.c.b16 %v2315, %v2307
        %v2588 = vpack.c.b16 %v2316, %v2308
        %v2589 = vpack.c.b16 %v2317, %v2309
        %v2590 = vpack.c.b16 %v2318, %v2310
        %v2591 = vpack.c.b16 %v2319, %v2311
        %v2592 = vpack.c.b16 %v2328, %v2320
        %v2593 = vpack.c.b16 %v2329, %v2321
        %v2594 = vpack.c.b16 %v2330, %v2322
        %v2595 = vpack.c.b16 %v2331, %v2323
        %v2596 = vpack.c.b16 %v2332, %v2324
        %v2597 = vpack.c.b16 %v2333, %v2325
        %v2598 = vpack.c.b16 %v2334, %v2326
        %v2599 = vpack.c.b16 %v2335, %v2327
        %v2600 = vpack.c.b16 %v2344, %v2336
        %v2601 = vpack.c.b16 %v2345, %v2337
        %v2602 = vpack.c.b16 %v2346, %v2338
        %v2603 = vpack.c.b16 %v2347, %v2339
        %v2604 = vpack.c.b16 %v2348, %v2340
        %v2605 = vpack.c.b16 %v2349, %v2341
        %v2606 = vpack.c.b16 %v2350, %v2342
        %v2607 = vpack.c.b16 %v2351, %v2343
        %2864 = vmatprep.subr.bf16.mxu0 %v2353
        %2865 = vmatpush1.bf16.msra.mxu0 %v2352
        %2866 = vmatprep.subr.bf16.mxu0 %v2361
        %2867 = vmatpush1.bf16.msra.mxu0 %v2360
        %2868 = vmatprep.subr.bf16.mxu0 %v2369
        %2869 = vmatpush1.bf16.msra.mxu0 %v2368
        %2870 = vmatprep.subr.bf16.mxu0 %v2377
        %2871 = vmatpush1.bf16.msra.mxu0 %v2376
        %2872 = vmatprep.subr.bf16.mxu0 %v2385
        %2873 = vmatpush1.bf16.msra.mxu0 %v2384
        %2874 = vmatprep.subr.bf16.mxu0 %v2393
        %2875 = vmatpush1.bf16.msra.mxu0 %v2392
        %2876 = vmatprep.subr.bf16.mxu0 %v2401
        %2877 = vmatpush1.bf16.msra.mxu0 %v2400
        %2878 = vmatprep.subr.bf16.mxu0 %v2409
        %2879 = vmatpush1.bf16.msra.mxu0 %v2408
        %2880 = vmatprep.subr.bf16.mxu0 %v2417
        %2881 = vmatpush1.bf16.msra.mxu0 %v2416
        %2882 = vmatprep.subr.bf16.mxu0 %v2425
        %2883 = vmatpush1.bf16.msra.mxu0 %v2424
        %2884 = vmatprep.subr.bf16.mxu0 %v2433
        %2885 = vmatpush1.bf16.msra.mxu0 %v2432
        %2886 = vmatprep.subr.bf16.mxu0 %v2441
        %2887 = vmatpush1.bf16.msra.mxu0 %v2440
        %2888 = vmatprep.subr.bf16.mxu0 %v2449
        %2889 = vmatpush1.bf16.msra.mxu0 %v2448
        %2890 = vmatprep.subr.bf16.mxu0 %v2457
        %2891 = vmatpush1.bf16.msra.mxu0 %v2456
        %2892 = vmatprep.subr.bf16.mxu0 %v2465
        %2893 = vmatpush1.bf16.msra.mxu0 %v2464
        %2894 = vmatprep.subr.bf16.mxu0 %v2473
        %2895 = vmatpush1.bf16.msra.mxu0 %v2472
        %2896 = vmatprep.mubr.bf16.mxu0 %v1284
        %2897 = vmatmul.mubr.bf16.gmra.mrb[0].mxu0 %v1283
        %v2898 = vpop.f32.mrb[0].mxu0
        %v2899 = vadd.f32 %v1547, %v2898
        %v2900 = vpop.f32.mrb[0].mxu0
        %v2901 = vadd.f32 %v1551, %v2900
        %v2902 = vpop.f32.mrb[0].mxu0
        %v2903 = vpop.f32.mrb[0].mxu0
        %2904 = vdwg.mxu0
        %2905 = vmatprep.subr.bf16.mxu0 %v2481
        %2906 = vmatpush1.bf16.msra.mxu0 %v2480
        %2907 = vmatprep.subr.bf16.mxu0 %v2489
        %2908 = vmatpush1.bf16.msra.mxu0 %v2488
        %2909 = vmatprep.subr.bf16.mxu0 %v2497
        %2910 = vmatpush1.bf16.msra.mxu0 %v2496
        %2911 = vmatprep.subr.bf16.mxu0 %v2505
        %2912 = vmatpush1.bf16.msra.mxu0 %v2504
        %2913 = vmatprep.subr.bf16.mxu0 %v2513
        %2914 = vmatpush1.bf16.msra.mxu0 %v2512
        %2915 = vmatprep.subr.bf16.mxu0 %v2521
        %2916 = vmatpush1.bf16.msra.mxu0 %v2520
        %2917 = vmatprep.subr.bf16.mxu0 %v2529
        %2918 = vmatpush1.bf16.msra.mxu0 %v2528
        %2919 = vmatprep.subr.bf16.mxu0 %v2537
        %2920 = vmatpush1.bf16.msra.mxu0 %v2536
        %2921 = vmatprep.subr.bf16.mxu0 %v2545
        %2922 = vmatpush1.bf16.msra.mxu0 %v2544
        %2923 = vmatprep.subr.bf16.mxu0 %v2553
        %2924 = vmatpush1.bf16.msra.mxu0 %v2552
        %2925 = vmatprep.subr.bf16.mxu0 %v2561
        %2926 = vmatpush1.bf16.msra.mxu0 %v2560
        %2927 = vmatprep.subr.bf16.mxu0 %v2569
        %2928 = vmatpush1.bf16.msra.mxu0 %v2568
        %2929 = vmatprep.subr.bf16.mxu0 %v2577
        %2930 = vmatpush1.bf16.msra.mxu0 %v2576
        %2931 = vmatprep.subr.bf16.mxu0 %v2585
        %2932 = vmatpush1.bf16.msra.mxu0 %v2584
        %2933 = vmatprep.subr.bf16.mxu0 %v2593
        %2934 = vmatpush1.bf16.msra.mxu0 %v2592
        %2935 = vmatprep.subr.bf16.mxu0 %v2601
        %2936 = vmatpush1.bf16.msra.mxu0 %v2600
        %2937 = vmatprep.mubr.bf16.mxu0 %v1286
        %2938 = vmatmul.mubr.bf16.gmra.mrb[0].mxu0 %v1285
        %v2939 = vpop.f32.mrb[0].mxu0
        %v2940 = vadd.f32 %v2899, %v2939
        %v2941 = vpop.f32.mrb[0].mxu0
        %v2942 = vadd.f32 %v2901, %v2941
        %v2943 = vpop.f32.mrb[0].mxu0
        %v2944 = vpop.f32.mrb[0].mxu0
        %2945 = vdwg.mxu0
        %2946 = vmatprep.subr.bf16.mxu0 %v2355
        %2947 = vmatpush1.bf16.msra.mxu0 %v2354
        %2948 = vmatprep.subr.bf16.mxu0 %v2363
        %2949 = vmatpush1.bf16.msra.mxu0 %v2362
        %2950 = vmatprep.subr.bf16.mxu0 %v2371
        %2951 = vmatpush1.bf16.msra.mxu0 %v2370
        %2952 = vmatprep.subr.bf16.mxu0 %v2379
        %2953 = vmatpush1.bf16.msra.mxu0 %v2378
        %2954 = vmatprep.subr.bf16.mxu0 %v2387
        %2955 = vmatpush1.bf16.msra.mxu0 %v2386
        %2956 = vmatprep.subr.bf16.mxu0 %v2395
        %2957 = vmatpush1.bf16.msra.mxu0 %v2394
        %2958 = vmatprep.subr.bf16.mxu0 %v2403
        %2959 = vmatpush1.bf16.msra.mxu0 %v2402
        %2960 = vmatprep.subr.bf16.mxu0 %v2411
        %2961 = vmatpush1.bf16.msra.mxu0 %v2410
        %2962 = vmatprep.subr.bf16.mxu0 %v2419
        %2963 = vmatpush1.bf16.msra.mxu0 %v2418
        %2964 = vmatprep.subr.bf16.mxu0 %v2427
        %2965 = vmatpush1.bf16.msra.mxu0 %v2426
        %2966 = vmatprep.subr.bf16.mxu0 %v2435
        %2967 = vmatpush1.bf16.msra.mxu0 %v2434
        %2968 = vmatprep.subr.bf16.mxu0 %v2443
        %2969 = vmatpush1.bf16.msra.mxu0 %v2442
        %2970 = vmatprep.subr.bf16.mxu0 %v2451
        %2971 = vmatpush1.bf16.msra.mxu0 %v2450
        %2972 = vmatprep.subr.bf16.mxu0 %v2459
        %2973 = vmatpush1.bf16.msra.mxu0 %v2458
        %2974 = vmatprep.subr.bf16.mxu0 %v2467
        %2975 = vmatpush1.bf16.msra.mxu0 %v2466
        %2976 = vmatprep.subr.bf16.mxu0 %v2475
        %2977 = vmatpush1.bf16.msra.mxu0 %v2474
        %2978 = vmatprep.mubr.bf16.mxu0 %v1284
        %2979 = vmatmul.mubr.bf16.gmra.mrb[0].mxu0 %v1283
        %v2980 = vpop.f32.mrb[0].mxu0
        %v2981 = vadd.f32 %v1555, %v2980
        %v2982 = vpop.f32.mrb[0].mxu0
        %v2983 = vadd.f32 %v1559, %v2982
        %v2984 = vpop.f32.mrb[0].mxu0
        %v2985 = vpop.f32.mrb[0].mxu0
        %2986 = vdwg.mxu0
        %2987 = vmatprep.subr.bf16.mxu0 %v2483
        %2988 = vmatpush1.bf16.msra.mxu0 %v2482
        %2989 = vmatprep.subr.bf16.mxu0 %v2491
        %2990 = vmatpush1.bf16.msra.mxu0 %v2490
        %2991 = vmatprep.subr.bf16.mxu0 %v2499
        %2992 = vmatpush1.bf16.msra.mxu0 %v2498
        %2993 = vmatprep.subr.bf16.mxu0 %v2507
        %2994 = vmatpush1.bf16.msra.mxu0 %v2506
        %2995 = vmatprep.subr.bf16.mxu0 %v2515
        %2996 = vmatpush1.bf16.msra.mxu0 %v2514
        %2997 = vmatprep.subr.bf16.mxu0 %v2523
        %2998 = vmatpush1.bf16.msra.mxu0 %v2522
        %2999 = vmatprep.subr.bf16.mxu0 %v2531
        %3000 = vmatpush1.bf16.msra.mxu0 %v2530
        %3001 = vmatprep.subr.bf16.mxu0 %v2539
        %3002 = vmatpush1.bf16.msra.mxu0 %v2538
        %3003 = vmatprep.subr.bf16.mxu0 %v2547
        %3004 = vmatpush1.bf16.msra.mxu0 %v2546
        %3005 = vmatprep.subr.bf16.mxu0 %v2555
        %3006 = vmatpush1.bf16.msra.mxu0 %v2554
        %3007 = vmatprep.subr.bf16.mxu0 %v2563
        %3008 = vmatpush1.bf16.msra.mxu0 %v2562
        %3009 = vmatprep.subr.bf16.mxu0 %v2571
        %3010 = vmatpush1.bf16.msra.mxu0 %v2570
        %3011 = vmatprep.subr.bf16.mxu0 %v2579
        %3012 = vmatpush1.bf16.msra.mxu0 %v2578
        %3013 = vmatprep.subr.bf16.mxu0 %v2587
        %3014 = vmatpush1.bf16.msra.mxu0 %v2586
        %3015 = vmatprep.subr.bf16.mxu0 %v2595
        %3016 = vmatpush1.bf16.msra.mxu0 %v2594
        %3017 = vmatprep.subr.bf16.mxu0 %v2603
        %3018 = vmatpush1.bf16.msra.mxu0 %v2602
        %3019 = vmatprep.mubr.bf16.mxu0 %v1286
        %3020 = vmatmul.mubr.bf16.gmra.mrb[0].mxu0 %v1285
        %v3021 = vpop.f32.mrb[0].mxu0
        %v3022 = vadd.f32 %v2981, %v3021
        %v3023 = vpop.f32.mrb[0].mxu0
        %v3024 = vadd.f32 %v2983, %v3023
        %v3025 = vpop.f32.mrb[0].mxu0
        %v3026 = vpop.f32.mrb[0].mxu0
        %3027 = vdwg.mxu0
        %3028 = vmatprep.subr.bf16.mxu0 %v2357
        %3029 = vmatpush1.bf16.msra.mxu0 %v2356
        %3030 = vmatprep.subr.bf16.mxu0 %v2365
        %3031 = vmatpush1.bf16.msra.mxu0 %v2364
        %3032 = vmatprep.subr.bf16.mxu0 %v2373
        %3033 = vmatpush1.bf16.msra.mxu0 %v2372
        %3034 = vmatprep.subr.bf16.mxu0 %v2381
        %3035 = vmatpush1.bf16.msra.mxu0 %v2380
        %3036 = vmatprep.subr.bf16.mxu0 %v2389
        %3037 = vmatpush1.bf16.msra.mxu0 %v2388
        %3038 = vmatprep.subr.bf16.mxu0 %v2397
        %3039 = vmatpush1.bf16.msra.mxu0 %v2396
        %3040 = vmatprep.subr.bf16.mxu0 %v2405
        %3041 = vmatpush1.bf16.msra.mxu0 %v2404
        %3042 = vmatprep.subr.bf16.mxu0 %v2413
        %3043 = vmatpush1.bf16.msra.mxu0 %v2412
        %3044 = vmatprep.subr.bf16.mxu0 %v2421
        %3045 = vmatpush1.bf16.msra.mxu0 %v2420
        %3046 = vmatprep.subr.bf16.mxu0 %v2429
        %3047 = vmatpush1.bf16.msra.mxu0 %v2428
        %3048 = vmatprep.subr.bf16.mxu0 %v2437
        %3049 = vmatpush1.bf16.msra.mxu0 %v2436
        %3050 = vmatprep.subr.bf16.mxu0 %v2445
        %3051 = vmatpush1.bf16.msra.mxu0 %v2444
        %3052 = vmatprep.subr.bf16.mxu0 %v2453
        %3053 = vmatpush1.bf16.msra.mxu0 %v2452
        %3054 = vmatprep.subr.bf16.mxu0 %v2461
        %3055 = vmatpush1.bf16.msra.mxu0 %v2460
        %3056 = vmatprep.subr.bf16.mxu0 %v2469
        %3057 = vmatpush1.bf16.msra.mxu0 %v2468
        %3058 = vmatprep.subr.bf16.mxu0 %v2477
        %3059 = vmatpush1.bf16.msra.mxu0 %v2476
        %3060 = vmatprep.mubr.bf16.mxu0 %v1284
        %3061 = vmatmul.mubr.bf16.gmra.mrb[0].mxu0 %v1283
        %v3062 = vpop.f32.mrb[0].mxu0
        %v3063 = vadd.f32 %v1563, %v3062
        %v3064 = vpop.f32.mrb[0].mxu0
        %v3065 = vadd.f32 %v1567, %v3064
        %v3066 = vpop.f32.mrb[0].mxu0
        %v3067 = vpop.f32.mrb[0].mxu0
        %3068 = vdwg.mxu0
        %3069 = vmatprep.subr.bf16.mxu0 %v2485
        %3070 = vmatpush1.bf16.msra.mxu0 %v2484
        %3071 = vmatprep.subr.bf16.mxu0 %v2493
        %3072 = vmatpush1.bf16.msra.mxu0 %v2492
        %3073 = vmatprep.subr.bf16.mxu0 %v2501
        %3074 = vmatpush1.bf16.msra.mxu0 %v2500
        %3075 = vmatprep.subr.bf16.mxu0 %v2509
        %3076 = vmatpush1.bf16.msra.mxu0 %v2508
        %3077 = vmatprep.subr.bf16.mxu0 %v2517
        %3078 = vmatpush1.bf16.msra.mxu0 %v2516
        %3079 = vmatprep.subr.bf16.mxu0 %v2525
        %3080 = vmatpush1.bf16.msra.mxu0 %v2524
        %3081 = vmatprep.subr.bf16.mxu0 %v2533
        %3082 = vmatpush1.bf16.msra.mxu0 %v2532
        %3083 = vmatprep.subr.bf16.mxu0 %v2541
        %3084 = vmatpush1.bf16.msra.mxu0 %v2540
        %3085 = vmatprep.subr.bf16.mxu0 %v2549
        %3086 = vmatpush1.bf16.msra.mxu0 %v2548
        %3087 = vmatprep.subr.bf16.mxu0 %v2557
        %3088 = vmatpush1.bf16.msra.mxu0 %v2556
        %3089 = vmatprep.subr.bf16.mxu0 %v2565
        %3090 = vmatpush1.bf16.msra.mxu0 %v2564
        %3091 = vmatprep.subr.bf16.mxu0 %v2573
        %3092 = vmatpush1.bf16.msra.mxu0 %v2572
        %3093 = vmatprep.subr.bf16.mxu0 %v2581
        %3094 = vmatpush1.bf16.msra.mxu0 %v2580
        %3095 = vmatprep.subr.bf16.mxu0 %v2589
        %3096 = vmatpush1.bf16.msra.mxu0 %v2588
        %3097 = vmatprep.subr.bf16.mxu0 %v2597
        %3098 = vmatpush1.bf16.msra.mxu0 %v2596
        %3099 = vmatprep.subr.bf16.mxu0 %v2605
        %3100 = vmatpush1.bf16.msra.mxu0 %v2604
        %3101 = vmatprep.mubr.bf16.mxu0 %v1286
        %3102 = vmatmul.mubr.bf16.gmra.mrb[0].mxu0 %v1285
        %v3103 = vpop.f32.mrb[0].mxu0
        %v3104 = vadd.f32 %v3063, %v3103
        %v3105 = vpop.f32.mrb[0].mxu0
        %v3106 = vadd.f32 %v3065, %v3105
        %v3107 = vpop.f32.mrb[0].mxu0
        %v3108 = vpop.f32.mrb[0].mxu0
        %3109 = vdwg.mxu0
        %3110 = vmatprep.subr.bf16.mxu0 %v2359
        %3111 = vmatpush1.bf16.msra.mxu0 %v2358
        %3112 = vmatprep.subr.bf16.mxu0 %v2367
        %3113 = vmatpush1.bf16.msra.mxu0 %v2366
        %3114 = vmatprep.subr.bf16.mxu0 %v2375
        %3115 = vmatpush1.bf16.msra.mxu0 %v2374
        %3116 = vmatprep.subr.bf16.mxu0 %v2383
        %3117 = vmatpush1.bf16.msra.mxu0 %v2382
        %3118 = vmatprep.subr.bf16.mxu0 %v2391
        %3119 = vmatpush1.bf16.msra.mxu0 %v2390
        %3120 = vmatprep.subr.bf16.mxu0 %v2399
        %3121 = vmatpush1.bf16.msra.mxu0 %v2398
        %3122 = vmatprep.subr.bf16.mxu0 %v2407
        %3123 = vmatpush1.bf16.msra.mxu0 %v2406
        %3124 = vmatprep.subr.bf16.mxu0 %v2415
        %3125 = vmatpush1.bf16.msra.mxu0 %v2414
        %3126 = vmatprep.subr.bf16.mxu0 %v2423
        %3127 = vmatpush1.bf16.msra.mxu0 %v2422
        %3128 = vmatprep.subr.bf16.mxu0 %v2431
        %3129 = vmatpush1.bf16.msra.mxu0 %v2430
        %3130 = vmatprep.subr.bf16.mxu0 %v2439
        %3131 = vmatpush1.bf16.msra.mxu0 %v2438
        %3132 = vmatprep.subr.bf16.mxu0 %v2447
        %3133 = vmatpush1.bf16.msra.mxu0 %v2446
        %3134 = vmatprep.subr.bf16.mxu0 %v2455
        %3135 = vmatpush1.bf16.msra.mxu0 %v2454
        %3136 = vmatprep.subr.bf16.mxu0 %v2463
        %3137 = vmatpush1.bf16.msra.mxu0 %v2462
        %3138 = vmatprep.subr.bf16.mxu0 %v2471
        %3139 = vmatpush1.bf16.msra.mxu0 %v2470
        %3140 = vmatprep.subr.bf16.mxu0 %v2479
        %3141 = vmatpush1.bf16.msra.mxu0 %v2478
        %3142 = vmatprep.mubr.bf16.mxu0 %v1284
        %3143 = vmatmul.mubr.bf16.gmra.mrb[0].mxu0 %v1283
        %v3144 = vpop.f32.mrb[0].mxu0
        %v3145 = vadd.f32 %v1571, %v3144
        %v3146 = vpop.f32.mrb[0].mxu0
        %v3147 = vadd.f32 %v1575, %v3146
        %v3148 = vpop.f32.mrb[0].mxu0
        %v3149 = vpop.f32.mrb[0].mxu0
        %3150 = vdwg.mxu0
        %3151 = vmatprep.subr.bf16.mxu0 %v2487
        %3152 = vmatpush1.bf16.msra.mxu0 %v2486
        %3153 = vmatprep.subr.bf16.mxu0 %v2495
        %3154 = vmatpush1.bf16.msra.mxu0 %v2494
        %3155 = vmatprep.subr.bf16.mxu0 %v2503
        %3156 = vmatpush1.bf16.msra.mxu0 %v2502
        %3157 = vmatprep.subr.bf16.mxu0 %v2511
        %3158 = vmatpush1.bf16.msra.mxu0 %v2510
        %3159 = vmatprep.subr.bf16.mxu0 %v2519
        %3160 = vmatpush1.bf16.msra.mxu0 %v2518
        %3161 = vmatprep.subr.bf16.mxu0 %v2527
        %3162 = vmatpush1.bf16.msra.mxu0 %v2526
        %3163 = vmatprep.subr.bf16.mxu0 %v2535
        %3164 = vmatpush1.bf16.msra.mxu0 %v2534
        %3165 = vmatprep.subr.bf16.mxu0 %v2543
        %3166 = vmatpush1.bf16.msra.mxu0 %v2542
        %3167 = vmatprep.subr.bf16.mxu0 %v2551
        %3168 = vmatpush1.bf16.msra.mxu0 %v2550
        %3169 = vmatprep.subr.bf16.mxu0 %v2559
        %3170 = vmatpush1.bf16.msra.mxu0 %v2558
        %3171 = vmatprep.subr.bf16.mxu0 %v2567
        %3172 = vmatpush1.bf16.msra.mxu0 %v2566
        %3173 = vmatprep.subr.bf16.mxu0 %v2575
        %3174 = vmatpush1.bf16.msra.mxu0 %v2574
        %3175 = vmatprep.subr.bf16.mxu0 %v2583
        %3176 = vmatpush1.bf16.msra.mxu0 %v2582
        %3177 = vmatprep.subr.bf16.mxu0 %v2591
        %3178 = vmatpush1.bf16.msra.mxu0 %v2590
        %3179 = vmatprep.subr.bf16.mxu0 %v2599
        %3180 = vmatpush1.bf16.msra.mxu0 %v2598
        %3181 = vmatprep.subr.bf16.mxu0 %v2607
        %3182 = vmatpush1.bf16.msra.mxu0 %v2606
        %3183 = vmatprep.mubr.bf16.mxu0 %v1286
        %3184 = vmatmul.mubr.bf16.gmra.mrb[0].mxu0 %v1285
        %v3185 = vpop.f32.mrb[0].mxu0
        %v3186 = vadd.f32 %v3145, %v3185
        %v3187 = vpop.f32.mrb[0].mxu0
        %v3188 = vadd.f32 %v3147, %v3187
        %v3189 = vpop.f32.mrb[0].mxu0
        %v3190 = vpop.f32.mrb[0].mxu0
        %3191 = vdwg.mxu0
        %v3192 = vsel %vm652, %v2940, 0.0
        %v3193 = vrot.slane %v3192, 4
        %v3194 = vadd.f32 %v3192, %v3193
        %v3195 = vrot.slane %v3194, 2
        %v3196 = vadd.f32 %v3194, %v3195
        %v3197 = vrot.slane %v3196, 1
        %v3198 = vadd.f32 %v3196, %v3197
        %v3199 = vsel %vm652, %v2942, 0.0
        %v3200 = vrot.slane %v3199, 4
        %v3201 = vadd.f32 %v3199, %v3200
        %v3202 = vrot.slane %v3201, 2
        %v3203 = vadd.f32 %v3201, %v3202
        %v3204 = vrot.slane %v3203, 1
        %v3205 = vadd.f32 %v3203, %v3204
        %v3206 = vsel %vm652, %v3022, 0.0
        %v3207 = vrot.slane %v3206, 4
        %v3208 = vadd.f32 %v3206, %v3207
        %v3209 = vrot.slane %v3208, 2
        %v3210 = vadd.f32 %v3208, %v3209
        %v3211 = vrot.slane %v3210, 1
        %v3212 = vadd.f32 %v3210, %v3211
        %v3213 = vsel %vm652, %v3024, 0.0
        %v3214 = vrot.slane %v3213, 4
        %v3215 = vadd.f32 %v3213, %v3214
        %v3216 = vrot.slane %v3215, 2
        %v3217 = vadd.f32 %v3215, %v3216
        %v3218 = vrot.slane %v3217, 1
        %v3219 = vadd.f32 %v3217, %v3218
        %v3220 = vsel %vm652, %v3104, 0.0
        %v3221 = vrot.slane %v3220, 4
        %v3222 = vadd.f32 %v3220, %v3221
        %v3223 = vrot.slane %v3222, 2
        %v3224 = vadd.f32 %v3222, %v3223
        %v3225 = vrot.slane %v3224, 1
        %v3226 = vadd.f32 %v3224, %v3225
        %v3227 = vsel %vm652, %v3106, 0.0
        %v3228 = vrot.slane %v3227, 4
        %v3229 = vadd.f32 %v3227, %v3228
        %v3230 = vrot.slane %v3229, 2
        %v3231 = vadd.f32 %v3229, %v3230
        %v3232 = vrot.slane %v3231, 1
        %v3233 = vadd.f32 %v3231, %v3232
        %v3234 = vsel %vm652, %v3186, 0.0
        %v3235 = vrot.slane %v3234, 4
        %v3236 = vadd.f32 %v3234, %v3235
        %v3237 = vrot.slane %v3236, 2
        %v3238 = vadd.f32 %v3236, %v3237
        %v3239 = vrot.slane %v3238, 1
        %v3240 = vadd.f32 %v3238, %v3239
        %v3241 = vsel %vm652, %v3188, 0.0
        %v3242 = vrot.slane %v3241, 4
        %v3243 = vadd.f32 %v3241, %v3242
        %v3244 = vrot.slane %v3243, 2
        %v3245 = vadd.f32 %v3243, %v3244
        %v3246 = vrot.slane %v3245, 1
        %v3247 = vadd.f32 %v3245, %v3246
        %v3248 = vmul.f32 %v3198, %v667
        %v3249 = vmul.f32 %v3205, %v667
        %v3250 = vmul.f32 %v3212, %v667
        %v3251 = vmul.f32 %v3219, %v667
        %v3252 = vmul.f32 %v3226, %v667
        %v3253 = vmul.f32 %v3233, %v667
        %v3254 = vmul.f32 %v3240, %v667
        %v3255 = vmul.f32 %v3247, %v667
        %v3256 = vsub.f32 %v2940, %v3248
        %v3257 = vsub.f32 %v2942, %v3249
        %v3258 = vsub.f32 %v3022, %v3250
        %v3259 = vsub.f32 %v3024, %v3251
        %v3260 = vsub.f32 %v3104, %v3252
        %v3261 = vsub.f32 %v3106, %v3253
        %v3262 = vsub.f32 %v3186, %v3254
        %v3263 = vsub.f32 %v3188, %v3255
        %v3264 = vmul.f32 %v3256, %v3256
        %v3265 = vmul.f32 %v3257, %v3257
        %v3266 = vmul.f32 %v3258, %v3258
        %v3267 = vmul.f32 %v3259, %v3259
        %v3268 = vmul.f32 %v3260, %v3260
        %v3269 = vmul.f32 %v3261, %v3261
        %v3270 = vmul.f32 %v3262, %v3262
        %v3271 = vmul.f32 %v3263, %v3263
        %v3272 = vsel %vm652, %v3264, 0.0
        %v3273 = vrot.slane %v3272, 4
        %v3274 = vadd.f32 %v3272, %v3273
        %v3275 = vrot.slane %v3274, 2
        %v3276 = vadd.f32 %v3274, %v3275
        %v3277 = vrot.slane %v3276, 1
        %v3278 = vadd.f32 %v3276, %v3277
        %v3279 = vsel %vm652, %v3265, 0.0
        %v3280 = vrot.slane %v3279, 4
        %v3281 = vadd.f32 %v3279, %v3280
        %v3282 = vrot.slane %v3281, 2
        %v3283 = vadd.f32 %v3281, %v3282
        %v3284 = vrot.slane %v3283, 1
        %v3285 = vadd.f32 %v3283, %v3284
        %v3286 = vsel %vm652, %v3266, 0.0
        %v3287 = vrot.slane %v3286, 4
        %v3288 = vadd.f32 %v3286, %v3287
        %v3289 = vrot.slane %v3288, 2
        %v3290 = vadd.f32 %v3288, %v3289
        %v3291 = vrot.slane %v3290, 1
        %v3292 = vadd.f32 %v3290, %v3291
        %v3293 = vsel %vm652, %v3267, 0.0
        %v3294 = vrot.slane %v3293, 4
        %v3295 = vadd.f32 %v3293, %v3294
        %v3296 = vrot.slane %v3295, 2
        %v3297 = vadd.f32 %v3295, %v3296
        %v3298 = vrot.slane %v3297, 1
        %v3299 = vadd.f32 %v3297, %v3298
        %v3300 = vsel %vm652, %v3268, 0.0
        %v3301 = vrot.slane %v3300, 4
        %v3302 = vadd.f32 %v3300, %v3301
        %v3303 = vrot.slane %v3302, 2
        %v3304 = vadd.f32 %v3302, %v3303
        %v3305 = vrot.slane %v3304, 1
        %v3306 = vadd.f32 %v3304, %v3305
        %v3307 = vsel %vm652, %v3269, 0.0
        %v3308 = vrot.slane %v3307, 4
        %v3309 = vadd.f32 %v3307, %v3308
        %v3310 = vrot.slane %v3309, 2
        %v3311 = vadd.f32 %v3309, %v3310
        %v3312 = vrot.slane %v3311, 1
        %v3313 = vadd.f32 %v3311, %v3312
        %v3314 = vsel %vm652, %v3270, 0.0
        %v3315 = vrot.slane %v3314, 4
        %v3316 = vadd.f32 %v3314, %v3315
        %v3317 = vrot.slane %v3316, 2
        %v3318 = vadd.f32 %v3316, %v3317
        %v3319 = vrot.slane %v3318, 1
        %v3320 = vadd.f32 %v3318, %v3319
        %v3321 = vsel %vm652, %v3271, 0.0
        %v3322 = vrot.slane %v3321, 4
        %v3323 = vadd.f32 %v3321, %v3322
        %v3324 = vrot.slane %v3323, 2
        %v3325 = vadd.f32 %v3323, %v3324
        %v3326 = vrot.slane %v3325, 1
        %v3327 = vadd.f32 %v3325, %v3326
        %v3328 = vmul.f32 %v3278, %v667
        %v3329 = vmul.f32 %v3285, %v667
        %v3330 = vmul.f32 %v3292, %v667
        %v3331 = vmul.f32 %v3299, %v667
        %v3332 = vmul.f32 %v3306, %v667
        %v3333 = vmul.f32 %v3313, %v667
        %v3334 = vmul.f32 %v3320, %v667
        %v3335 = vmul.f32 %v3327, %v667
        %v3336 = vadd.f32 %v3328, 0.8
        %v3337 = vadd.f32 %v3329, 0.8
        %v3338 = vadd.f32 %v3330, 0.8
        %v3339 = vadd.f32 %v3331, 0.8
        %v3340 = vadd.f32 %v3332, 0.8
        %v3341 = vadd.f32 %v3333, 0.8
        %v3342 = vadd.f32 %v3334, 0.8
        %v3343 = vadd.f32 %v3335, 0.8
        %v3344 = vrsqrt.pop %v3336
        %v3345 = vrsqrt.pop %v3337
        %v3346 = vrsqrt.pop %v3338
        %v3347 = vrsqrt.pop %v3339
        %v3348 = vrsqrt.pop %v3340
        %v3349 = vrsqrt.pop %v3341
        %v3350 = vrsqrt.pop %v3342
        %v3351 = vrsqrt.pop %v3343
        %v3352 = vmul.f32 %v3256, %v3344
        %v3353 = vmul.f32 %v3257, %v3345
        %v3354 = vmul.f32 %v3258, %v3346
        %v3355 = vmul.f32 %v3259, %v3347
        %v3356 = vmul.f32 %v3260, %v3348
        %v3357 = vmul.f32 %v3261, %v3349
        %v3358 = vmul.f32 %v3262, %v3350
        %v3359 = vmul.f32 %v3263, %v3351
        %v3360 = vmul.f32 %v3352, 0.2
        %v3361 = vmul.f32 %v3353, 0.2
        %v3362 = vmul.f32 %v3354, 0.2
        %v3363 = vmul.f32 %v3355, 0.2
        %v3364 = vmul.f32 %v3356, 0.2
        %v3365 = vmul.f32 %v3357, 0.2
        %v3366 = vmul.f32 %v3358, 0.2
        %v3367 = vmul.f32 %v3359, 0.2
        %v3368 = vmax.f32 %v3352, %v3360
        %v3369 = vmax.f32 %v3353, %v3361
        %v3370 = vmax.f32 %v3354, %v3362
        %v3371 = vmax.f32 %v3355, %v3363
        %v3372 = vmax.f32 %v3356, %v3364
        %v3373 = vmax.f32 %v3357, %v3365
        %v3374 = vmax.f32 %v3358, %v3366
        %v3375 = vmax.f32 %v3359, %v3367
        %v3376 = vld [vmem:[%s400] sm:$0x3]
        %v3377 = vpack.c.bf16 %v3368, %v3368
        %v3378 = vpack.c.bf16 %v3369, %v3369
        %v3379 = vpack.c.bf16 %v3370, %v3370
        %v3380 = vpack.c.bf16 %v3371, %v3371
        %v3381 = vpack.c.bf16 %v3372, %v3372
        %v3382 = vpack.c.bf16 %v3373, %v3373
        %v3383 = vpack.c.bf16 %v3374, %v3374
        %v3384 = vpack.c.bf16 %v3375, %v3375
        %v3385 = vld [vmem:[%s391] sm:$0xff]
        %v3386 = vld [vmem:[%s391 + $0x8] sm:$0xff]
        %v3387 = vld [vmem:[%s391 + $0x10] sm:$0xff]
        %v3388 = vld [vmem:[%s391 + $0x18] sm:$0xff]
        %v3389 = vld [vmem:[%s391 + $0x20] sm:$0xff]
        %v3390 = vld [vmem:[%s391 + $0x28] sm:$0xff]
        %v3391 = vld [vmem:[%s391 + $0x30] sm:$0xff]
        %v3392 = vld [vmem:[%s391 + $0x38] sm:$0xff]
        %v3393 = vld [vmem:[%s391 + $0x40] sm:$0xff]
        %v3394 = vld [vmem:[%s391 + $0x48] sm:$0xff]
        %v3395 = vld [vmem:[%s391 + $0x50] sm:$0xff]
        %v3396 = vld [vmem:[%s391 + $0x58] sm:$0xff]
        %v3397 = vld [vmem:[%s391 + $0x60] sm:$0xff]
        %v3398 = vld [vmem:[%s391 + $0x68] sm:$0xff]
        %v3399 = vld [vmem:[%s391 + $0x70] sm:$0xff]
        %v3400 = vld [vmem:[%s391 + $0x78] sm:$0xff]
        %v3401 = vld [vmem:[%s391 + $0x80] sm:$0xff]
        %v3402 = vld [vmem:[%s391 + $0x88] sm:$0xff]
        %v3403 = vld [vmem:[%s391 + $0x90] sm:$0xff]
        %v3404 = vld [vmem:[%s391 + $0x98] sm:$0xff]
        %v3405 = vld [vmem:[%s391 + $0xa0] sm:$0xff]
        %v3406 = vld [vmem:[%s391 + $0xa8] sm:$0xff]
        %v3407 = vld [vmem:[%s391 + $0xb0] sm:$0xff]
        %v3408 = vld [vmem:[%s391 + $0xb8] sm:$0xff]
        %v3409 = vld [vmem:[%s391 + $0xc0] sm:$0xff]
        %v3410 = vld [vmem:[%s391 + $0xc8] sm:$0xff]
        %v3411 = vld [vmem:[%s391 + $0xd0] sm:$0xff]
        %v3412 = vld [vmem:[%s391 + $0xd8] sm:$0xff]
        %v3413 = vld [vmem:[%s391 + $0xe0] sm:$0xff]
        %v3414 = vld [vmem:[%s391 + $0xe8] sm:$0xff]
        %v3415 = vld [vmem:[%s391 + $0xf0] sm:$0xff]
        %v3416 = vld [vmem:[%s391 + $0xf8] sm:$0xff]
        %v3417 = vld [vmem:[%s391 + $0x100] sm:$0xff]
        %v3418 = vld [vmem:[%s391 + $0x108] sm:$0xff]
        %v3419 = vld [vmem:[%s391 + $0x110] sm:$0xff]
        %v3420 = vld [vmem:[%s391 + $0x118] sm:$0xff]
        %v3421 = vld [vmem:[%s391 + $0x120] sm:$0xff]
        %v3422 = vld [vmem:[%s391 + $0x128] sm:$0xff]
        %v3423 = vld [vmem:[%s391 + $0x130] sm:$0xff]
        %v3424 = vld [vmem:[%s391 + $0x138] sm:$0xff]
        %v3425 = vld [vmem:[%s391 + $0x140] sm:$0xff]
        %v3426 = vld [vmem:[%s391 + $0x148] sm:$0xff]
        %v3427 = vld [vmem:[%s391 + $0x150] sm:$0xff]
        %v3428 = vld [vmem:[%s391 + $0x158] sm:$0xff]
        %v3429 = vld [vmem:[%s391 + $0x160] sm:$0xff]
        %v3430 = vld [vmem:[%s391 + $0x168] sm:$0xff]
        %v3431 = vld [vmem:[%s391 + $0x170] sm:$0xff]
        %v3432 = vld [vmem:[%s391 + $0x178] sm:$0xff]
        %v3433 = vld [vmem:[%s391 + $0x180] sm:$0xff]
        %v3434 = vld [vmem:[%s391 + $0x188] sm:$0xff]
        %v3435 = vld [vmem:[%s391 + $0x190] sm:$0xff]
        %v3436 = vld [vmem:[%s391 + $0x198] sm:$0xff]
        %v3437 = vld [vmem:[%s391 + $0x1a0] sm:$0xff]
        %v3438 = vld [vmem:[%s391 + $0x1a8] sm:$0xff]
        %v3439 = vld [vmem:[%s391 + $0x1b0] sm:$0xff]
        %v3440 = vld [vmem:[%s391 + $0x1b8] sm:$0xff]
        %v3441 = vld [vmem:[%s391 + $0x1c0] sm:$0xff]
        %v3442 = vld [vmem:[%s391 + $0x1c8] sm:$0xff]
        %v3443 = vld [vmem:[%s391 + $0x1d0] sm:$0xff]
        %v3444 = vld [vmem:[%s391 + $0x1d8] sm:$0xff]
        %v3445 = vld [vmem:[%s391 + $0x1e0] sm:$0xff]
        %v3446 = vld [vmem:[%s391 + $0x1e8] sm:$0xff]
        %v3447 = vld [vmem:[%s391 + $0x1f0] sm:$0xff]
        %v3448 = vld [vmem:[%s391 + $0x1f8] sm:$0xff]
        %v3449 = vld [vmem:[%s391 + $0x200] sm:$0xff]
        %v3450 = vld [vmem:[%s391 + $0x208] sm:$0xff]
        %v3451 = vld [vmem:[%s391 + $0x210] sm:$0xff]
        %v3452 = vld [vmem:[%s391 + $0x218] sm:$0xff]
        %v3453 = vld [vmem:[%s391 + $0x220] sm:$0xff]
        %v3454 = vld [vmem:[%s391 + $0x228] sm:$0xff]
        %v3455 = vld [vmem:[%s391 + $0x230] sm:$0xff]
        %v3456 = vld [vmem:[%s391 + $0x238] sm:$0xff]
        %v3457 = vld [vmem:[%s391 + $0x240] sm:$0xff]
        %v3458 = vld [vmem:[%s391 + $0x248] sm:$0xff]
        %v3459 = vld [vmem:[%s391 + $0x250] sm:$0xff]
        %v3460 = vld [vmem:[%s391 + $0x258] sm:$0xff]
        %v3461 = vld [vmem:[%s391 + $0x260] sm:$0xff]
        %v3462 = vld [vmem:[%s391 + $0x268] sm:$0xff]
        %v3463 = vld [vmem:[%s391 + $0x270] sm:$0xff]
        %v3464 = vld [vmem:[%s391 + $0x278] sm:$0xff]
        %v3465 = vld [vmem:[%s391 + $0x280] sm:$0xff]
        %v3466 = vld [vmem:[%s391 + $0x288] sm:$0xff]
        %v3467 = vld [vmem:[%s391 + $0x290] sm:$0xff]
        %v3468 = vld [vmem:[%s391 + $0x298] sm:$0xff]
        %v3469 = vld [vmem:[%s391 + $0x2a0] sm:$0xff]
        %v3470 = vld [vmem:[%s391 + $0x2a8] sm:$0xff]
        %v3471 = vld [vmem:[%s391 + $0x2b0] sm:$0xff]
        %v3472 = vld [vmem:[%s391 + $0x2b8] sm:$0xff]
        %v3473 = vld [vmem:[%s391 + $0x2c0] sm:$0xff]
        %v3474 = vld [vmem:[%s391 + $0x2c8] sm:$0xff]
        %v3475 = vld [vmem:[%s391 + $0x2d0] sm:$0xff]
        %v3476 = vld [vmem:[%s391 + $0x2d8] sm:$0xff]
        %v3477 = vld [vmem:[%s391 + $0x2e0] sm:$0xff]
        %v3478 = vld [vmem:[%s391 + $0x2e8] sm:$0xff]
        %v3479 = vld [vmem:[%s391 + $0x2f0] sm:$0xff]
        %v3480 = vld [vmem:[%s391 + $0x2f8] sm:$0xff]
        %v3481 = vld [vmem:[%s391 + $0x300] sm:$0xff]
        %v3482 = vld [vmem:[%s391 + $0x308] sm:$0xff]
        %v3483 = vld [vmem:[%s391 + $0x310] sm:$0xff]
        %v3484 = vld [vmem:[%s391 + $0x318] sm:$0xff]
        %v3485 = vld [vmem:[%s391 + $0x320] sm:$0xff]
        %v3486 = vld [vmem:[%s391 + $0x328] sm:$0xff]
        %v3487 = vld [vmem:[%s391 + $0x330] sm:$0xff]
        %v3488 = vld [vmem:[%s391 + $0x338] sm:$0xff]
        %v3489 = vld [vmem:[%s391 + $0x340] sm:$0xff]
        %v3490 = vld [vmem:[%s391 + $0x348] sm:$0xff]
        %v3491 = vld [vmem:[%s391 + $0x350] sm:$0xff]
        %v3492 = vld [vmem:[%s391 + $0x358] sm:$0xff]
        %v3493 = vld [vmem:[%s391 + $0x360] sm:$0xff]
        %v3494 = vld [vmem:[%s391 + $0x368] sm:$0xff]
        %v3495 = vld [vmem:[%s391 + $0x370] sm:$0xff]
        %v3496 = vld [vmem:[%s391 + $0x378] sm:$0xff]
        %v3497 = vld [vmem:[%s391 + $0x380] sm:$0xff]
        %v3498 = vld [vmem:[%s391 + $0x388] sm:$0xff]
        %v3499 = vld [vmem:[%s391 + $0x390] sm:$0xff]
        %v3500 = vld [vmem:[%s391 + $0x398] sm:$0xff]
        %v3501 = vld [vmem:[%s391 + $0x3a0] sm:$0xff]
        %v3502 = vld [vmem:[%s391 + $0x3a8] sm:$0xff]
        %v3503 = vld [vmem:[%s391 + $0x3b0] sm:$0xff]
        %v3504 = vld [vmem:[%s391 + $0x3b8] sm:$0xff]
        %v3505 = vld [vmem:[%s391 + $0x3c0] sm:$0xff]
        %v3506 = vld [vmem:[%s391 + $0x3c8] sm:$0xff]
        %v3507 = vld [vmem:[%s391 + $0x3d0] sm:$0xff]
        %v3508 = vld [vmem:[%s391 + $0x3d8] sm:$0xff]
        %v3509 = vld [vmem:[%s391 + $0x3e0] sm:$0xff]
        %v3510 = vld [vmem:[%s391 + $0x3e8] sm:$0xff]
        %v3511 = vld [vmem:[%s391 + $0x3f0] sm:$0xff]
        %v3512 = vld [vmem:[%s391 + $0x3f8] sm:$0xff]
        %v3514 = vlaneseq
        %v3515 = vshrl.u32 %v3514, 7
        %v3516 = vsub.s32 0, %v3515
        %v3517 = vrot.slane %v3376, %v3516
        %v3518 = vlaneseq
        %v3519 = vshrl.u32 %v3518, 7
        %v3520 = vsub.s32 1, %v3519
        %v3521 = vrot.slane %v3376, %v3520
        %v3652 = vunpack.c.l.b16 %v3385
        %v3653 = vunpack.c.h.b16 %v3385
        %v3654 = vunpack.c.l.b16 %v3386
        %v3655 = vunpack.c.h.b16 %v3386
        %v3656 = vunpack.c.l.b16 %v3387
        %v3657 = vunpack.c.h.b16 %v3387
        %v3658 = vunpack.c.l.b16 %v3388
        %v3659 = vunpack.c.h.b16 %v3388
        %v3660 = vunpack.c.l.b16 %v3389
        %v3661 = vunpack.c.h.b16 %v3389
        %v3662 = vunpack.c.l.b16 %v3390
        %v3663 = vunpack.c.h.b16 %v3390
        %v3664 = vunpack.c.l.b16 %v3391
        %v3665 = vunpack.c.h.b16 %v3391
        %v3666 = vunpack.c.l.b16 %v3392
        %v3667 = vunpack.c.h.b16 %v3392
        %v3668 = vunpack.c.l.b16 %v3393
        %v3669 = vunpack.c.h.b16 %v3393
        %v3670 = vunpack.c.l.b16 %v3394
        %v3671 = vunpack.c.h.b16 %v3394
        %v3672 = vunpack.c.l.b16 %v3395
        %v3673 = vunpack.c.h.b16 %v3395
        %v3674 = vunpack.c.l.b16 %v3396
        %v3675 = vunpack.c.h.b16 %v3396
        %v3676 = vunpack.c.l.b16 %v3397
        %v3677 = vunpack.c.h.b16 %v3397
        %v3678 = vunpack.c.l.b16 %v3398
        %v3679 = vunpack.c.h.b16 %v3398
        %v3680 = vunpack.c.l.b16 %v3399
        %v3681 = vunpack.c.h.b16 %v3399
        %v3682 = vunpack.c.l.b16 %v3400
        %v3683 = vunpack.c.h.b16 %v3400
        %v3684 = vunpack.c.l.b16 %v3401
        %v3685 = vunpack.c.h.b16 %v3401
        %v3686 = vunpack.c.l.b16 %v3402
        %v3687 = vunpack.c.h.b16 %v3402
        %v3688 = vunpack.c.l.b16 %v3403
        %v3689 = vunpack.c.h.b16 %v3403
        %v3690 = vunpack.c.l.b16 %v3404
        %v3691 = vunpack.c.h.b16 %v3404
        %v3692 = vunpack.c.l.b16 %v3405
        %v3693 = vunpack.c.h.b16 %v3405
        %v3694 = vunpack.c.l.b16 %v3406
        %v3695 = vunpack.c.h.b16 %v3406
        %v3696 = vunpack.c.l.b16 %v3407
        %v3697 = vunpack.c.h.b16 %v3407
        %v3698 = vunpack.c.l.b16 %v3408
        %v3699 = vunpack.c.h.b16 %v3408
        %v3700 = vunpack.c.l.b16 %v3409
        %v3701 = vunpack.c.h.b16 %v3409
        %v3702 = vunpack.c.l.b16 %v3410
        %v3703 = vunpack.c.h.b16 %v3410
        %v3704 = vunpack.c.l.b16 %v3411
        %v3705 = vunpack.c.h.b16 %v3411
        %v3706 = vunpack.c.l.b16 %v3412
        %v3707 = vunpack.c.h.b16 %v3412
        %v3708 = vunpack.c.l.b16 %v3413
        %v3709 = vunpack.c.h.b16 %v3413
        %v3710 = vunpack.c.l.b16 %v3414
        %v3711 = vunpack.c.h.b16 %v3414
        %v3712 = vunpack.c.l.b16 %v3415
        %v3713 = vunpack.c.h.b16 %v3415
        %v3714 = vunpack.c.l.b16 %v3416
        %v3715 = vunpack.c.h.b16 %v3416
        %v3716 = vunpack.c.l.b16 %v3417
        %v3717 = vunpack.c.h.b16 %v3417
        %v3718 = vunpack.c.l.b16 %v3418
        %v3719 = vunpack.c.h.b16 %v3418
        %v3720 = vunpack.c.l.b16 %v3419
        %v3721 = vunpack.c.h.b16 %v3419
        %v3722 = vunpack.c.l.b16 %v3420
        %v3723 = vunpack.c.h.b16 %v3420
        %v3724 = vunpack.c.l.b16 %v3421
        %v3725 = vunpack.c.h.b16 %v3421
        %v3726 = vunpack.c.l.b16 %v3422
        %v3727 = vunpack.c.h.b16 %v3422
        %v3728 = vunpack.c.l.b16 %v3423
        %v3729 = vunpack.c.h.b16 %v3423
        %v3730 = vunpack.c.l.b16 %v3424
        %v3731 = vunpack.c.h.b16 %v3424
        %v3732 = vunpack.c.l.b16 %v3425
        %v3733 = vunpack.c.h.b16 %v3425
        %v3734 = vunpack.c.l.b16 %v3426
        %v3735 = vunpack.c.h.b16 %v3426
        %v3736 = vunpack.c.l.b16 %v3427
        %v3737 = vunpack.c.h.b16 %v3427
        %v3738 = vunpack.c.l.b16 %v3428
        %v3739 = vunpack.c.h.b16 %v3428
        %v3740 = vunpack.c.l.b16 %v3429
        %v3741 = vunpack.c.h.b16 %v3429
        %v3742 = vunpack.c.l.b16 %v3430
        %v3743 = vunpack.c.h.b16 %v3430
        %v3744 = vunpack.c.l.b16 %v3431
        %v3745 = vunpack.c.h.b16 %v3431
        %v3746 = vunpack.c.l.b16 %v3432
        %v3747 = vunpack.c.h.b16 %v3432
        %v3748 = vunpack.c.l.b16 %v3433
        %v3749 = vunpack.c.h.b16 %v3433
        %v3750 = vunpack.c.l.b16 %v3434
        %v3751 = vunpack.c.h.b16 %v3434
        %v3752 = vunpack.c.l.b16 %v3435
        %v3753 = vunpack.c.h.b16 %v3435
        %v3754 = vunpack.c.l.b16 %v3436
        %v3755 = vunpack.c.h.b16 %v3436
        %v3756 = vunpack.c.l.b16 %v3437
        %v3757 = vunpack.c.h.b16 %v3437
        %v3758 = vunpack.c.l.b16 %v3438
        %v3759 = vunpack.c.h.b16 %v3438
        %v3760 = vunpack.c.l.b16 %v3439
        %v3761 = vunpack.c.h.b16 %v3439
        %v3762 = vunpack.c.l.b16 %v3440
        %v3763 = vunpack.c.h.b16 %v3440
        %v3764 = vunpack.c.l.b16 %v3441
        %v3765 = vunpack.c.h.b16 %v3441
        %v3766 = vunpack.c.l.b16 %v3442
        %v3767 = vunpack.c.h.b16 %v3442
        %v3768 = vunpack.c.l.b16 %v3443
        %v3769 = vunpack.c.h.b16 %v3443
        %v3770 = vunpack.c.l.b16 %v3444
        %v3771 = vunpack.c.h.b16 %v3444
        %v3772 = vunpack.c.l.b16 %v3445
        %v3773 = vunpack.c.h.b16 %v3445
        %v3774 = vunpack.c.l.b16 %v3446
        %v3775 = vunpack.c.h.b16 %v3446
        %v3776 = vunpack.c.l.b16 %v3447
        %v3777 = vunpack.c.h.b16 %v3447
        %v3778 = vunpack.c.l.b16 %v3448
        %v3779 = vunpack.c.h.b16 %v3448
        %v3780 = vunpack.c.l.b16 %v3449
        %v3781 = vunpack.c.h.b16 %v3449
        %v3782 = vunpack.c.l.b16 %v3450
        %v3783 = vunpack.c.h.b16 %v3450
        %v3784 = vunpack.c.l.b16 %v3451
        %v3785 = vunpack.c.h.b16 %v3451
        %v3786 = vunpack.c.l.b16 %v3452
        %v3787 = vunpack.c.h.b16 %v3452
        %v3788 = vunpack.c.l.b16 %v3453
        %v3789 = vunpack.c.h.b16 %v3453
        %v3790 = vunpack.c.l.b16 %v3454
        %v3791 = vunpack.c.h.b16 %v3454
        %v3792 = vunpack.c.l.b16 %v3455
        %v3793 = vunpack.c.h.b16 %v3455
        %v3794 = vunpack.c.l.b16 %v3456
        %v3795 = vunpack.c.h.b16 %v3456
        %v3796 = vunpack.c.l.b16 %v3457
        %v3797 = vunpack.c.h.b16 %v3457
        %v3798 = vunpack.c.l.b16 %v3458
        %v3799 = vunpack.c.h.b16 %v3458
        %v3800 = vunpack.c.l.b16 %v3459
        %v3801 = vunpack.c.h.b16 %v3459
        %v3802 = vunpack.c.l.b16 %v3460
        %v3803 = vunpack.c.h.b16 %v3460
        %v3804 = vunpack.c.l.b16 %v3461
        %v3805 = vunpack.c.h.b16 %v3461
        %v3806 = vunpack.c.l.b16 %v3462
        %v3807 = vunpack.c.h.b16 %v3462
        %v3808 = vunpack.c.l.b16 %v3463
        %v3809 = vunpack.c.h.b16 %v3463
        %v3810 = vunpack.c.l.b16 %v3464
        %v3811 = vunpack.c.h.b16 %v3464
        %v3812 = vunpack.c.l.b16 %v3465
        %v3813 = vunpack.c.h.b16 %v3465
        %v3814 = vunpack.c.l.b16 %v3466
        %v3815 = vunpack.c.h.b16 %v3466
        %v3816 = vunpack.c.l.b16 %v3467
        %v3817 = vunpack.c.h.b16 %v3467
        %v3818 = vunpack.c.l.b16 %v3468
        %v3819 = vunpack.c.h.b16 %v3468
        %v3820 = vunpack.c.l.b16 %v3469
        %v3821 = vunpack.c.h.b16 %v3469
        %v3822 = vunpack.c.l.b16 %v3470
        %v3823 = vunpack.c.h.b16 %v3470
        %v3824 = vunpack.c.l.b16 %v3471
        %v3825 = vunpack.c.h.b16 %v3471
        %v3826 = vunpack.c.l.b16 %v3472
        %v3827 = vunpack.c.h.b16 %v3472
        %v3828 = vunpack.c.l.b16 %v3473
        %v3829 = vunpack.c.h.b16 %v3473
        %v3830 = vunpack.c.l.b16 %v3474
        %v3831 = vunpack.c.h.b16 %v3474
        %v3832 = vunpack.c.l.b16 %v3475
        %v3833 = vunpack.c.h.b16 %v3475
        %v3834 = vunpack.c.l.b16 %v3476
        %v3835 = vunpack.c.h.b16 %v3476
        %v3836 = vunpack.c.l.b16 %v3477
        %v3837 = vunpack.c.h.b16 %v3477
        %v3838 = vunpack.c.l.b16 %v3478
        %v3839 = vunpack.c.h.b16 %v3478
        %v3840 = vunpack.c.l.b16 %v3479
        %v3841 = vunpack.c.h.b16 %v3479
        %v3842 = vunpack.c.l.b16 %v3480
        %v3843 = vunpack.c.h.b16 %v3480
        %v3844 = vunpack.c.l.b16 %v3481
        %v3845 = vunpack.c.h.b16 %v3481
        %v3846 = vunpack.c.l.b16 %v3482
        %v3847 = vunpack.c.h.b16 %v3482
        %v3848 = vunpack.c.l.b16 %v3483
        %v3849 = vunpack.c.h.b16 %v3483
        %v3850 = vunpack.c.l.b16 %v3484
        %v3851 = vunpack.c.h.b16 %v3484
        %v3852 = vunpack.c.l.b16 %v3485
        %v3853 = vunpack.c.h.b16 %v3485
        %v3854 = vunpack.c.l.b16 %v3486
        %v3855 = vunpack.c.h.b16 %v3486
        %v3856 = vunpack.c.l.b16 %v3487
        %v3857 = vunpack.c.h.b16 %v3487
        %v3858 = vunpack.c.l.b16 %v3488
        %v3859 = vunpack.c.h.b16 %v3488
        %v3860 = vunpack.c.l.b16 %v3489
        %v3861 = vunpack.c.h.b16 %v3489
        %v3862 = vunpack.c.l.b16 %v3490
        %v3863 = vunpack.c.h.b16 %v3490
        %v3864 = vunpack.c.l.b16 %v3491
        %v3865 = vunpack.c.h.b16 %v3491
        %v3866 = vunpack.c.l.b16 %v3492
        %v3867 = vunpack.c.h.b16 %v3492
        %v3868 = vunpack.c.l.b16 %v3493
        %v3869 = vunpack.c.h.b16 %v3493
        %v3870 = vunpack.c.l.b16 %v3494
        %v3871 = vunpack.c.h.b16 %v3494
        %v3872 = vunpack.c.l.b16 %v3495
        %v3873 = vunpack.c.h.b16 %v3495
        %v3874 = vunpack.c.l.b16 %v3496
        %v3875 = vunpack.c.h.b16 %v3496
        %v3876 = vunpack.c.l.b16 %v3497
        %v3877 = vunpack.c.h.b16 %v3497
        %v3878 = vunpack.c.l.b16 %v3498
        %v3879 = vunpack.c.h.b16 %v3498
        %v3880 = vunpack.c.l.b16 %v3499
        %v3881 = vunpack.c.h.b16 %v3499
        %v3882 = vunpack.c.l.b16 %v3500
        %v3883 = vunpack.c.h.b16 %v3500
        %v3884 = vunpack.c.l.b16 %v3501
        %v3885 = vunpack.c.h.b16 %v3501
        %v3886 = vunpack.c.l.b16 %v3502
        %v3887 = vunpack.c.h.b16 %v3502
        %v3888 = vunpack.c.l.b16 %v3503
        %v3889 = vunpack.c.h.b16 %v3503
        %v3890 = vunpack.c.l.b16 %v3504
        %v3891 = vunpack.c.h.b16 %v3504
        %v3892 = vunpack.c.l.b16 %v3505
        %v3893 = vunpack.c.h.b16 %v3505
        %v3894 = vunpack.c.l.b16 %v3506
        %v3895 = vunpack.c.h.b16 %v3506
        %v3896 = vunpack.c.l.b16 %v3507
        %v3897 = vunpack.c.h.b16 %v3507
        %v3898 = vunpack.c.l.b16 %v3508
        %v3899 = vunpack.c.h.b16 %v3508
        %v3900 = vunpack.c.l.b16 %v3509
        %v3901 = vunpack.c.h.b16 %v3509
        %v3902 = vunpack.c.l.b16 %v3510
        %v3903 = vunpack.c.h.b16 %v3510
        %v3904 = vunpack.c.l.b16 %v3511
        %v3905 = vunpack.c.h.b16 %v3511
        %v3906 = vunpack.c.l.b16 %v3512
        %v3907 = vunpack.c.h.b16 %v3512
        %v3908 = vpack.c.b16 %v3654, %v3652
        %v3909 = vpack.c.b16 %v3655, %v3653
        %v3910 = vpack.c.b16 %v3658, %v3656
        %v3911 = vpack.c.b16 %v3659, %v3657
        %v3912 = vpack.c.b16 %v3662, %v3660
        %v3913 = vpack.c.b16 %v3663, %v3661
        %v3914 = vpack.c.b16 %v3666, %v3664
        %v3915 = vpack.c.b16 %v3667, %v3665
        %v3916 = vpack.c.b16 %v3670, %v3668
        %v3917 = vpack.c.b16 %v3671, %v3669
        %v3918 = vpack.c.b16 %v3674, %v3672
        %v3919 = vpack.c.b16 %v3675, %v3673
        %v3920 = vpack.c.b16 %v3678, %v3676
        %v3921 = vpack.c.b16 %v3679, %v3677
        %v3922 = vpack.c.b16 %v3682, %v3680
        %v3923 = vpack.c.b16 %v3683, %v3681
        %v3924 = vpack.c.b16 %v3686, %v3684
        %v3925 = vpack.c.b16 %v3687, %v3685
        %v3926 = vpack.c.b16 %v3690, %v3688
        %v3927 = vpack.c.b16 %v3691, %v3689
        %v3928 = vpack.c.b16 %v3694, %v3692
        %v3929 = vpack.c.b16 %v3695, %v3693
        %v3930 = vpack.c.b16 %v3698, %v3696
        %v3931 = vpack.c.b16 %v3699, %v3697
        %v3932 = vpack.c.b16 %v3702, %v3700
        %v3933 = vpack.c.b16 %v3703, %v3701
        %v3934 = vpack.c.b16 %v3706, %v3704
        %v3935 = vpack.c.b16 %v3707, %v3705
        %v3936 = vpack.c.b16 %v3710, %v3708
        %v3937 = vpack.c.b16 %v3711, %v3709
        %v3938 = vpack.c.b16 %v3714, %v3712
        %v3939 = vpack.c.b16 %v3715, %v3713
        %v3940 = vpack.c.b16 %v3718, %v3716
        %v3941 = vpack.c.b16 %v3719, %v3717
        %v3942 = vpack.c.b16 %v3722, %v3720
        %v3943 = vpack.c.b16 %v3723, %v3721
        %v3944 = vpack.c.b16 %v3726, %v3724
        %v3945 = vpack.c.b16 %v3727, %v3725
        %v3946 = vpack.c.b16 %v3730, %v3728
        %v3947 = vpack.c.b16 %v3731, %v3729
        %v3948 = vpack.c.b16 %v3734, %v3732
        %v3949 = vpack.c.b16 %v3735, %v3733
        %v3950 = vpack.c.b16 %v3738, %v3736
        %v3951 = vpack.c.b16 %v3739, %v3737
        %v3952 = vpack.c.b16 %v3742, %v3740
        %v3953 = vpack.c.b16 %v3743, %v3741
        %v3954 = vpack.c.b16 %v3746, %v3744
        %v3955 = vpack.c.b16 %v3747, %v3745
        %v3956 = vpack.c.b16 %v3750, %v3748
        %v3957 = vpack.c.b16 %v3751, %v3749
        %v3958 = vpack.c.b16 %v3754, %v3752
        %v3959 = vpack.c.b16 %v3755, %v3753
        %v3960 = vpack.c.b16 %v3758, %v3756
        %v3961 = vpack.c.b16 %v3759, %v3757
        %v3962 = vpack.c.b16 %v3762, %v3760
        %v3963 = vpack.c.b16 %v3763, %v3761
        %v3964 = vpack.c.b16 %v3766, %v3764
        %v3965 = vpack.c.b16 %v3767, %v3765
        %v3966 = vpack.c.b16 %v3770, %v3768
        %v3967 = vpack.c.b16 %v3771, %v3769
        %v3968 = vpack.c.b16 %v3774, %v3772
        %v3969 = vpack.c.b16 %v3775, %v3773
        %v3970 = vpack.c.b16 %v3778, %v3776
        %v3971 = vpack.c.b16 %v3779, %v3777
        %v3972 = vpack.c.b16 %v3782, %v3780
        %v3973 = vpack.c.b16 %v3783, %v3781
        %v3974 = vpack.c.b16 %v3786, %v3784
        %v3975 = vpack.c.b16 %v3787, %v3785
        %v3976 = vpack.c.b16 %v3790, %v3788
        %v3977 = vpack.c.b16 %v3791, %v3789
        %v3978 = vpack.c.b16 %v3794, %v3792
        %v3979 = vpack.c.b16 %v3795, %v3793
        %v3980 = vpack.c.b16 %v3798, %v3796
        %v3981 = vpack.c.b16 %v3799, %v3797
        %v3982 = vpack.c.b16 %v3802, %v3800
        %v3983 = vpack.c.b16 %v3803, %v3801
        %v3984 = vpack.c.b16 %v3806, %v3804
        %v3985 = vpack.c.b16 %v3807, %v3805
        %v3986 = vpack.c.b16 %v3810, %v3808
        %v3987 = vpack.c.b16 %v3811, %v3809
        %v3988 = vpack.c.b16 %v3814, %v3812
        %v3989 = vpack.c.b16 %v3815, %v3813
        %v3990 = vpack.c.b16 %v3818, %v3816
        %v3991 = vpack.c.b16 %v3819, %v3817
        %v3992 = vpack.c.b16 %v3822, %v3820
        %v3993 = vpack.c.b16 %v3823, %v3821
        %v3994 = vpack.c.b16 %v3826, %v3824
        %v3995 = vpack.c.b16 %v3827, %v3825
        %v3996 = vpack.c.b16 %v3830, %v3828
        %v3997 = vpack.c.b16 %v3831, %v3829
        %v3998 = vpack.c.b16 %v3834, %v3832
        %v3999 = vpack.c.b16 %v3835, %v3833
        %v4000 = vpack.c.b16 %v3838, %v3836
        %v4001 = vpack.c.b16 %v3839, %v3837
        %v4002 = vpack.c.b16 %v3842, %v3840
        %v4003 = vpack.c.b16 %v3843, %v3841
        %v4004 = vpack.c.b16 %v3846, %v3844
        %v4005 = vpack.c.b16 %v3847, %v3845
        %v4006 = vpack.c.b16 %v3850, %v3848
        %v4007 = vpack.c.b16 %v3851, %v3849
        %v4008 = vpack.c.b16 %v3854, %v3852
        %v4009 = vpack.c.b16 %v3855, %v3853
        %v4010 = vpack.c.b16 %v3858, %v3856
        %v4011 = vpack.c.b16 %v3859, %v3857
        %v4012 = vpack.c.b16 %v3862, %v3860
        %v4013 = vpack.c.b16 %v3863, %v3861
        %v4014 = vpack.c.b16 %v3866, %v3864
        %v4015 = vpack.c.b16 %v3867, %v3865
        %v4016 = vpack.c.b16 %v3870, %v3868
        %v4017 = vpack.c.b16 %v3871, %v3869
        %v4018 = vpack.c.b16 %v3874, %v3872
        %v4019 = vpack.c.b16 %v3875, %v3873
        %v4020 = vpack.c.b16 %v3878, %v3876
        %v4021 = vpack.c.b16 %v3879, %v3877
        %v4022 = vpack.c.b16 %v3882, %v3880
        %v4023 = vpack.c.b16 %v3883, %v3881
        %v4024 = vpack.c.b16 %v3886, %v3884
        %v4025 = vpack.c.b16 %v3887, %v3885
        %v4026 = vpack.c.b16 %v3890, %v3888
        %v4027 = vpack.c.b16 %v3891, %v3889
        %v4028 = vpack.c.b16 %v3894, %v3892
        %v4029 = vpack.c.b16 %v3895, %v3893
        %v4030 = vpack.c.b16 %v3898, %v3896
        %v4031 = vpack.c.b16 %v3899, %v3897
        %v4032 = vpack.c.b16 %v3902, %v3900
        %v4033 = vpack.c.b16 %v3903, %v3901
        %v4034 = vpack.c.b16 %v3906, %v3904
        %v4035 = vpack.c.b16 %v3907, %v3905
        %4164 = vmatprep.subr.bf16.mxu0 %v3909
        %4165 = vmatpush1.bf16.msra.mxu0 %v3908
        %4166 = vmatprep.subr.bf16.mxu0 %v3911
        %4167 = vmatpush1.bf16.msra.mxu0 %v3910
        %4168 = vmatprep.subr.bf16.mxu0 %v3913
        %4169 = vmatpush1.bf16.msra.mxu0 %v3912
        %4170 = vmatprep.subr.bf16.mxu0 %v3915
        %4171 = vmatpush1.bf16.msra.mxu0 %v3914
        %4172 = vmatprep.subr.bf16.mxu0 %v3917
        %4173 = vmatpush1.bf16.msra.mxu0 %v3916
        %4174 = vmatprep.subr.bf16.mxu0 %v3919
        %4175 = vmatpush1.bf16.msra.mxu0 %v3918
        %4176 = vmatprep.subr.bf16.mxu0 %v3921
        %4177 = vmatpush1.bf16.msra.mxu0 %v3920
        %4178 = vmatprep.subr.bf16.mxu0 %v3923
        %4179 = vmatpush1.bf16.msra.mxu0 %v3922
        %4180 = vmatprep.subr.bf16.mxu0 %v3925
        %4181 = vmatpush1.bf16.msra.mxu0 %v3924
        %4182 = vmatprep.subr.bf16.mxu0 %v3927
        %4183 = vmatpush1.bf16.msra.mxu0 %v3926
        %4184 = vmatprep.subr.bf16.mxu0 %v3929
        %4185 = vmatpush1.bf16.msra.mxu0 %v3928
        %4186 = vmatprep.subr.bf16.mxu0 %v3931
        %4187 = vmatpush1.bf16.msra.mxu0 %v3930
        %4188 = vmatprep.subr.bf16.mxu0 %v3933
        %4189 = vmatpush1.bf16.msra.mxu0 %v3932
        %4190 = vmatprep.subr.bf16.mxu0 %v3935
        %4191 = vmatpush1.bf16.msra.mxu0 %v3934
        %4192 = vmatprep.subr.bf16.mxu0 %v3937
        %4193 = vmatpush1.bf16.msra.mxu0 %v3936
        %4194 = vmatprep.subr.bf16.mxu0 %v3939
        %4195 = vmatpush1.bf16.msra.mxu0 %v3938
        %4196 = vmatprep.mubr.bf16.mxu0 %v3378
        %4197 = vmatmul.mubr.bf16.gmra.mrb[0].mxu0 %v3377
        %v4198 = vpop.f32.mrb[0].mxu0
        %v4199 = vadd.f32 %v3517, %v4198
        %v4200 = vpop.f32.mrb[0].mxu0
        %v4201 = vadd.f32 %v3521, %v4200
        %v4202 = vpop.f32.mrb[0].mxu0
        %v4203 = vpop.f32.mrb[0].mxu0
        %4204 = vdwg.mxu0
        %4205 = vmatprep.subr.bf16.mxu0 %v3941
        %4206 = vmatpush1.bf16.msra.mxu0 %v3940
        %4207 = vmatprep.subr.bf16.mxu0 %v3943
        %4208 = vmatpush1.bf16.msra.mxu0 %v3942
        %4209 = vmatprep.subr.bf16.mxu0 %v3945
        %4210 = vmatpush1.bf16.msra.mxu0 %v3944
        %4211 = vmatprep.subr.bf16.mxu0 %v3947
        %4212 = vmatpush1.bf16.msra.mxu0 %v3946
        %4213 = vmatprep.subr.bf16.mxu0 %v3949
        %4214 = vmatpush1.bf16.msra.mxu0 %v3948
        %4215 = vmatprep.subr.bf16.mxu0 %v3951
        %4216 = vmatpush1.bf16.msra.mxu0 %v3950
        %4217 = vmatprep.subr.bf16.mxu0 %v3953
        %4218 = vmatpush1.bf16.msra.mxu0 %v3952
        %4219 = vmatprep.subr.bf16.mxu0 %v3955
        %4220 = vmatpush1.bf16.msra.mxu0 %v3954
        %4221 = vmatprep.subr.bf16.mxu0 %v3957
        %4222 = vmatpush1.bf16.msra.mxu0 %v3956
        %4223 = vmatprep.subr.bf16.mxu0 %v3959
        %4224 = vmatpush1.bf16.msra.mxu0 %v3958
        %4225 = vmatprep.subr.bf16.mxu0 %v3961
        %4226 = vmatpush1.bf16.msra.mxu0 %v3960
        %4227 = vmatprep.subr.bf16.mxu0 %v3963
        %4228 = vmatpush1.bf16.msra.mxu0 %v3962
        %4229 = vmatprep.subr.bf16.mxu0 %v3965
        %4230 = vmatpush1.bf16.msra.mxu0 %v3964
        %4231 = vmatprep.subr.bf16.mxu0 %v3967
        %4232 = vmatpush1.bf16.msra.mxu0 %v3966
        %4233 = vmatprep.subr.bf16.mxu0 %v3969
        %4234 = vmatpush1.bf16.msra.mxu0 %v3968
        %4235 = vmatprep.subr.bf16.mxu0 %v3971
        %4236 = vmatpush1.bf16.msra.mxu0 %v3970
        %4237 = vmatprep.mubr.bf16.mxu0 %v3380
        %4238 = vmatmul.mubr.bf16.gmra.mrb[0].mxu0 %v3379
        %v4239 = vpop.f32.mrb[0].mxu0
        %v4240 = vadd.f32 %v4199, %v4239
        %v4241 = vpop.f32.mrb[0].mxu0
        %v4242 = vadd.f32 %v4201, %v4241
        %v4243 = vpop.f32.mrb[0].mxu0
        %v4244 = vpop.f32.mrb[0].mxu0
        %4245 = vdwg.mxu0
        %4246 = vmatprep.subr.bf16.mxu0 %v3973
        %4247 = vmatpush1.bf16.msra.mxu0 %v3972
        %4248 = vmatprep.subr.bf16.mxu0 %v3975
        %4249 = vmatpush1.bf16.msra.mxu0 %v3974
        %4250 = vmatprep.subr.bf16.mxu0 %v3977
        %4251 = vmatpush1.bf16.msra.mxu0 %v3976
        %4252 = vmatprep.subr.bf16.mxu0 %v3979
        %4253 = vmatpush1.bf16.msra.mxu0 %v3978
        %4254 = vmatprep.subr.bf16.mxu0 %v3981
        %4255 = vmatpush1.bf16.msra.mxu0 %v3980
        %4256 = vmatprep.subr.bf16.mxu0 %v3983
        %4257 = vmatpush1.bf16.msra.mxu0 %v3982
        %4258 = vmatprep.subr.bf16.mxu0 %v3985
        %4259 = vmatpush1.bf16.msra.mxu0 %v3984
        %4260 = vmatprep.subr.bf16.mxu0 %v3987
        %4261 = vmatpush1.bf16.msra.mxu0 %v3986
        %4262 = vmatprep.subr.bf16.mxu0 %v3989
        %4263 = vmatpush1.bf16.msra.mxu0 %v3988
        %4264 = vmatprep.subr.bf16.mxu0 %v3991
        %4265 = vmatpush1.bf16.msra.mxu0 %v3990
        %4266 = vmatprep.subr.bf16.mxu0 %v3993
        %4267 = vmatpush1.bf16.msra.mxu0 %v3992
        %4268 = vmatprep.subr.bf16.mxu0 %v3995
        %4269 = vmatpush1.bf16.msra.mxu0 %v3994
        %4270 = vmatprep.subr.bf16.mxu0 %v3997
        %4271 = vmatpush1.bf16.msra.mxu0 %v3996
        %4272 = vmatprep.subr.bf16.mxu0 %v3999
        %4273 = vmatpush1.bf16.msra.mxu0 %v3998
        %4274 = vmatprep.subr.bf16.mxu0 %v4001
        %4275 = vmatpush1.bf16.msra.mxu0 %v4000
        %4276 = vmatprep.subr.bf16.mxu0 %v4003
        %4277 = vmatpush1.bf16.msra.mxu0 %v4002
        %4278 = vmatprep.mubr.bf16.mxu0 %v3382
        %4279 = vmatmul.mubr.bf16.gmra.mrb[0].mxu0 %v3381
        %v4280 = vpop.f32.mrb[0].mxu0
        %v4281 = vadd.f32 %v4240, %v4280
        %v4282 = vpop.f32.mrb[0].mxu0
        %v4283 = vadd.f32 %v4242, %v4282
        %v4284 = vpop.f32.mrb[0].mxu0
        %v4285 = vpop.f32.mrb[0].mxu0
        %4286 = vdwg.mxu0
        %4287 = vmatprep.subr.bf16.mxu0 %v4005
        %4288 = vmatpush1.bf16.msra.mxu0 %v4004
        %4289 = vmatprep.subr.bf16.mxu0 %v4007
        %4290 = vmatpush1.bf16.msra.mxu0 %v4006
        %4291 = vmatprep.subr.bf16.mxu0 %v4009
        %4292 = vmatpush1.bf16.msra.mxu0 %v4008
        %4293 = vmatprep.subr.bf16.mxu0 %v4011
        %4294 = vmatpush1.bf16.msra.mxu0 %v4010
        %4295 = vmatprep.subr.bf16.mxu0 %v4013
        %4296 = vmatpush1.bf16.msra.mxu0 %v4012
        %4297 = vmatprep.subr.bf16.mxu0 %v4015
        %4298 = vmatpush1.bf16.msra.mxu0 %v4014
        %4299 = vmatprep.subr.bf16.mxu0 %v4017
        %4300 = vmatpush1.bf16.msra.mxu0 %v4016
        %4301 = vmatprep.subr.bf16.mxu0 %v4019
        %4302 = vmatpush1.bf16.msra.mxu0 %v4018
        %4303 = vmatprep.subr.bf16.mxu0 %v4021
        %4304 = vmatpush1.bf16.msra.mxu0 %v4020
        %4305 = vmatprep.subr.bf16.mxu0 %v4023
        %4306 = vmatpush1.bf16.msra.mxu0 %v4022
        %4307 = vmatprep.subr.bf16.mxu0 %v4025
        %4308 = vmatpush1.bf16.msra.mxu0 %v4024
        %4309 = vmatprep.subr.bf16.mxu0 %v4027
        %4310 = vmatpush1.bf16.msra.mxu0 %v4026
        %4311 = vmatprep.subr.bf16.mxu0 %v4029
        %4312 = vmatpush1.bf16.msra.mxu0 %v4028
        %4313 = vmatprep.subr.bf16.mxu0 %v4031
        %4314 = vmatpush1.bf16.msra.mxu0 %v4030
        %4315 = vmatprep.subr.bf16.mxu0 %v4033
        %4316 = vmatpush1.bf16.msra.mxu0 %v4032
        %4317 = vmatprep.subr.bf16.mxu0 %v4035
        %4318 = vmatpush1.bf16.msra.mxu0 %v4034
        %4319 = vmatprep.mubr.bf16.mxu0 %v3384
        %4320 = vmatmul.mubr.bf16.gmra.mrb[0].mxu0 %v3383
        %v4321 = vpop.f32.mrb[0].mxu0
        %v4322 = vadd.f32 %v4281, %v4321
        %v4323 = vpop.f32.mrb[0].mxu0
        %v4324 = vadd.f32 %v4283, %v4323
        %v4325 = vpop.f32.mrb[0].mxu0
        %v4326 = vpop.f32.mrb[0].mxu0
        %4327 = vdwg.mxu0
        %v4328 = vtanh.pop %v4322
        %v4329 = vtanh.pop %v4324
        %v4332 = vcombine.low %v4328, %v4329
        %v4334 = vunpack.c.l.s4 1983009808
        %v4335 = vunpack.c.0.s8 %v4334
        %v4336 = vlaneseq
        %v4337 = vshrl.u32 %v4336, 7
        %v4338 = vsub.s32 %v4335, %v4337
        %v4339 = vrot.slane %v4332, %v4338
        %4341 = vst [vmem:[%s437] sm:$0xf] %v4339
        %s4342 = sand.u32 %s212, 1
        %s4343 = scalar_lea.sflag [#allocation4], %s4342
        %s4344 = sand.u32 %s212, 1
        %s4345 = smul.addr %s4344, 4
        %s4346 = scalar_lea.vmem [#allocation15], %s4345
        // Predicated region
        $region85: #{tpu_custom_call.1} parent=51 // pred_check
          %p4347 = pneg %p222
        $region86: #{tpu_custom_call.1} parent=51 // pred_check_branch
          %4349 = sbr.rel (%p4347) target = $region88
        $region87: #{tpu_custom_call.1} parent=51 // pred_region
          %s4350 = smul.u32 2, %s26
          %s4352 = ssub.s32 64, 64
          %4353 = vsyncadd %s4343, %s4352
          %s4354 = smul.addr %s4350, 32
          %s4355 = scalar_lea.hbm %s8, %s4354
          %s4357 = sshll.u32 %s4346, 4
          %s4358 = int_to_ptr.vmem [resolvable:$true] %s4357
          %4360 = dma.vmem_to_hbm [thread:$0]  %s4358, 64, %s4355, %s4343
        $region88: #{tpu_custom_call.1} parent=51 // pred_fallthru
          _
      $region52: #{tpu_custom_call.1} parent=5 // pred_fallthru
        _
      %p4361 = scmp.le.s32.totalorder 2, %s21
      // Predicated region
      $region89: #{tpu_custom_call.1} parent=5 // pred_check
        %p4362 = pneg %p4361
      $region90: #{tpu_custom_call.1} parent=5 // pred_check_branch
        %4364 = sbr.rel (%p4362) target = $region92
      $region91: #{tpu_custom_call.1} parent=5 // pred_region
        %s4365 = ssub.s32 %s21, 2
        // Predicated region
        $region93: #{tpu_custom_call.1} parent=91 // pred_check
          %p4366 = pneg %p228
        $region94: #{tpu_custom_call.1} parent=91 // pred_check_branch
          %4368 = sbr.rel (%p4366) target = $region96
        $region95: #{tpu_custom_call.1} parent=91 // pred_region
          %s4369 = sand.u32 %s213, 1
          %s4370 = scalar_lea.sflag [#allocation4], %s4369
          %s4371 = sand.u32 %s213, 1
          %s4372 = smul.addr %s4371, 4
          %s4373 = scalar_lea.vmem [#allocation15], %s4372
          %4374 = dma.done %s4370, 64
        $region96: #{tpu_custom_call.1} parent=91 // pred_fallthru
          _
      $region92: #{tpu_custom_call.1} parent=5 // pred_fallthru
        _
    $region6: #{tpu_custom_call.1} parent=1 // loop_footer
      %s25 = sadd.s32 1, %s21
    $region7: #{tpu_custom_call.1} parent=1 // loop_footer_branch
      %20 = sbr.rel target = $region3
    $region8: #{tpu_custom_call.1} parent=1 // loop_exit
      _
    %4375 = vsyncpa [#allocation3], 1
    %s4376 = scalar_lea.sflag [#allocation3], 1
    %4377 = vsyncpa %s4376, 1
    %4378 = vsyncpa [#allocation6], 1
    %4379 = vsyncpa [#allocation9], 1
    %4380 = vsyncpa [#allocation12], 1
    %4381 = vsyncpa [#allocation4], 1
    %s4382 = scalar_lea.sflag [#allocation4], 1
    %4383 = vsyncpa %s4382, 1

</llo_original>
